<compile_context>
chip_gen: v7x
topology: tpu7x:2x2x1
jax: 0.10.0
libtpu: 0.0.40
codegen_flags: <defaults>
</compile_context>

<pallas_src>
import functools

import jax
import jax.numpy as jnp
from jax.experimental import pallas as pl
from jax.experimental.pallas import tpu as pltpu


# ----------------------------------------------------------------------------
# Fused kernel: one grid step == one image (batch element)
# ----------------------------------------------------------------------------

def layer_block_kernel(x_ref, s1_ref, t1_ref, w1_ref, s2_ref, t2_ref, w2_ref,
                       sw1_ref, sb1_ref, sw2_ref, sb2_ref,
                       o_ref, pad_ref, col_ref, *, H, W, C):
    """One batch element of LayerBlock, fully in VMEM.

    x_ref  : (1, C, H*W)  NCHW image, spatial flattened (lane-dense input)
    s*/t*  : (1, C)       folded BN scale / shift
    w*_ref : (9*C, C)     im2col conv weights, (kh, kw, cin)-major
    sw*/sb*: SE linear weights/biases ((C, C//r), (1, C//r), (C//r, C), (1, C))
    o_ref  : (1, C, H*W)  output (lane-dense)
    pad_ref: (H+2, W+2, C) VMEM scratch, zero border shared by both convs
    col_ref: (H, W, 9*C)   VMEM im2col scratch, reused by both convs
    """
    HW = H * W

    # --- NCHW -> channels-minor, entirely in VMEM (no wrapper HBM transpose)
    x_cm = x_ref[0].T                       # (H*W, C)
    x3 = x_cm.reshape(H, W, C)              # (H, W, C)

    # Zero the padded scratch once; both convs only rewrite the interior, so
    # the zero border is reused (matches conv padding=1).
    pad_ref[...] = jnp.zeros_like(pad_ref)

    def bn_relu(a, s_ref, t_ref):
        # folded eval-mode BatchNorm + ReLU; (1, C) broadcasts over (H, W, C)
        return jnp.maximum(a * s_ref[...] + t_ref[...], 0.0)

    def conv3x3(a3, w_ref):
        # 3x3 / stride 1 / pad 1 conv as a single im2col matmul on the MXU.
        pad_ref[1:H + 1, 1:W + 1, :] = a3
        for kh in range(3):                 # static unrolled tap gather
            for kw in range(3):
                t = kh * 3 + kw
                col_ref[:, :, t * C:(t + 1) * C] = pad_ref[kh:kh + H, kw:kw + W, :]
        # (H, W, 9C) x (9C, C) -> (H, W, C); K = 9*C amortizes MXU fill/drain.
        return jnp.einsum("hwk,kc->hwc", col_ref[...], w_ref[...],
                          preferred_element_type=jnp.float32)

    a1 = bn_relu(x3, s1_ref, t1_ref)        # bn1 + relu
    o1 = conv3x3(a1, w1_ref)                # conv1
    a2 = bn_relu(o1, s2_ref, t2_ref)        # bn2 + relu
    o2 = conv3x3(a2, w2_ref)                # conv2

    # --- SE epilogue (global avg-pool -> FC -> ReLU -> FC -> sigmoid -> scale)
    pooled = jnp.mean(o2, axis=(0, 1), keepdims=True).reshape(1, C)   # (1, C)
    h = jnp.maximum(jnp.dot(pooled, sw1_ref[...],
                            preferred_element_type=jnp.float32) + sb1_ref[...],
                    0.0)                                              # (1, C//r)
    g = jax.nn.sigmoid(jnp.dot(h, sw2_ref[...],
                               preferred_element_type=jnp.float32) + sb2_ref[...])

    # gate + residual, then channels-minor -> NCHW for the (lane-dense) store
    y3 = o2 * g + x3                        # (H, W, C)
    o_ref[0] = y3.reshape(HW, C).T          # (C, H*W)


# ----------------------------------------------------------------------------
# Wrapper
# ----------------------------------------------------------------------------

def fold_bn(gamma, beta, mean, var, eps=1e-5):
    scale = gamma * jax.lax.rsqrt(var + eps)
    shift = beta - mean * scale
    return scale.reshape(1, -1), shift.reshape(1, -1)


@jax.jit
def layer_block_forward(x_nchw, params):
    B, C, H, W = x_nchw.shape
    HW = H * W
    Cr = params["se_w1"].shape[1]

    s1, t1 = fold_bn(*params["bn1"])                   # (1, C)
    s2, t2 = fold_bn(*params["bn2"])                   # (1, C)
    w1c = params["conv1_w"].reshape(9 * C, C)          # im2col weight layout
    w2c = params["conv2_w"].reshape(9 * C, C)

    x2 = x_nchw.reshape(B, C, HW)                      # metadata-only reshape

    kernel = functools.partial(layer_block_kernel, H=H, W=W, C=C)

    out = pl.pallas_call(
        kernel,
        out_shape=jax.ShapeDtypeStruct((B, C, HW), jnp.float32),
        grid_spec=pltpu.PrefetchScalarGridSpec(
            num_scalar_prefetch=0,
            grid=(B,),
            in_specs=[
                pl.BlockSpec((1, C, HW), lambda b: (b, 0, 0)),   # x
                pl.BlockSpec((1, C), lambda b: (0, 0)),          # bn1 scale
                pl.BlockSpec((1, C), lambda b: (0, 0)),          # bn1 shift
                pl.BlockSpec((9 * C, C), lambda b: (0, 0)),      # conv1 w (im2col)
                pl.BlockSpec((1, C), lambda b: (0, 0)),          # bn2 scale
                pl.BlockSpec((1, C), lambda b: (0, 0)),          # bn2 shift
                pl.BlockSpec((9 * C, C), lambda b: (0, 0)),      # conv2 w (im2col)
                pl.BlockSpec((C, Cr), lambda b: (0, 0)),         # se w1
                pl.BlockSpec((1, Cr), lambda b: (0, 0)),         # se b1
                pl.BlockSpec((Cr, C), lambda b: (0, 0)),         # se w2
                pl.BlockSpec((1, C), lambda b: (0, 0)),          # se b2
            ],
            out_specs=pl.BlockSpec((1, C, HW), lambda b: (b, 0, 0)),
            scratch_shapes=[
                pltpu.VMEM((H + 2, W + 2, C), jnp.float32),      # padded activation
                pltpu.VMEM((H, W, 9 * C), jnp.float32),          # im2col matrix
            ],
        ),
        compiler_params=pltpu.CompilerParams(
            dimension_semantics=("parallel",),                   # batch across TCs (v7x)
        ),
    )(x2, s1, t1, w1c, s2, t2, w2c,
      params["se_w1"], params["se_b1"], params["se_w2"], params["se_b2"])

    return out.reshape(B, C, H, W)                     # metadata-only reshape


# ----------------------------------------------------------------------------
# Deterministic parameter construction (shapes follow LayerBlock.__init__)
# ----------------------------------------------------------------------------

def make_params(key, in_dim, out_dim, reduction=16):
    assert in_dim == out_dim, "down=None path requires in_dim == out_dim"
    ks = jax.random.split(key, 12)
    red = out_dim // reduction
    params = {
        # bn1 / bn2: (gamma, beta, running_mean, running_var)
        "bn1": (jax.random.normal(ks[0], (in_dim,)) * 0.1 + 1.0,
                jax.random.normal(ks[1], (in_dim,)) * 0.1,
                jax.random.normal(ks[2], (in_dim,)) * 0.1,
                jnp.abs(jax.random.normal(ks[3], (in_dim,))) * 0.1 + 1.0),
        "bn2": (jax.random.normal(ks[4], (out_dim,)) * 0.1 + 1.0,
                jax.random.normal(ks[5], (out_dim,)) * 0.1,
                jax.random.normal(ks[6], (out_dim,)) * 0.1,
                jnp.abs(jax.random.normal(ks[7], (out_dim,))) * 0.1 + 1.0),
        # conv weights in HWIO (PyTorch OIHW, transposed), no bias
        "conv1_w": jax.random.normal(ks[8], (3, 3, in_dim, out_dim)) * 0.05,
        "conv2_w": jax.random.normal(ks[9], (3, 3, out_dim, out_dim)) * 0.05,
        # SE linear layers; stored as (in_features, out_features) = W^T of PyTorch
        "se_w1": jax.random.normal(ks[10], (out_dim, red)) * 0.1,
        "se_b1": jnp.zeros((1, red), jnp.float32),
        "se_w2": jax.random.normal(ks[11], (red, out_dim)) * 0.1,
        "se_b2": jnp.zeros((1, out_dim), jnp.float32),
    }
    return jax.tree_util.tree_map(lambda a: jnp.asarray(a, jnp.float32), params)


if __name__ == "__main__":
    key = jax.random.PRNGKey(0)
    k_x, k_p = jax.random.split(key)

    B, C, H, W = 2, 32, 16, 16      # in_dim = out_dim = 32, reduction 16 -> hidden 2
    x = jax.random.normal(k_x, (B, C, H, W), dtype=jnp.float32)
    params = make_params(k_p, C, C)

    y = layer_block_forward(x, params)
    jax.block_until_ready(y)
    assert y.shape == (B, C, H, W) and y.dtype == jnp.float32
    print("KERNEL_OK")
</pallas_src>

<mosaic_0001>
module attributes {stable_mosaic.version = 11 : i64} {
  func.func @layer_block_kernel(%arg0: i32, %arg1: memref<1x32x256xf32, #tpu.memory_space<vmem>>, %arg2: memref<1x32xf32, #tpu.memory_space<vmem>>, %arg3: memref<1x32xf32, #tpu.memory_space<vmem>>, %arg4: memref<288x32xf32, #tpu.memory_space<vmem>>, %arg5: memref<1x32xf32, #tpu.memory_space<vmem>>, %arg6: memref<1x32xf32, #tpu.memory_space<vmem>>, %arg7: memref<288x32xf32, #tpu.memory_space<vmem>>, %arg8: memref<32x2xf32, #tpu.memory_space<vmem>>, %arg9: memref<1x2xf32, #tpu.memory_space<vmem>>, %arg10: memref<2x32xf32, #tpu.memory_space<vmem>>, %arg11: memref<1x32xf32, #tpu.memory_space<vmem>>, %arg12: memref<1x32x256xf32, #tpu.memory_space<vmem>>, %arg13: memref<18x18x32xf32, #tpu.memory_space<vmem>>, %arg14: memref<16x16x288xf32, #tpu.memory_space<vmem>>) attributes {dimension_semantics = [#tpu.dimension_semantics<parallel>], iteration_bounds = array<i64: 2>, scalar_prefetch = 0 : i64, scratch_operands = 2 : i64, tpu.core_type = #tpu.core_type<tc>, window_params = [{transform_indices = @transform_0, window_bounds = array<i64: 1, 32, 256>}, {pipeline_mode = #tpu.pipeline_mode<synchronous>, transform_indices = @transform_1, window_bounds = array<i64: 1, 32>}, {pipeline_mode = #tpu.pipeline_mode<synchronous>, transform_indices = @transform_2, window_bounds = array<i64: 1, 32>}, {pipeline_mode = #tpu.pipeline_mode<synchronous>, transform_indices = @transform_3, window_bounds = array<i64: 288, 32>}, {pipeline_mode = #tpu.pipeline_mode<synchronous>, transform_indices = @transform_4, window_bounds = array<i64: 1, 32>}, {pipeline_mode = #tpu.pipeline_mode<synchronous>, transform_indices = @transform_5, window_bounds = array<i64: 1, 32>}, {pipeline_mode = #tpu.pipeline_mode<synchronous>, transform_indices = @transform_6, window_bounds = array<i64: 288, 32>}, {pipeline_mode = #tpu.pipeline_mode<synchronous>, transform_indices = @transform_7, window_bounds = array<i64: 32, 2>}, {pipeline_mode = #tpu.pipeline_mode<synchronous>, transform_indices = @transform_8, window_bounds = array<i64: 1, 2>}, {pipeline_mode = #tpu.pipeline_mode<synchronous>, transform_indices = @transform_9, window_bounds = array<i64: 2, 32>}, {pipeline_mode = #tpu.pipeline_mode<synchronous>, transform_indices = @transform_10, window_bounds = array<i64: 1, 32>}, {transform_indices = @transform_11, window_bounds = array<i64: 1, 32, 256>}]} {
    %c0 = arith.constant 0 : index
    %c0_0 = arith.constant 0 : index
    %c0_1 = arith.constant 0 : index
    %0 = vector.load %arg1[%c0, %c0_0, %c0_1] : memref<1x32x256xf32, #tpu.memory_space<vmem>>, vector<1x32x256xf32>
    %1 = vector.shape_cast %0 : vector<1x32x256xf32> to vector<32x256xf32>
    %2 = tpu.transpose %1, [1, 0] : vector<32x256xf32> -> vector<256x32xf32>
    %3 = vector.shape_cast %2 : vector<256x32xf32> to vector<16x16x32xf32>
    %cst = arith.constant 0.000000e+00 : f32
    %4 = vector.broadcast %cst : f32 to vector<18x18x32xf32>
    %c0_2 = arith.constant 0 : index
    %c0_3 = arith.constant 0 : index
    %c0_4 = arith.constant 0 : index
    %5 = vector.load %arg13[%c0_2, %c0_3, %c0_4] : memref<18x18x32xf32, #tpu.memory_space<vmem>>, vector<18x18x32xf32>
    tpu.vector_store %arg13[%c0_2, %c0_3, %c0_4], %4 {strides = array<i32>} : memref<18x18x32xf32, #tpu.memory_space<vmem>>, vector<18x18x32xf32>,
    %c0_5 = arith.constant 0 : index
    %c0_6 = arith.constant 0 : index
    %6 = vector.load %arg2[%c0_5, %c0_6] : memref<1x32xf32, #tpu.memory_space<vmem>>, vector<1x32xf32>
    %7 = vector.shape_cast %6 : vector<1x32xf32> to vector<1x1x32xf32>
    %8 = vector.broadcast %7 : vector<1x1x32xf32> to vector<16x16x32xf32>
    %9 = arith.mulf %3, %8 : vector<16x16x32xf32>
    %c0_7 = arith.constant 0 : index
    %c0_8 = arith.constant 0 : index
    %10 = vector.load %arg3[%c0_7, %c0_8] : memref<1x32xf32, #tpu.memory_space<vmem>>, vector<1x32xf32>
    %11 = vector.shape_cast %10 : vector<1x32xf32> to vector<1x1x32xf32>
    %12 = vector.broadcast %11 : vector<1x1x32xf32> to vector<16x16x32xf32>
    %13 = arith.addf %9, %12 : vector<16x16x32xf32>
    %cst_9 = arith.constant 0.000000e+00 : f32
    %14 = vector.broadcast %cst_9 : f32 to vector<16x16x32xf32>
    %15 = arith.maximumf %13, %14 : vector<16x16x32xf32>
    %c1 = arith.constant 1 : index
    %c1_10 = arith.constant 1 : index
    %c0_11 = arith.constant 0 : index
    %16 = vector.load %arg13[%c1, %c1_10, %c0_11] : memref<18x18x32xf32, #tpu.memory_space<vmem>>, vector<16x16x32xf32>
    tpu.vector_store %arg13[%c1, %c1_10, %c0_11], %15 {strides = array<i32>} : memref<18x18x32xf32, #tpu.memory_space<vmem>>, vector<16x16x32xf32>,
    %c0_12 = arith.constant 0 : index
    %c0_13 = arith.constant 0 : index
    %c0_14 = arith.constant 0 : index
    %17 = vector.load %arg13[%c0_12, %c0_13, %c0_14] : memref<18x18x32xf32, #tpu.memory_space<vmem>>, vector<16x16x32xf32>
    %c0_15 = arith.constant 0 : index
    %c0_16 = arith.constant 0 : index
    %c0_17 = arith.constant 0 : index
    %18 = vector.load %arg14[%c0_15, %c0_16, %c0_17] : memref<16x16x288xf32, #tpu.memory_space<vmem>>, vector<16x16x32xf32>
    tpu.vector_store %arg14[%c0_15, %c0_16, %c0_17], %17 {strides = array<i32>} : memref<16x16x288xf32, #tpu.memory_space<vmem>>, vector<16x16x32xf32>,
    %c0_18 = arith.constant 0 : index
    %c1_19 = arith.constant 1 : index
    %c0_20 = arith.constant 0 : index
    %19 = vector.load %arg13[%c0_18, %c1_19, %c0_20] : memref<18x18x32xf32, #tpu.memory_space<vmem>>, vector<16x16x32xf32>
    %c0_21 = arith.constant 0 : index
    %c0_22 = arith.constant 0 : index
    %c32 = arith.constant 32 : index
    %20 = vector.load %arg14[%c0_21, %c0_22, %c32] : memref<16x16x288xf32, #tpu.memory_space<vmem>>, vector<16x16x32xf32>
    tpu.vector_store %arg14[%c0_21, %c0_22, %c32], %19 {strides = array<i32>} : memref<16x16x288xf32, #tpu.memory_space<vmem>>, vector<16x16x32xf32>,
    %c0_23 = arith.constant 0 : index
    %c2 = arith.constant 2 : index
    %c0_24 = arith.constant 0 : index
    %21 = vector.load %arg13[%c0_23, %c2, %c0_24] : memref<18x18x32xf32, #tpu.memory_space<vmem>>, vector<16x16x32xf32>
    %c0_25 = arith.constant 0 : index
    %c0_26 = arith.constant 0 : index
    %c64 = arith.constant 64 : index
    %22 = vector.load %arg14[%c0_25, %c0_26, %c64] : memref<16x16x288xf32, #tpu.memory_space<vmem>>, vector<16x16x32xf32>
    tpu.vector_store %arg14[%c0_25, %c0_26, %c64], %21 {strides = array<i32>} : memref<16x16x288xf32, #tpu.memory_space<vmem>>, vector<16x16x32xf32>,
    %c1_27 = arith.constant 1 : index
    %c0_28 = arith.constant 0 : index
    %c0_29 = arith.constant 0 : index
    %23 = vector.load %arg13[%c1_27, %c0_28, %c0_29] : memref<18x18x32xf32, #tpu.memory_space<vmem>>, vector<16x16x32xf32>
    %c0_30 = arith.constant 0 : index
    %c0_31 = arith.constant 0 : index
    %c96 = arith.constant 96 : index
    %24 = vector.load %arg14[%c0_30, %c0_31, %c96] : memref<16x16x288xf32, #tpu.memory_space<vmem>>, vector<16x16x32xf32>
    tpu.vector_store %arg14[%c0_30, %c0_31, %c96], %23 {strides = array<i32>} : memref<16x16x288xf32, #tpu.memory_space<vmem>>, vector<16x16x32xf32>,
    %c1_32 = arith.constant 1 : index
    %c1_33 = arith.constant 1 : index
    %c0_34 = arith.constant 0 : index
    %25 = vector.load %arg13[%c1_32, %c1_33, %c0_34] : memref<18x18x32xf32, #tpu.memory_space<vmem>>, vector<16x16x32xf32>
    %c0_35 = arith.constant 0 : index
    %c0_36 = arith.constant 0 : index
    %c128 = arith.constant 128 : index
    %26 = vector.load %arg14[%c0_35, %c0_36, %c128] : memref<16x16x288xf32, #tpu.memory_space<vmem>>, vector<16x16x32xf32>
    tpu.vector_store %arg14[%c0_35, %c0_36, %c128], %25 {strides = array<i32>} : memref<16x16x288xf32, #tpu.memory_space<vmem>>, vector<16x16x32xf32>,
    %c1_37 = arith.constant 1 : index
    %c2_38 = arith.constant 2 : index
    %c0_39 = arith.constant 0 : index
    %27 = vector.load %arg13[%c1_37, %c2_38, %c0_39] : memref<18x18x32xf32, #tpu.memory_space<vmem>>, vector<16x16x32xf32>
    %c0_40 = arith.constant 0 : index
    %c0_41 = arith.constant 0 : index
    %c160 = arith.constant 160 : index
    %28 = vector.load %arg14[%c0_40, %c0_41, %c160] : memref<16x16x288xf32, #tpu.memory_space<vmem>>, vector<16x16x32xf32>
    tpu.vector_store %arg14[%c0_40, %c0_41, %c160], %27 {strides = array<i32>} : memref<16x16x288xf32, #tpu.memory_space<vmem>>, vector<16x16x32xf32>,
    %c2_42 = arith.constant 2 : index
    %c0_43 = arith.constant 0 : index
    %c0_44 = arith.constant 0 : index
    %29 = vector.load %arg13[%c2_42, %c0_43, %c0_44] : memref<18x18x32xf32, #tpu.memory_space<vmem>>, vector<16x16x32xf32>
    %c0_45 = arith.constant 0 : index
    %c0_46 = arith.constant 0 : index
    %c192 = arith.constant 192 : index
    %30 = vector.load %arg14[%c0_45, %c0_46, %c192] : memref<16x16x288xf32, #tpu.memory_space<vmem>>, vector<16x16x32xf32>
    tpu.vector_store %arg14[%c0_45, %c0_46, %c192], %29 {strides = array<i32>} : memref<16x16x288xf32, #tpu.memory_space<vmem>>, vector<16x16x32xf32>,
    %c2_47 = arith.constant 2 : index
    %c1_48 = arith.constant 1 : index
    %c0_49 = arith.constant 0 : index
    %31 = vector.load %arg13[%c2_47, %c1_48, %c0_49] : memref<18x18x32xf32, #tpu.memory_space<vmem>>, vector<16x16x32xf32>
    %c0_50 = arith.constant 0 : index
    %c0_51 = arith.constant 0 : index
    %c224 = arith.constant 224 : index
    %32 = vector.load %arg14[%c0_50, %c0_51, %c224] : memref<16x16x288xf32, #tpu.memory_space<vmem>>, vector<16x16x32xf32>
    tpu.vector_store %arg14[%c0_50, %c0_51, %c224], %31 {strides = array<i32>} : memref<16x16x288xf32, #tpu.memory_space<vmem>>, vector<16x16x32xf32>,
    %c2_52 = arith.constant 2 : index
    %c2_53 = arith.constant 2 : index
    %c0_54 = arith.constant 0 : index
    %33 = vector.load %arg13[%c2_52, %c2_53, %c0_54] : memref<18x18x32xf32, #tpu.memory_space<vmem>>, vector<16x16x32xf32>
    %c0_55 = arith.constant 0 : index
    %c0_56 = arith.constant 0 : index
    %c256 = arith.constant 256 : index
    %34 = vector.load %arg14[%c0_55, %c0_56, %c256] : memref<16x16x288xf32, #tpu.memory_space<vmem>>, vector<16x16x32xf32>
    tpu.vector_store %arg14[%c0_55, %c0_56, %c256], %33 {strides = array<i32>} : memref<16x16x288xf32, #tpu.memory_space<vmem>>, vector<16x16x32xf32>,
    %c0_57 = arith.constant 0 : index
    %c0_58 = arith.constant 0 : index
    %c0_59 = arith.constant 0 : index
    %35 = vector.load %arg14[%c0_57, %c0_58, %c0_59] : memref<16x16x288xf32, #tpu.memory_space<vmem>>, vector<16x16x288xf32>
    %c0_60 = arith.constant 0 : index
    %c0_61 = arith.constant 0 : index
    %36 = vector.load %arg4[%c0_60, %c0_61] : memref<288x32xf32, #tpu.memory_space<vmem>>, vector<288x32xf32>
    "tpu.trace_start"() <{level = 10 : i32, message = "hwk,kc->hwc"}> : () -> ()
    %cst_62 = arith.constant dense<0.000000e+00> : vector<16x16x32xf32>
    %37 = tpu.matmul %35, %36, %cst_62 {dimension_numbers = #tpu.dot_dimension_numbers<[2], [0], [0, 1], [1], [0, 0, 0, 1, 1, 1], [], []>} : vector<16x16x288xf32>, vector<288x32xf32>, vector<16x16x32xf32> -> vector<16x16x32xf32>
    "tpu.trace_stop"() : () -> ()
    %c0_63 = arith.constant 0 : index
    %c0_64 = arith.constant 0 : index
    %38 = vector.load %arg5[%c0_63, %c0_64] : memref<1x32xf32, #tpu.memory_space<vmem>>, vector<1x32xf32>
    %39 = vector.shape_cast %38 : vector<1x32xf32> to vector<1x1x32xf32>
    %40 = vector.broadcast %39 : vector<1x1x32xf32> to vector<16x16x32xf32>
    %41 = arith.mulf %37, %40 : vector<16x16x32xf32>
    %c0_65 = arith.constant 0 : index
    %c0_66 = arith.constant 0 : index
    %42 = vector.load %arg6[%c0_65, %c0_66] : memref<1x32xf32, #tpu.memory_space<vmem>>, vector<1x32xf32>
    %43 = vector.shape_cast %42 : vector<1x32xf32> to vector<1x1x32xf32>
    %44 = vector.broadcast %43 : vector<1x1x32xf32> to vector<16x16x32xf32>
    %45 = arith.addf %41, %44 : vector<16x16x32xf32>
    %cst_67 = arith.constant 0.000000e+00 : f32
    %46 = vector.broadcast %cst_67 : f32 to vector<16x16x32xf32>
    %47 = arith.maximumf %45, %46 : vector<16x16x32xf32>
    %c1_68 = arith.constant 1 : index
    %c1_69 = arith.constant 1 : index
    %c0_70 = arith.constant 0 : index
    %48 = vector.load %arg13[%c1_68, %c1_69, %c0_70] : memref<18x18x32xf32, #tpu.memory_space<vmem>>, vector<16x16x32xf32>
    tpu.vector_store %arg13[%c1_68, %c1_69, %c0_70], %47 {strides = array<i32>} : memref<18x18x32xf32, #tpu.memory_space<vmem>>, vector<16x16x32xf32>,
    %c0_71 = arith.constant 0 : index
    %c0_72 = arith.constant 0 : index
    %c0_73 = arith.constant 0 : index
    %49 = vector.load %arg13[%c0_71, %c0_72, %c0_73] : memref<18x18x32xf32, #tpu.memory_space<vmem>>, vector<16x16x32xf32>
    %c0_74 = arith.constant 0 : index
    %c0_75 = arith.constant 0 : index
    %c0_76 = arith.constant 0 : index
    %50 = vector.load %arg14[%c0_74, %c0_75, %c0_76] : memref<16x16x288xf32, #tpu.memory_space<vmem>>, vector<16x16x32xf32>
    tpu.vector_store %arg14[%c0_74, %c0_75, %c0_76], %49 {strides = array<i32>} : memref<16x16x288xf32, #tpu.memory_space<vmem>>, vector<16x16x32xf32>,
    %c0_77 = arith.constant 0 : index
    %c1_78 = arith.constant 1 : index
    %c0_79 = arith.constant 0 : index
    %51 = vector.load %arg13[%c0_77, %c1_78, %c0_79] : memref<18x18x32xf32, #tpu.memory_space<vmem>>, vector<16x16x32xf32>
    %c0_80 = arith.constant 0 : index
    %c0_81 = arith.constant 0 : index
    %c32_82 = arith.constant 32 : index
    %52 = vector.load %arg14[%c0_80, %c0_81, %c32_82] : memref<16x16x288xf32, #tpu.memory_space<vmem>>, vector<16x16x32xf32>
    tpu.vector_store %arg14[%c0_80, %c0_81, %c32_82], %51 {strides = array<i32>} : memref<16x16x288xf32, #tpu.memory_space<vmem>>, vector<16x16x32xf32>,
    %c0_83 = arith.constant 0 : index
    %c2_84 = arith.constant 2 : index
    %c0_85 = arith.constant 0 : index
    %53 = vector.load %arg13[%c0_83, %c2_84, %c0_85] : memref<18x18x32xf32, #tpu.memory_space<vmem>>, vector<16x16x32xf32>
    %c0_86 = arith.constant 0 : index
    %c0_87 = arith.constant 0 : index
    %c64_88 = arith.constant 64 : index
    %54 = vector.load %arg14[%c0_86, %c0_87, %c64_88] : memref<16x16x288xf32, #tpu.memory_space<vmem>>, vector<16x16x32xf32>
    tpu.vector_store %arg14[%c0_86, %c0_87, %c64_88], %53 {strides = array<i32>} : memref<16x16x288xf32, #tpu.memory_space<vmem>>, vector<16x16x32xf32>,
    %c1_89 = arith.constant 1 : index
    %c0_90 = arith.constant 0 : index
    %c0_91 = arith.constant 0 : index
    %55 = vector.load %arg13[%c1_89, %c0_90, %c0_91] : memref<18x18x32xf32, #tpu.memory_space<vmem>>, vector<16x16x32xf32>
    %c0_92 = arith.constant 0 : index
    %c0_93 = arith.constant 0 : index
    %c96_94 = arith.constant 96 : index
    %56 = vector.load %arg14[%c0_92, %c0_93, %c96_94] : memref<16x16x288xf32, #tpu.memory_space<vmem>>, vector<16x16x32xf32>
    tpu.vector_store %arg14[%c0_92, %c0_93, %c96_94], %55 {strides = array<i32>} : memref<16x16x288xf32, #tpu.memory_space<vmem>>, vector<16x16x32xf32>,
    %c1_95 = arith.constant 1 : index
    %c1_96 = arith.constant 1 : index
    %c0_97 = arith.constant 0 : index
    %57 = vector.load %arg13[%c1_95, %c1_96, %c0_97] : memref<18x18x32xf32, #tpu.memory_space<vmem>>, vector<16x16x32xf32>
    %c0_98 = arith.constant 0 : index
    %c0_99 = arith.constant 0 : index
    %c128_100 = arith.constant 128 : index
    %58 = vector.load %arg14[%c0_98, %c0_99, %c128_100] : memref<16x16x288xf32, #tpu.memory_space<vmem>>, vector<16x16x32xf32>
    tpu.vector_store %arg14[%c0_98, %c0_99, %c128_100], %57 {strides = array<i32>} : memref<16x16x288xf32, #tpu.memory_space<vmem>>, vector<16x16x32xf32>,
    %c1_101 = arith.constant 1 : index
    %c2_102 = arith.constant 2 : index
    %c0_103 = arith.constant 0 : index
    %59 = vector.load %arg13[%c1_101, %c2_102, %c0_103] : memref<18x18x32xf32, #tpu.memory_space<vmem>>, vector<16x16x32xf32>
    %c0_104 = arith.constant 0 : index
    %c0_105 = arith.constant 0 : index
    %c160_106 = arith.constant 160 : index
    %60 = vector.load %arg14[%c0_104, %c0_105, %c160_106] : memref<16x16x288xf32, #tpu.memory_space<vmem>>, vector<16x16x32xf32>
    tpu.vector_store %arg14[%c0_104, %c0_105, %c160_106], %59 {strides = array<i32>} : memref<16x16x288xf32, #tpu.memory_space<vmem>>, vector<16x16x32xf32>,
    %c2_107 = arith.constant 2 : index
    %c0_108 = arith.constant 0 : index
    %c0_109 = arith.constant 0 : index
    %61 = vector.load %arg13[%c2_107, %c0_108, %c0_109] : memref<18x18x32xf32, #tpu.memory_space<vmem>>, vector<16x16x32xf32>
    %c0_110 = arith.constant 0 : index
    %c0_111 = arith.constant 0 : index
    %c192_112 = arith.constant 192 : index
    %62 = vector.load %arg14[%c0_110, %c0_111, %c192_112] : memref<16x16x288xf32, #tpu.memory_space<vmem>>, vector<16x16x32xf32>
    tpu.vector_store %arg14[%c0_110, %c0_111, %c192_112], %61 {strides = array<i32>} : memref<16x16x288xf32, #tpu.memory_space<vmem>>, vector<16x16x32xf32>,
    %c2_113 = arith.constant 2 : index
    %c1_114 = arith.constant 1 : index
    %c0_115 = arith.constant 0 : index
    %63 = vector.load %arg13[%c2_113, %c1_114, %c0_115] : memref<18x18x32xf32, #tpu.memory_space<vmem>>, vector<16x16x32xf32>
    %c0_116 = arith.constant 0 : index
    %c0_117 = arith.constant 0 : index
    %c224_118 = arith.constant 224 : index
    %64 = vector.load %arg14[%c0_116, %c0_117, %c224_118] : memref<16x16x288xf32, #tpu.memory_space<vmem>>, vector<16x16x32xf32>
    tpu.vector_store %arg14[%c0_116, %c0_117, %c224_118], %63 {strides = array<i32>} : memref<16x16x288xf32, #tpu.memory_space<vmem>>, vector<16x16x32xf32>,
    %c2_119 = arith.constant 2 : index
    %c2_120 = arith.constant 2 : index
    %c0_121 = arith.constant 0 : index
    %65 = vector.load %arg13[%c2_119, %c2_120, %c0_121] : memref<18x18x32xf32, #tpu.memory_space<vmem>>, vector<16x16x32xf32>
    %c0_122 = arith.constant 0 : index
    %c0_123 = arith.constant 0 : index
    %c256_124 = arith.constant 256 : index
    %66 = vector.load %arg14[%c0_122, %c0_123, %c256_124] : memref<16x16x288xf32, #tpu.memory_space<vmem>>, vector<16x16x32xf32>
    tpu.vector_store %arg14[%c0_122, %c0_123, %c256_124], %65 {strides = array<i32>} : memref<16x16x288xf32, #tpu.memory_space<vmem>>, vector<16x16x32xf32>,
    %c0_125 = arith.constant 0 : index
    %c0_126 = arith.constant 0 : index
    %c0_127 = arith.constant 0 : index
    %67 = vector.load %arg14[%c0_125, %c0_126, %c0_127] : memref<16x16x288xf32, #tpu.memory_space<vmem>>, vector<16x16x288xf32>
    %c0_128 = arith.constant 0 : index
    %c0_129 = arith.constant 0 : index
    %68 = vector.load %arg7[%c0_128, %c0_129] : memref<288x32xf32, #tpu.memory_space<vmem>>, vector<288x32xf32>
    "tpu.trace_start"() <{level = 10 : i32, message = "hwk,kc->hwc"}> : () -> ()
    %cst_130 = arith.constant dense<0.000000e+00> : vector<16x16x32xf32>
    %69 = tpu.matmul %67, %68, %cst_130 {dimension_numbers = #tpu.dot_dimension_numbers<[2], [0], [0, 1], [1], [0, 0, 0, 1, 1, 1], [], []>} : vector<16x16x288xf32>, vector<288x32xf32>, vector<16x16x32xf32> -> vector<16x16x32xf32>
    "tpu.trace_stop"() : () -> ()
    %cst_131 = arith.constant dense<0.000000e+00> : vector<32xf32>
    %70 = vector.multi_reduction <add>, %69, %cst_131 [0, 1] : vector<16x16x32xf32> to vector<32xf32>
    %71 = vector.shape_cast %70 : vector<32xf32> to vector<1x1x32xf32>
    %cst_132 = arith.constant 2.560000e+02 : f32
    %72 = vector.broadcast %cst_132 : f32 to vector<1x1x32xf32>
    %73 = arith.divf %71, %72 : vector<1x1x32xf32>
    %74 = vector.shape_cast %73 : vector<1x1x32xf32> to vector<1x32xf32>
    %c0_133 = arith.constant 0 : index
    %c0_134 = arith.constant 0 : index
    %75 = vector.load %arg8[%c0_133, %c0_134] : memref<32x2xf32, #tpu.memory_space<vmem>>, vector<32x2xf32>
    %cst_135 = arith.constant dense<0.000000e+00> : vector<1x2xf32>
    %76 = tpu.matmul %74, %75, %cst_135 {dimension_numbers = #tpu.dot_dimension_numbers<[1], [0], [0], [1], [0, 0, 1, 1], [], []>} : vector<1x32xf32>, vector<32x2xf32>, vector<1x2xf32> -> vector<1x2xf32>
    %c0_136 = arith.constant 0 : index
    %c0_137 = arith.constant 0 : index
    %77 = vector.load %arg9[%c0_136, %c0_137] : memref<1x2xf32, #tpu.memory_space<vmem>>, vector<1x2xf32>
    %78 = arith.addf %76, %77 : vector<1x2xf32>
    %cst_138 = arith.constant 0.000000e+00 : f32
    %79 = vector.broadcast %cst_138 : f32 to vector<1x2xf32>
    %80 = arith.maximumf %78, %79 : vector<1x2xf32>
    %c0_139 = arith.constant 0 : index
    %c0_140 = arith.constant 0 : index
    %81 = vector.load %arg10[%c0_139, %c0_140] : memref<2x32xf32, #tpu.memory_space<vmem>>, vector<2x32xf32>
    %cst_141 = arith.constant dense<0.000000e+00> : vector<1x32xf32>
    %82 = tpu.matmul %80, %81, %cst_141 {dimension_numbers = #tpu.dot_dimension_numbers<[1], [0], [0], [1], [0, 0, 1, 1], [], []>} : vector<1x2xf32>, vector<2x32xf32>, vector<1x32xf32> -> vector<1x32xf32>
    %c0_142 = arith.constant 0 : index
    %c0_143 = arith.constant 0 : index
    %83 = vector.load %arg11[%c0_142, %c0_143] : memref<1x32xf32, #tpu.memory_space<vmem>>, vector<1x32xf32>
    %84 = arith.addf %82, %83 : vector<1x32xf32>
    %85 = arith.negf %84 : vector<1x32xf32>
    %86 = math.exp %85 : vector<1x32xf32>
    %cst_144 = arith.constant 1.000000e+00 : f32
    %87 = vector.broadcast %cst_144 : f32 to vector<1x32xf32>
    %88 = arith.addf %87, %86 : vector<1x32xf32>
    %89 = arith.divf %87, %88 : vector<1x32xf32>
    %90 = vector.shape_cast %89 : vector<1x32xf32> to vector<1x1x32xf32>
    %91 = vector.broadcast %90 : vector<1x1x32xf32> to vector<16x16x32xf32>
    %92 = arith.mulf %69, %91 : vector<16x16x32xf32>
    %93 = arith.addf %92, %3 : vector<16x16x32xf32>
    %94 = vector.shape_cast %93 : vector<16x16x32xf32> to vector<256x32xf32>
    %95 = tpu.transpose %94, [1, 0] : vector<256x32xf32> -> vector<32x256xf32>
    %c0_145 = arith.constant 0 : index
    %c0_146 = arith.constant 0 : index
    %c0_147 = arith.constant 0 : index
    %96 = vector.load %arg12[%c0_145, %c0_146, %c0_147] : memref<1x32x256xf32, #tpu.memory_space<vmem>>, vector<1x32x256xf32>
    %97 = vector.shape_cast %96 : vector<1x32x256xf32> to vector<32x256xf32>
    %98 = vector.shape_cast %95 : vector<32x256xf32> to vector<1x32x256xf32>
    tpu.vector_store %arg12[%c0_145, %c0_146, %c0_147], %98 {strides = array<i32>} : memref<1x32x256xf32, #tpu.memory_space<vmem>>, vector<1x32x256xf32>,
    return
  }
  func.func @transform_0(%arg0: i32) -> (i32, i32, i32) {
    %c0_i32 = arith.constant 0 : i32
    %c0_i32_0 = arith.constant 0 : i32
    %c0_i32_1 = arith.constant 0 : i32
    return %arg0, %c0_i32, %c0_i32_0 : i32, i32, i32
  }
  func.func @transform_1(%arg0: i32) -> (i32, i32) {
    %c0_i32 = arith.constant 0 : i32
    %c0_i32_0 = arith.constant 0 : i32
    %c0_i32_1 = arith.constant 0 : i32
    return %c0_i32, %c0_i32_0 : i32, i32
  }
  func.func @transform_2(%arg0: i32) -> (i32, i32) {
    %c0_i32 = arith.constant 0 : i32
    %c0_i32_0 = arith.constant 0 : i32
    %c0_i32_1 = arith.constant 0 : i32
    return %c0_i32, %c0_i32_0 : i32, i32
  }
  func.func @transform_3(%arg0: i32) -> (i32, i32) {
    %c0_i32 = arith.constant 0 : i32
    %c0_i32_0 = arith.constant 0 : i32
    %c0_i32_1 = arith.constant 0 : i32
    return %c0_i32, %c0_i32_0 : i32, i32
  }
  func.func @transform_4(%arg0: i32) -> (i32, i32) {
    %c0_i32 = arith.constant 0 : i32
    %c0_i32_0 = arith.constant 0 : i32
    %c0_i32_1 = arith.constant 0 : i32
    return %c0_i32, %c0_i32_0 : i32, i32
  }
  func.func @transform_5(%arg0: i32) -> (i32, i32) {
    %c0_i32 = arith.constant 0 : i32
    %c0_i32_0 = arith.constant 0 : i32
    %c0_i32_1 = arith.constant 0 : i32
    return %c0_i32, %c0_i32_0 : i32, i32
  }
  func.func @transform_6(%arg0: i32) -> (i32, i32) {
    %c0_i32 = arith.constant 0 : i32
    %c0_i32_0 = arith.constant 0 : i32
    %c0_i32_1 = arith.constant 0 : i32
    return %c0_i32, %c0_i32_0 : i32, i32
  }
  func.func @transform_7(%arg0: i32) -> (i32, i32) {
    %c0_i32 = arith.constant 0 : i32
    %c0_i32_0 = arith.constant 0 : i32
    %c0_i32_1 = arith.constant 0 : i32
    return %c0_i32, %c0_i32_0 : i32, i32
  }
  func.func @transform_8(%arg0: i32) -> (i32, i32) {
    %c0_i32 = arith.constant 0 : i32
    %c0_i32_0 = arith.constant 0 : i32
    %c0_i32_1 = arith.constant 0 : i32
    return %c0_i32, %c0_i32_0 : i32, i32
  }
  func.func @transform_9(%arg0: i32) -> (i32, i32) {
    %c0_i32 = arith.constant 0 : i32
    %c0_i32_0 = arith.constant 0 : i32
    %c0_i32_1 = arith.constant 0 : i32
    return %c0_i32, %c0_i32_0 : i32, i32
  }
  func.func @transform_10(%arg0: i32) -> (i32, i32) {
    %c0_i32 = arith.constant 0 : i32
    %c0_i32_0 = arith.constant 0 : i32
    %c0_i32_1 = arith.constant 0 : i32
    return %c0_i32, %c0_i32_0 : i32, i32
  }
  func.func @transform_11(%arg0: i32) -> (i32, i32, i32) {
    %c0_i32 = arith.constant 0 : i32
    %c0_i32_0 = arith.constant 0 : i32
    %c0_i32_1 = arith.constant 0 : i32
    return %arg0, %c0_i32, %c0_i32_0 : i32, i32, i32
  }
}

</mosaic_0001>

<llo_original>
// kernel: layer_block_forward.1
$region0: #{layer_block_forward.1}
  #allocation0 [shape = 'u32[]', space=smem, size = 0x4, offset = 0x4, fixed_abs, tag = 'smem constant byte address 0x4 - core index']
  #allocation1 [shape = 'u32[144,128]{1,0:T(1,128)}', space=vmem, size = 0x12000, scoped, tag = 'internal scratch']
  #allocation2 [shape = 'f32[18,18,32]{2,1,0:T(8,128)}', space=vmem, size = 0x36000, scoped, tag = 'scratch operand']
  #allocation3 [shape = 'f32[16,16,288]{2,1,0:T(8,128)}', space=vmem, size = 0x60000, scoped, tag = 'scratch operand']
  %s0 = inlined_call_operand.vmem [shape: f32[2,32,256], index: 0, kind: input, shape index: {}]
  %s1 = inlined_call_operand.vmem [shape: f32[1,32], index: 1, kind: input, shape index: {}]
  %s2 = inlined_call_operand.vmem [shape: f32[1,32], index: 2, kind: input, shape index: {}]
  %s3 = inlined_call_operand.vmem [shape: f32[288,32], index: 3, kind: input, shape index: {}]
  %s4 = inlined_call_operand.vmem [shape: f32[1,32], index: 4, kind: input, shape index: {}]
  %s5 = inlined_call_operand.vmem [shape: f32[1,32], index: 5, kind: input, shape index: {}]
  %s6 = inlined_call_operand.vmem [shape: f32[288,32], index: 6, kind: input, shape index: {}]
  %s7 = inlined_call_operand.vmem [shape: f32[32,2], index: 7, kind: input, shape index: {}]
  %s8 = inlined_call_operand.vmem [shape: f32[1,2], index: 8, kind: input, shape index: {}]
  %s9 = inlined_call_operand.vmem [shape: f32[2,32], index: 9, kind: input, shape index: {}]
  %s10 = inlined_call_operand.vmem [shape: f32[1,32], index: 10, kind: input, shape index: {}]
  %s11 = inlined_call_operand.vmem [shape: f32[2,32,256], index: 11, kind: output, shape index: {}]
  %s12 = sld [smem:[#allocation0]]
  $region77: #{layer_block_forward.1} parent=0
    _
  %s14 = ssub.s32 1, %s12
  %s15 = scalar_select 0, %s14, %s12
  loop: start=0, step=1, limit=4
  $region2: #{layer_block_forward.1} parent=0 // loop_pre_header
    _
  $region3: #{layer_block_forward.1} parent=0 // loop_header
    %s17 = sphi 0, %s21
    %p18 = scmp.ge.s32.totalorder %s17, 4
    %s27 = sphi 0, %s29
    %s30 = sphi 0, %s27
    %s31 = sphi 0, %s30
    %s47 = sphi 0, %s31
    %s51 = sphi 0, %s51
    %s53 = sphi 0, %s51
    %s54 = sphi 0, %s53
    %s68 = sphi 0, %s54
    %s72 = sphi 0, %s72
    %s74 = sphi 0, %s72
    %s75 = sphi 0, %s74
    %s89 = sphi 0, %s75
    %s93 = sphi 0, %s93
    %s95 = sphi 0, %s93
    %s96 = sphi 0, %s95
    %s110 = sphi 0, %s96
    %s114 = sphi 0, %s114
    %s116 = sphi 0, %s114
    %s117 = sphi 0, %s116
    %s131 = sphi 0, %s117
    %s135 = sphi 0, %s135
    %s137 = sphi 0, %s135
    %s138 = sphi 0, %s137
    %s152 = sphi 0, %s138
    %s156 = sphi 0, %s156
    %s158 = sphi 0, %s156
    %s159 = sphi 0, %s158
    %s173 = sphi 0, %s159
    %s177 = sphi 0, %s177
    %s179 = sphi 0, %s177
    %s180 = sphi 0, %s179
    %s194 = sphi 0, %s180
    %s198 = sphi 0, %s198
    %s200 = sphi 0, %s198
    %s201 = sphi 0, %s200
    %s215 = sphi 0, %s201
    %s219 = sphi 0, %s219
    %s221 = sphi 0, %s219
    %s222 = sphi 0, %s221
    %s236 = sphi 0, %s222
    %s240 = sphi 0, %s240
    %s242 = sphi 0, %s240
    %s243 = sphi 0, %s242
    %s257 = sphi 0, %s243
    %s263 = sphi 0, %s265
    %s266 = sphi 0, %s263
    %s267 = sphi 0, %s266
    %s283 = sphi 0, %s267
  $region4: #{layer_block_forward.1} parent=0 // loop_header_branch
    %20 = sbr.rel (%p18) target = $region8
  $region5: #{layer_block_forward.1} parent=0 // loop_body
    %s22 = ssub.s32 %s17, 1
    %s23 = ssub.s32 %s17, 2
    %s24 = sadd.s32 %s17, 1
    %s25 = ssub.s32 %s17, %s24
    %p26 = scmp.eq.s32.totalorder %s25, 0
    %s28 = sadd.s32 %s27, 1
    %s29 = scalar_select %p26, %s27, %s28
    %p32 = pneg %p26
    %p33 = scmp.eq.s32.totalorder %s17, 1
    %p34 = por %p32, %p33
    %p35 = scmp.ne.s32.totalorder %s27, %s30
    %p36 = scmp.eq.s32.totalorder %s17, 0
    %p37 = por %p35, %p36
    %p38 = scmp.ne.s32.totalorder %s27, %s30
    %p39 = scmp.eq.s32.totalorder %s22, 1
    %p40 = por %p38, %p39
    %p41 = scmp.ne.s32.totalorder %s30, %s31
    %p42 = scmp.eq.s32.totalorder %s22, 0
    %p43 = por %p41, %p42
    %p44 = scmp.ne.s32.totalorder %s30, %s31
    %p45 = scmp.eq.s32.totalorder %s23, 1
    %p46 = por %p44, %p45
    %p48 = scmp.ne.s32.totalorder %s31, %s47
    %p49 = scmp.eq.s32.totalorder %s23, 0
    %p50 = por %p48, %p49
    %s52 = sadd.s32 %s51, 1
    %p55 = scmp.eq.s32.totalorder %s17, 1
    %p56 = scmp.ne.s32.totalorder %s51, %s53
    %p57 = scmp.eq.s32.totalorder %s17, 0
    %p58 = por %p56, %p57
    %p59 = scmp.ne.s32.totalorder %s51, %s53
    %p60 = scmp.eq.s32.totalorder %s22, 1
    %p61 = por %p59, %p60
    %p62 = scmp.ne.s32.totalorder %s53, %s54
    %p63 = scmp.eq.s32.totalorder %s22, 0
    %p64 = por %p62, %p63
    %p65 = scmp.ne.s32.totalorder %s53, %s54
    %p66 = scmp.eq.s32.totalorder %s23, 1
    %p67 = por %p65, %p66
    %p69 = scmp.ne.s32.totalorder %s54, %s68
    %p70 = scmp.eq.s32.totalorder %s23, 0
    %p71 = por %p69, %p70
    %s73 = sadd.s32 %s72, 1
    %p76 = scmp.eq.s32.totalorder %s17, 1
    %p77 = scmp.ne.s32.totalorder %s72, %s74
    %p78 = scmp.eq.s32.totalorder %s17, 0
    %p79 = por %p77, %p78
    %p80 = scmp.ne.s32.totalorder %s72, %s74
    %p81 = scmp.eq.s32.totalorder %s22, 1
    %p82 = por %p80, %p81
    %p83 = scmp.ne.s32.totalorder %s74, %s75
    %p84 = scmp.eq.s32.totalorder %s22, 0
    %p85 = por %p83, %p84
    %p86 = scmp.ne.s32.totalorder %s74, %s75
    %p87 = scmp.eq.s32.totalorder %s23, 1
    %p88 = por %p86, %p87
    %p90 = scmp.ne.s32.totalorder %s75, %s89
    %p91 = scmp.eq.s32.totalorder %s23, 0
    %p92 = por %p90, %p91
    %s94 = sadd.s32 %s93, 1
    %p97 = scmp.eq.s32.totalorder %s17, 1
    %p98 = scmp.ne.s32.totalorder %s93, %s95
    %p99 = scmp.eq.s32.totalorder %s17, 0
    %p100 = por %p98, %p99
    %p101 = scmp.ne.s32.totalorder %s93, %s95
    %p102 = scmp.eq.s32.totalorder %s22, 1
    %p103 = por %p101, %p102
    %p104 = scmp.ne.s32.totalorder %s95, %s96
    %p105 = scmp.eq.s32.totalorder %s22, 0
    %p106 = por %p104, %p105
    %p107 = scmp.ne.s32.totalorder %s95, %s96
    %p108 = scmp.eq.s32.totalorder %s23, 1
    %p109 = por %p107, %p108
    %p111 = scmp.ne.s32.totalorder %s96, %s110
    %p112 = scmp.eq.s32.totalorder %s23, 0
    %p113 = por %p111, %p112
    %s115 = sadd.s32 %s114, 1
    %p118 = scmp.eq.s32.totalorder %s17, 1
    %p119 = scmp.ne.s32.totalorder %s114, %s116
    %p120 = scmp.eq.s32.totalorder %s17, 0
    %p121 = por %p119, %p120
    %p122 = scmp.ne.s32.totalorder %s114, %s116
    %p123 = scmp.eq.s32.totalorder %s22, 1
    %p124 = por %p122, %p123
    %p125 = scmp.ne.s32.totalorder %s116, %s117
    %p126 = scmp.eq.s32.totalorder %s22, 0
    %p127 = por %p125, %p126
    %p128 = scmp.ne.s32.totalorder %s116, %s117
    %p129 = scmp.eq.s32.totalorder %s23, 1
    %p130 = por %p128, %p129
    %p132 = scmp.ne.s32.totalorder %s117, %s131
    %p133 = scmp.eq.s32.totalorder %s23, 0
    %p134 = por %p132, %p133
    %s136 = sadd.s32 %s135, 1
    %p139 = scmp.eq.s32.totalorder %s17, 1
    %p140 = scmp.ne.s32.totalorder %s135, %s137
    %p141 = scmp.eq.s32.totalorder %s17, 0
    %p142 = por %p140, %p141
    %p143 = scmp.ne.s32.totalorder %s135, %s137
    %p144 = scmp.eq.s32.totalorder %s22, 1
    %p145 = por %p143, %p144
    %p146 = scmp.ne.s32.totalorder %s137, %s138
    %p147 = scmp.eq.s32.totalorder %s22, 0
    %p148 = por %p146, %p147
    %p149 = scmp.ne.s32.totalorder %s137, %s138
    %p150 = scmp.eq.s32.totalorder %s23, 1
    %p151 = por %p149, %p150
    %p153 = scmp.ne.s32.totalorder %s138, %s152
    %p154 = scmp.eq.s32.totalorder %s23, 0
    %p155 = por %p153, %p154
    %s157 = sadd.s32 %s156, 1
    %p160 = scmp.eq.s32.totalorder %s17, 1
    %p161 = scmp.ne.s32.totalorder %s156, %s158
    %p162 = scmp.eq.s32.totalorder %s17, 0
    %p163 = por %p161, %p162
    %p164 = scmp.ne.s32.totalorder %s156, %s158
    %p165 = scmp.eq.s32.totalorder %s22, 1
    %p166 = por %p164, %p165
    %p167 = scmp.ne.s32.totalorder %s158, %s159
    %p168 = scmp.eq.s32.totalorder %s22, 0
    %p169 = por %p167, %p168
    %p170 = scmp.ne.s32.totalorder %s158, %s159
    %p171 = scmp.eq.s32.totalorder %s23, 1
    %p172 = por %p170, %p171
    %p174 = scmp.ne.s32.totalorder %s159, %s173
    %p175 = scmp.eq.s32.totalorder %s23, 0
    %p176 = por %p174, %p175
    %s178 = sadd.s32 %s177, 1
    %p181 = scmp.eq.s32.totalorder %s17, 1
    %p182 = scmp.ne.s32.totalorder %s177, %s179
    %p183 = scmp.eq.s32.totalorder %s17, 0
    %p184 = por %p182, %p183
    %p185 = scmp.ne.s32.totalorder %s177, %s179
    %p186 = scmp.eq.s32.totalorder %s22, 1
    %p187 = por %p185, %p186
    %p188 = scmp.ne.s32.totalorder %s179, %s180
    %p189 = scmp.eq.s32.totalorder %s22, 0
    %p190 = por %p188, %p189
    %p191 = scmp.ne.s32.totalorder %s179, %s180
    %p192 = scmp.eq.s32.totalorder %s23, 1
    %p193 = por %p191, %p192
    %p195 = scmp.ne.s32.totalorder %s180, %s194
    %p196 = scmp.eq.s32.totalorder %s23, 0
    %p197 = por %p195, %p196
    %s199 = sadd.s32 %s198, 1
    %p202 = scmp.eq.s32.totalorder %s17, 1
    %p203 = scmp.ne.s32.totalorder %s198, %s200
    %p204 = scmp.eq.s32.totalorder %s17, 0
    %p205 = por %p203, %p204
    %p206 = scmp.ne.s32.totalorder %s198, %s200
    %p207 = scmp.eq.s32.totalorder %s22, 1
    %p208 = por %p206, %p207
    %p209 = scmp.ne.s32.totalorder %s200, %s201
    %p210 = scmp.eq.s32.totalorder %s22, 0
    %p211 = por %p209, %p210
    %p212 = scmp.ne.s32.totalorder %s200, %s201
    %p213 = scmp.eq.s32.totalorder %s23, 1
    %p214 = por %p212, %p213
    %p216 = scmp.ne.s32.totalorder %s201, %s215
    %p217 = scmp.eq.s32.totalorder %s23, 0
    %p218 = por %p216, %p217
    %s220 = sadd.s32 %s219, 1
    %p223 = scmp.eq.s32.totalorder %s17, 1
    %p224 = scmp.ne.s32.totalorder %s219, %s221
    %p225 = scmp.eq.s32.totalorder %s17, 0
    %p226 = por %p224, %p225
    %p227 = scmp.ne.s32.totalorder %s219, %s221
    %p228 = scmp.eq.s32.totalorder %s22, 1
    %p229 = por %p227, %p228
    %p230 = scmp.ne.s32.totalorder %s221, %s222
    %p231 = scmp.eq.s32.totalorder %s22, 0
    %p232 = por %p230, %p231
    %p233 = scmp.ne.s32.totalorder %s221, %s222
    %p234 = scmp.eq.s32.totalorder %s23, 1
    %p235 = por %p233, %p234
    %p237 = scmp.ne.s32.totalorder %s222, %s236
    %p238 = scmp.eq.s32.totalorder %s23, 0
    %p239 = por %p237, %p238
    %s241 = sadd.s32 %s240, 1
    %p244 = scmp.eq.s32.totalorder %s17, 1
    %p245 = scmp.ne.s32.totalorder %s240, %s242
    %p246 = scmp.eq.s32.totalorder %s17, 0
    %p247 = por %p245, %p246
    %p248 = scmp.ne.s32.totalorder %s240, %s242
    %p249 = scmp.eq.s32.totalorder %s22, 1
    %p250 = por %p248, %p249
    %p251 = scmp.ne.s32.totalorder %s242, %s243
    %p252 = scmp.eq.s32.totalorder %s22, 0
    %p253 = por %p251, %p252
    %p254 = scmp.ne.s32.totalorder %s242, %s243
    %p255 = scmp.eq.s32.totalorder %s23, 1
    %p256 = por %p254, %p255
    %p258 = scmp.ne.s32.totalorder %s243, %s257
    %p259 = scmp.eq.s32.totalorder %s23, 0
    %p260 = por %p258, %p259
    %s261 = ssub.s32 %s17, %s24
    %p262 = scmp.eq.s32.totalorder %s261, 0
    %s264 = sadd.s32 %s263, 1
    %s265 = scalar_select %p262, %s263, %s264
    %p268 = pneg %p262
    %p269 = scmp.eq.s32.totalorder %s17, 1
    %p270 = por %p268, %p269
    %p271 = scmp.ne.s32.totalorder %s263, %s266
    %p272 = scmp.eq.s32.totalorder %s17, 0
    %p273 = por %p271, %p272
    %p274 = scmp.ne.s32.totalorder %s263, %s266
    %p275 = scmp.eq.s32.totalorder %s22, 1
    %p276 = por %p274, %p275
    %p277 = scmp.ne.s32.totalorder %s266, %s267
    %p278 = scmp.eq.s32.totalorder %s22, 0
    %p279 = por %p277, %p278
    %p280 = scmp.ne.s32.totalorder %s266, %s267
    %p281 = scmp.eq.s32.totalorder %s23, 1
    %p282 = por %p280, %p281
    %p284 = scmp.ne.s32.totalorder %s267, %s283
    %p285 = scmp.eq.s32.totalorder %s23, 0
    %p286 = por %p284, %p285
    %p287 = scmp.le.s32.totalorder 1, %s17
    %p288 = scmp.lt.s32.totalorder %s17, 3
    %p289 = pnand %p287, %p288
    %p290 = pneg %p289
    // Predicated region
    $region9: #{layer_block_forward.1} parent=5 // pred_check
      _
    $region10: #{layer_block_forward.1} parent=5 // pred_check_branch
      %292 = sbr.rel (%p289) target = $region12
    $region11: #{layer_block_forward.1} parent=5 // pred_region
      %s293 = ssub.s32 %s17, 1
      // Predicated region
      $region13: #{layer_block_forward.1} parent=11 // pred_check
        %p294 = pneg %p64
      $region14: #{layer_block_forward.1} parent=11 // pred_check_branch
        %296 = sbr.rel (%p294) target = $region16
      $region15: #{layer_block_forward.1} parent=11 // pred_region
        _
      $region16: #{layer_block_forward.1} parent=11 // pred_fallthru
        _
      // Predicated region
      $region17: #{layer_block_forward.1} parent=11 // pred_check
        %p297 = pneg %p85
      $region18: #{layer_block_forward.1} parent=11 // pred_check_branch
        %299 = sbr.rel (%p297) target = $region20
      $region19: #{layer_block_forward.1} parent=11 // pred_region
        _
      $region20: #{layer_block_forward.1} parent=11 // pred_fallthru
        _
      // Predicated region
      $region21: #{layer_block_forward.1} parent=11 // pred_check
        %p300 = pneg %p106
      $region22: #{layer_block_forward.1} parent=11 // pred_check_branch
        %302 = sbr.rel (%p300) target = $region24
      $region23: #{layer_block_forward.1} parent=11 // pred_region
        _
      $region24: #{layer_block_forward.1} parent=11 // pred_fallthru
        _
      // Predicated region
      $region25: #{layer_block_forward.1} parent=11 // pred_check
        %p303 = pneg %p127
      $region26: #{layer_block_forward.1} parent=11 // pred_check_branch
        %305 = sbr.rel (%p303) target = $region28
      $region27: #{layer_block_forward.1} parent=11 // pred_region
        _
      $region28: #{layer_block_forward.1} parent=11 // pred_fallthru
        _
      // Predicated region
      $region29: #{layer_block_forward.1} parent=11 // pred_check
        %p306 = pneg %p148
      $region30: #{layer_block_forward.1} parent=11 // pred_check_branch
        %308 = sbr.rel (%p306) target = $region32
      $region31: #{layer_block_forward.1} parent=11 // pred_region
        _
      $region32: #{layer_block_forward.1} parent=11 // pred_fallthru
        _
      // Predicated region
      $region33: #{layer_block_forward.1} parent=11 // pred_check
        %p309 = pneg %p169
      $region34: #{layer_block_forward.1} parent=11 // pred_check_branch
        %311 = sbr.rel (%p309) target = $region36
      $region35: #{layer_block_forward.1} parent=11 // pred_region
        _
      $region36: #{layer_block_forward.1} parent=11 // pred_fallthru
        _
      // Predicated region
      $region37: #{layer_block_forward.1} parent=11 // pred_check
        %p312 = pneg %p190
      $region38: #{layer_block_forward.1} parent=11 // pred_check_branch
        %314 = sbr.rel (%p312) target = $region40
      $region39: #{layer_block_forward.1} parent=11 // pred_region
        _
      $region40: #{layer_block_forward.1} parent=11 // pred_fallthru
        _
      // Predicated region
      $region41: #{layer_block_forward.1} parent=11 // pred_check
        %p315 = pneg %p211
      $region42: #{layer_block_forward.1} parent=11 // pred_check_branch
        %317 = sbr.rel (%p315) target = $region44
      $region43: #{layer_block_forward.1} parent=11 // pred_region
        _
      $region44: #{layer_block_forward.1} parent=11 // pred_fallthru
        _
      // Predicated region
      $region45: #{layer_block_forward.1} parent=11 // pred_check
        %p318 = pneg %p232
      $region46: #{layer_block_forward.1} parent=11 // pred_check_branch
        %320 = sbr.rel (%p318) target = $region48
      $region47: #{layer_block_forward.1} parent=11 // pred_region
        _
      $region48: #{layer_block_forward.1} parent=11 // pred_fallthru
        _
      // Predicated region
      $region49: #{layer_block_forward.1} parent=11 // pred_check
        %p321 = pneg %p253
      $region50: #{layer_block_forward.1} parent=11 // pred_check_branch
        %323 = sbr.rel (%p321) target = $region52
      $region51: #{layer_block_forward.1} parent=11 // pred_region
        _
      $region52: #{layer_block_forward.1} parent=11 // pred_fallthru
        _
    $region12: #{layer_block_forward.1} parent=5 // pred_fallthru
      _
    %p324 = scmp.lt.s32.totalorder %s17, 2
    // Predicated region
    $region53: #{layer_block_forward.1} parent=5 // pred_check
      %p325 = pneg %p324
    $region54: #{layer_block_forward.1} parent=5 // pred_check_branch
      %327 = sbr.rel (%p325) target = $region56
    $region55: #{layer_block_forward.1} parent=5 // pred_region
      // Predicated region
      $region57: #{layer_block_forward.1} parent=55 // pred_check
        %p328 = pneg %p37
      $region58: #{layer_block_forward.1} parent=55 // pred_check_branch
        %330 = sbr.rel (%p328) target = $region60
      $region59: #{layer_block_forward.1} parent=55 // pred_region
        %p331 = scmp.lt.s32.totalorder %s17, 1
        %s332 = scalar_select %p331, %s17, 1
        %s333 = smul.addr %s332, 8
        %s334 = smul.addr %s333, 8
        %s335 = scalar_lea.vmem %s0, %s334
      $region60: #{layer_block_forward.1} parent=55 // pred_fallthru
        _
    $region56: #{layer_block_forward.1} parent=5 // pred_fallthru
      _
    %p336 = scmp.le.s32.totalorder 1, %s17
    %p337 = scmp.lt.s32.totalorder %s17, 3
    %p338 = pnand %p336, %p337
    %p339 = pneg %p338
    // Predicated region
    $region61: #{layer_block_forward.1} parent=5 // pred_check
      _
    $region62: #{layer_block_forward.1} parent=5 // pred_check_branch
      %341 = sbr.rel (%p338) target = $region64
    $region63: #{layer_block_forward.1} parent=5 // pred_region
      %s342 = ssub.s32 %s17, 1
      %p343 = scmp.lt.s32.totalorder %s22, 1
      %s344 = scalar_select %p343, %s22, 1
      %s345 = smul.addr %s344, 8
      %s346 = smul.addr %s345, 8
      %s347 = scalar_lea.vmem %s0, %s346
      %p348 = pneg %p43
      %p349 = pneg %p40
      %p350 = pneg %p64
      %p351 = pneg %p61
      %p352 = pneg %p85
      %p353 = pneg %p82
      %p354 = pneg %p106
      %p355 = pneg %p103
      %p356 = pneg %p127
      %p357 = pneg %p124
      %p358 = pneg %p148
      %p359 = pneg %p145
      %p360 = pneg %p169
      %p361 = pneg %p166
      %p362 = pneg %p190
      %p363 = pneg %p187
      %p364 = pneg %p211
      %p365 = pneg %p208
      %p366 = pneg %p232
      %p367 = pneg %p229
      %p368 = pneg %p253
      %p369 = pneg %p250
      %p370 = pneg %p279
      %p371 = pneg %p276
      %p372 = scmp.lt.s32.totalorder %s22, 1
      %s373 = scalar_select %p372, %s22, 1
      %s374 = smul.addr %s373, 8
      %s375 = smul.addr %s374, 8
      %s376 = scalar_lea.vmem %s11, %s375
      %p377 = scmp.lt.s32.totalorder %s22, 1
      %s378 = scalar_select %p377, %s22, 1
      %s379 = smul.addr %s378, 8
      %s380 = smul.addr %s379, 8
      %s381 = scalar_lea.vmem %s0, %s380
      %p382 = scmp.lt.s32.totalorder %s22, 1
      %s383 = scalar_select %p382, %s22, 1
      %s384 = smul.addr %s383, 8
      %s385 = smul.addr %s384, 8
      %s386 = scalar_lea.vmem %s11, %s385
      %v387 = vld [vmem:[%s381] sm:$0xff]
      %v388 = vld [vmem:[%s381 + $0x8] sm:$0xff]
      %v389 = vld [vmem:[%s381 + $0x10] sm:$0xff]
      %v390 = vld [vmem:[%s381 + $0x18] sm:$0xff]
      %v391 = vld [vmem:[%s381 + $0x20] sm:$0xff]
      %v392 = vld [vmem:[%s381 + $0x28] sm:$0xff]
      %v393 = vld [vmem:[%s381 + $0x30] sm:$0xff]
      %v394 = vld [vmem:[%s381 + $0x38] sm:$0xff]
      %395 = vxpose.xlu0.b32.start [1/16] %v387, 128
      %396 = vxpose.xlu0.b32.cont [2/16] %v389, 128
      %397 = vxpose.xlu0.b32.cont [3/16] %v391, 128
      %398 = vxpose.xlu0.b32.cont [4/16] %v393, 128
      %399 = vxpose.xlu0.b32.cont [5/16] 0.0, 128
      %400 = vxpose.xlu0.b32.cont [6/16] 0.0, 128
      %401 = vxpose.xlu0.b32.cont [7/16] 0.0, 128
      %402 = vxpose.xlu0.b32.cont [8/16] 0.0, 128
      %403 = vxpose.xlu0.b32.cont [9/16] 0.0, 128
      %404 = vxpose.xlu0.b32.cont [10/16] 0.0, 128
      %405 = vxpose.xlu0.b32.cont [11/16] 0.0, 128
      %406 = vxpose.xlu0.b32.cont [12/16] 0.0, 128
      %407 = vxpose.xlu0.b32.cont [13/16] 0.0, 128
      %408 = vxpose.xlu0.b32.cont [14/16] 0.0, 128
      %409 = vxpose.xlu0.b32.cont [15/16] 0.0, 128
      %410 = vxpose.xlu0.b32.end [16/16] 0.0, 128
      %v411 = vpop.trf.xlu0
      %v412 = vpop.trf.xlu0
      %v413 = vpop.trf.xlu0
      %v414 = vpop.trf.xlu0
      %v415 = vpop.trf.xlu0
      %v416 = vpop.trf.xlu0
      %v417 = vpop.trf.xlu0
      %v418 = vpop.trf.xlu0
      %v419 = vpop.trf.xlu0
      %v420 = vpop.trf.xlu0
      %v421 = vpop.trf.xlu0
      %v422 = vpop.trf.xlu0
      %v423 = vpop.trf.xlu0
      %v424 = vpop.trf.xlu0
      %v425 = vpop.trf.xlu0
      %v426 = vpop.trf.xlu0
      %427 = vxpose.xlu0.b32.start [1/16] %v388, 128
      %428 = vxpose.xlu0.b32.cont [2/16] %v390, 128
      %429 = vxpose.xlu0.b32.cont [3/16] %v392, 128
      %430 = vxpose.xlu0.b32.cont [4/16] %v394, 128
      %431 = vxpose.xlu0.b32.cont [5/16] 0.0, 128
      %432 = vxpose.xlu0.b32.cont [6/16] 0.0, 128
      %433 = vxpose.xlu0.b32.cont [7/16] 0.0, 128
      %434 = vxpose.xlu0.b32.cont [8/16] 0.0, 128
      %435 = vxpose.xlu0.b32.cont [9/16] 0.0, 128
      %436 = vxpose.xlu0.b32.cont [10/16] 0.0, 128
      %437 = vxpose.xlu0.b32.cont [11/16] 0.0, 128
      %438 = vxpose.xlu0.b32.cont [12/16] 0.0, 128
      %439 = vxpose.xlu0.b32.cont [13/16] 0.0, 128
      %440 = vxpose.xlu0.b32.cont [14/16] 0.0, 128
      %441 = vxpose.xlu0.b32.cont [15/16] 0.0, 128
      %442 = vxpose.xlu0.b32.end [16/16] 0.0, 128
      %v443 = vpop.trf.xlu0
      %v444 = vpop.trf.xlu0
      %v445 = vpop.trf.xlu0
      %v446 = vpop.trf.xlu0
      %v447 = vpop.trf.xlu0
      %v448 = vpop.trf.xlu0
      %v449 = vpop.trf.xlu0
      %v450 = vpop.trf.xlu0
      %v451 = vpop.trf.xlu0
      %v452 = vpop.trf.xlu0
      %v453 = vpop.trf.xlu0
      %v454 = vpop.trf.xlu0
      %v455 = vpop.trf.xlu0
      %v456 = vpop.trf.xlu0
      %v457 = vpop.trf.xlu0
      %v458 = vpop.trf.xlu0
      %vm459 = vcmask 261120
      %460 = vst.msk [vmem:[#allocation2] sm:$0xff] %vm459, 0.0
      %461 = vst.msk [vmem:[#allocation2 + $0x8] sm:$0xff] %vm459, 0.0
      %vm462 = vcmask 254976
      %463 = vst.msk [vmem:[#allocation2 + $0x10] sm:$0x3] %vm462, 0.0
      %464 = vst.msk [vmem:[#allocation2 + $0x18] sm:$0xff] %vm459, 0.0
      %465 = vst.msk [vmem:[#allocation2 + $0x20] sm:$0xff] %vm459, 0.0
      %466 = vst.msk [vmem:[#allocation2 + $0x28] sm:$0x3] %vm462, 0.0
      %467 = vst.msk [vmem:[#allocation2 + $0x30] sm:$0xff] %vm459, 0.0
      %468 = vst.msk [vmem:[#allocation2 + $0x38] sm:$0xff] %vm459, 0.0
      %469 = vst.msk [vmem:[#allocation2 + $0x40] sm:$0x3] %vm462, 0.0
      %470 = vst.msk [vmem:[#allocation2 + $0x48] sm:$0xff] %vm459, 0.0
      %471 = vst.msk [vmem:[#allocation2 + $0x50] sm:$0xff] %vm459, 0.0
      %472 = vst.msk [vmem:[#allocation2 + $0x58] sm:$0x3] %vm462, 0.0
      %473 = vst.msk [vmem:[#allocation2 + $0x60] sm:$0xff] %vm459, 0.0
      %474 = vst.msk [vmem:[#allocation2 + $0x68] sm:$0xff] %vm459, 0.0
      %475 = vst.msk [vmem:[#allocation2 + $0x70] sm:$0x3] %vm462, 0.0
      %476 = vst.msk [vmem:[#allocation2 + $0x78] sm:$0xff] %vm459, 0.0
      %477 = vst.msk [vmem:[#allocation2 + $0x80] sm:$0xff] %vm459, 0.0
      %478 = vst.msk [vmem:[#allocation2 + $0x88] sm:$0x3] %vm462, 0.0
      %479 = vst.msk [vmem:[#allocation2 + $0x90] sm:$0xff] %vm459, 0.0
      %480 = vst.msk [vmem:[#allocation2 + $0x98] sm:$0xff] %vm459, 0.0
      %481 = vst.msk [vmem:[#allocation2 + $0xa0] sm:$0x3] %vm462, 0.0
      %482 = vst.msk [vmem:[#allocation2 + $0xa8] sm:$0xff] %vm459, 0.0
      %483 = vst.msk [vmem:[#allocation2 + $0xb0] sm:$0xff] %vm459, 0.0
      %484 = vst.msk [vmem:[#allocation2 + $0xb8] sm:$0x3] %vm462, 0.0
      %485 = vst.msk [vmem:[#allocation2 + $0xc0] sm:$0xff] %vm459, 0.0
      %486 = vst.msk [vmem:[#allocation2 + $0xc8] sm:$0xff] %vm459, 0.0
      %487 = vst.msk [vmem:[#allocation2 + $0xd0] sm:$0x3] %vm462, 0.0
      %488 = vst.msk [vmem:[#allocation2 + $0xd8] sm:$0xff] %vm459, 0.0
      %489 = vst.msk [vmem:[#allocation2 + $0xe0] sm:$0xff] %vm459, 0.0
      %490 = vst.msk [vmem:[#allocation2 + $0xe8] sm:$0x3] %vm462, 0.0
      %491 = vst.msk [vmem:[#allocation2 + $0xf0] sm:$0xff] %vm459, 0.0
      %492 = vst.msk [vmem:[#allocation2 + $0xf8] sm:$0xff] %vm459, 0.0
      %493 = vst.msk [vmem:[#allocation2 + $0x100] sm:$0x3] %vm462, 0.0
      %494 = vst.msk [vmem:[#allocation2 + $0x108] sm:$0xff] %vm459, 0.0
      %495 = vst.msk [vmem:[#allocation2 + $0x110] sm:$0xff] %vm459, 0.0
      %496 = vst.msk [vmem:[#allocation2 + $0x118] sm:$0x3] %vm462, 0.0
      %497 = vst.msk [vmem:[#allocation2 + $0x120] sm:$0xff] %vm459, 0.0
      %498 = vst.msk [vmem:[#allocation2 + $0x128] sm:$0xff] %vm459, 0.0
      %499 = vst.msk [vmem:[#allocation2 + $0x130] sm:$0x3] %vm462, 0.0
      %500 = vst.msk [vmem:[#allocation2 + $0x138] sm:$0xff] %vm459, 0.0
      %501 = vst.msk [vmem:[#allocation2 + $0x140] sm:$0xff] %vm459, 0.0
      %502 = vst.msk [vmem:[#allocation2 + $0x148] sm:$0x3] %vm462, 0.0
      %503 = vst.msk [vmem:[#allocation2 + $0x150] sm:$0xff] %vm459, 0.0
      %504 = vst.msk [vmem:[#allocation2 + $0x158] sm:$0xff] %vm459, 0.0
      %505 = vst.msk [vmem:[#allocation2 + $0x160] sm:$0x3] %vm462, 0.0
      %506 = vst.msk [vmem:[#allocation2 + $0x168] sm:$0xff] %vm459, 0.0
      %507 = vst.msk [vmem:[#allocation2 + $0x170] sm:$0xff] %vm459, 0.0
      %508 = vst.msk [vmem:[#allocation2 + $0x178] sm:$0x3] %vm462, 0.0
      %509 = vst.msk [vmem:[#allocation2 + $0x180] sm:$0xff] %vm459, 0.0
      %510 = vst.msk [vmem:[#allocation2 + $0x188] sm:$0xff] %vm459, 0.0
      %511 = vst.msk [vmem:[#allocation2 + $0x190] sm:$0x3] %vm462, 0.0
      %512 = vst.msk [vmem:[#allocation2 + $0x198] sm:$0xff] %vm459, 0.0
      %513 = vst.msk [vmem:[#allocation2 + $0x1a0] sm:$0xff] %vm459, 0.0
      %514 = vst.msk [vmem:[#allocation2 + $0x1a8] sm:$0x3] %vm462, 0.0
      %v515 = vld [vmem:[%s1] sm:$0x1]
      %v517 = vlaneseq
      %v518 = vshrl.u32 %v517, 7
      %v519 = vsub.s32 0, %v518
      %v520 = vrot.slane %v515, %v519
      %v522 = vmul.f32 %v411, %v520
      %v523 = vmul.f32 %v412, %v520
      %v524 = vmul.f32 %v413, %v520
      %v525 = vmul.f32 %v414, %v520
      %v526 = vmul.f32 %v415, %v520
      %v527 = vmul.f32 %v416, %v520
      %v528 = vmul.f32 %v417, %v520
      %v529 = vmul.f32 %v418, %v520
      %v530 = vmul.f32 %v419, %v520
      %v531 = vmul.f32 %v420, %v520
      %v532 = vmul.f32 %v421, %v520
      %v533 = vmul.f32 %v422, %v520
      %v534 = vmul.f32 %v423, %v520
      %v535 = vmul.f32 %v424, %v520
      %v536 = vmul.f32 %v425, %v520
      %v537 = vmul.f32 %v426, %v520
      %v538 = vmul.f32 %v443, %v520
      %v539 = vmul.f32 %v444, %v520
      %v540 = vmul.f32 %v445, %v520
      %v541 = vmul.f32 %v446, %v520
      %v542 = vmul.f32 %v447, %v520
      %v543 = vmul.f32 %v448, %v520
      %v544 = vmul.f32 %v449, %v520
      %v545 = vmul.f32 %v450, %v520
      %v546 = vmul.f32 %v451, %v520
      %v547 = vmul.f32 %v452, %v520
      %v548 = vmul.f32 %v453, %v520
      %v549 = vmul.f32 %v454, %v520
      %v550 = vmul.f32 %v455, %v520
      %v551 = vmul.f32 %v456, %v520
      %v552 = vmul.f32 %v457, %v520
      %v553 = vmul.f32 %v458, %v520
      %v554 = vld [vmem:[%s2] sm:$0x1]
      %v556 = vlaneseq
      %v557 = vshrl.u32 %v556, 7
      %v558 = vsub.s32 0, %v557
      %v559 = vrot.slane %v554, %v558
      %v561 = vadd.f32 %v522, %v559
      %v562 = vadd.f32 %v523, %v559
      %v563 = vadd.f32 %v524, %v559
      %v564 = vadd.f32 %v525, %v559
      %v565 = vadd.f32 %v526, %v559
      %v566 = vadd.f32 %v527, %v559
      %v567 = vadd.f32 %v528, %v559
      %v568 = vadd.f32 %v529, %v559
      %v569 = vadd.f32 %v530, %v559
      %v570 = vadd.f32 %v531, %v559
      %v571 = vadd.f32 %v532, %v559
      %v572 = vadd.f32 %v533, %v559
      %v573 = vadd.f32 %v534, %v559
      %v574 = vadd.f32 %v535, %v559
      %v575 = vadd.f32 %v536, %v559
      %v576 = vadd.f32 %v537, %v559
      %v577 = vadd.f32 %v538, %v559
      %v578 = vadd.f32 %v539, %v559
      %v579 = vadd.f32 %v540, %v559
      %v580 = vadd.f32 %v541, %v559
      %v581 = vadd.f32 %v542, %v559
      %v582 = vadd.f32 %v543, %v559
      %v583 = vadd.f32 %v544, %v559
      %v584 = vadd.f32 %v545, %v559
      %v585 = vadd.f32 %v546, %v559
      %v586 = vadd.f32 %v547, %v559
      %v587 = vadd.f32 %v548, %v559
      %v588 = vadd.f32 %v549, %v559
      %v589 = vadd.f32 %v550, %v559
      %v590 = vadd.f32 %v551, %v559
      %v591 = vadd.f32 %v552, %v559
      %v592 = vadd.f32 %v553, %v559
      %v593 = vmax.f32 %v561, 0.0
      %v594 = vmax.f32 %v562, 0.0
      %v595 = vmax.f32 %v563, 0.0
      %v596 = vmax.f32 %v564, 0.0
      %v597 = vmax.f32 %v565, 0.0
      %v598 = vmax.f32 %v566, 0.0
      %v599 = vmax.f32 %v567, 0.0
      %v600 = vmax.f32 %v568, 0.0
      %v601 = vmax.f32 %v569, 0.0
      %v602 = vmax.f32 %v570, 0.0
      %v603 = vmax.f32 %v571, 0.0
      %v604 = vmax.f32 %v572, 0.0
      %v605 = vmax.f32 %v573, 0.0
      %v606 = vmax.f32 %v574, 0.0
      %v607 = vmax.f32 %v575, 0.0
      %v608 = vmax.f32 %v576, 0.0
      %v609 = vmax.f32 %v577, 0.0
      %v610 = vmax.f32 %v578, 0.0
      %v611 = vmax.f32 %v579, 0.0
      %v612 = vmax.f32 %v580, 0.0
      %v613 = vmax.f32 %v581, 0.0
      %v614 = vmax.f32 %v582, 0.0
      %v615 = vmax.f32 %v583, 0.0
      %v616 = vmax.f32 %v584, 0.0
      %v617 = vmax.f32 %v585, 0.0
      %v618 = vmax.f32 %v586, 0.0
      %v619 = vmax.f32 %v587, 0.0
      %v620 = vmax.f32 %v588, 0.0
      %v621 = vmax.f32 %v589, 0.0
      %v622 = vmax.f32 %v590, 0.0
      %v623 = vmax.f32 %v591, 0.0
      %v624 = vmax.f32 %v592, 0.0
      %s625 = scalar_lea.vmem [#allocation2], 24
      %626 = vst.msk [vmem:[%s625 + $0x1] sm:$0xff] %vm459, %v593
      %627 = vst.msk [vmem:[%s625 + $0x9] sm:$0xff] %vm459, %v594
      %628 = vst.msk [vmem:[%s625 + $0x19] sm:$0xff] %vm459, %v595
      %629 = vst.msk [vmem:[%s625 + $0x21] sm:$0xff] %vm459, %v596
      %630 = vst.msk [vmem:[%s625 + $0x31] sm:$0xff] %vm459, %v597
      %631 = vst.msk [vmem:[%s625 + $0x39] sm:$0xff] %vm459, %v598
      %632 = vst.msk [vmem:[%s625 + $0x49] sm:$0xff] %vm459, %v599
      %633 = vst.msk [vmem:[%s625 + $0x51] sm:$0xff] %vm459, %v600
      %634 = vst.msk [vmem:[%s625 + $0x61] sm:$0xff] %vm459, %v601
      %635 = vst.msk [vmem:[%s625 + $0x69] sm:$0xff] %vm459, %v602
      %636 = vst.msk [vmem:[%s625 + $0x79] sm:$0xff] %vm459, %v603
      %637 = vst.msk [vmem:[%s625 + $0x81] sm:$0xff] %vm459, %v604
      %638 = vst.msk [vmem:[%s625 + $0x91] sm:$0xff] %vm459, %v605
      %639 = vst.msk [vmem:[%s625 + $0x99] sm:$0xff] %vm459, %v606
      %640 = vst.msk [vmem:[%s625 + $0xa9] sm:$0xff] %vm459, %v607
      %641 = vst.msk [vmem:[%s625 + $0xb1] sm:$0xff] %vm459, %v608
      %642 = vst.msk [vmem:[%s625 + $0xc1] sm:$0xff] %vm459, %v609
      %643 = vst.msk [vmem:[%s625 + $0xc9] sm:$0xff] %vm459, %v610
      %644 = vst.msk [vmem:[%s625 + $0xd9] sm:$0xff] %vm459, %v611
      %645 = vst.msk [vmem:[%s625 + $0xe1] sm:$0xff] %vm459, %v612
      %646 = vst.msk [vmem:[%s625 + $0xf1] sm:$0xff] %vm459, %v613
      %647 = vst.msk [vmem:[%s625 + $0xf9] sm:$0xff] %vm459, %v614
      %648 = vst.msk [vmem:[%s625 + $0x109] sm:$0xff] %vm459, %v615
      %649 = vst.msk [vmem:[%s625 + $0x111] sm:$0xff] %vm459, %v616
      %650 = vst.msk [vmem:[%s625 + $0x121] sm:$0xff] %vm459, %v617
      %651 = vst.msk [vmem:[%s625 + $0x129] sm:$0xff] %vm459, %v618
      %652 = vst.msk [vmem:[%s625 + $0x139] sm:$0xff] %vm459, %v619
      %653 = vst.msk [vmem:[%s625 + $0x141] sm:$0xff] %vm459, %v620
      %654 = vst.msk [vmem:[%s625 + $0x151] sm:$0xff] %vm459, %v621
      %655 = vst.msk [vmem:[%s625 + $0x159] sm:$0xff] %vm459, %v622
      %656 = vst.msk [vmem:[%s625 + $0x169] sm:$0xff] %vm459, %v623
      %657 = vst.msk [vmem:[%s625 + $0x171] sm:$0xff] %vm459, %v624
      %v658 = vld [vmem:[#allocation2] sm:$0xff]
      %v659 = vld [vmem:[#allocation2 + $0x8] sm:$0xff]
      %v660 = vld [vmem:[#allocation2 + $0x18] sm:$0xff]
      %v661 = vld [vmem:[#allocation2 + $0x20] sm:$0xff]
      %v662 = vld [vmem:[#allocation2 + $0x30] sm:$0xff]
      %v663 = vld [vmem:[#allocation2 + $0x38] sm:$0xff]
      %v664 = vld [vmem:[#allocation2 + $0x48] sm:$0xff]
      %v665 = vld [vmem:[#allocation2 + $0x50] sm:$0xff]
      %v666 = vld [vmem:[#allocation2 + $0x60] sm:$0xff]
      %v667 = vld [vmem:[#allocation2 + $0x68] sm:$0xff]
      %v668 = vld [vmem:[#allocation2 + $0x78] sm:$0xff]
      %v669 = vld [vmem:[#allocation2 + $0x80] sm:$0xff]
      %v670 = vld [vmem:[#allocation2 + $0x90] sm:$0xff]
      %v671 = vld [vmem:[#allocation2 + $0x98] sm:$0xff]
      %v672 = vld [vmem:[#allocation2 + $0xa8] sm:$0xff]
      %v673 = vld [vmem:[#allocation2 + $0xb0] sm:$0xff]
      %v674 = vld [vmem:[#allocation2 + $0xc0] sm:$0xff]
      %v675 = vld [vmem:[#allocation2 + $0xc8] sm:$0xff]
      %v676 = vld [vmem:[#allocation2 + $0xd8] sm:$0xff]
      %v677 = vld [vmem:[#allocation2 + $0xe0] sm:$0xff]
      %v678 = vld [vmem:[#allocation2 + $0xf0] sm:$0xff]
      %v679 = vld [vmem:[#allocation2 + $0xf8] sm:$0xff]
      %v680 = vld [vmem:[#allocation2 + $0x108] sm:$0xff]
      %v681 = vld [vmem:[#allocation2 + $0x110] sm:$0xff]
      %v682 = vld [vmem:[#allocation2 + $0x120] sm:$0xff]
      %v683 = vld [vmem:[#allocation2 + $0x128] sm:$0xff]
      %v684 = vld [vmem:[#allocation2 + $0x138] sm:$0xff]
      %v685 = vld [vmem:[#allocation2 + $0x140] sm:$0xff]
      %v686 = vld [vmem:[#allocation2 + $0x150] sm:$0xff]
      %v687 = vld [vmem:[#allocation2 + $0x158] sm:$0xff]
      %v688 = vld [vmem:[#allocation2 + $0x168] sm:$0xff]
      %v689 = vld [vmem:[#allocation2 + $0x170] sm:$0xff]
      %690 = vst.msk [vmem:[#allocation3] sm:$0xff] %vm459, %v658
      %691 = vst.msk [vmem:[#allocation3 + $0x18] sm:$0xff] %vm459, %v659
      %692 = vst.msk [vmem:[#allocation3 + $0x30] sm:$0xff] %vm459, %v660
      %693 = vst.msk [vmem:[#allocation3 + $0x48] sm:$0xff] %vm459, %v661
      %694 = vst.msk [vmem:[#allocation3 + $0x60] sm:$0xff] %vm459, %v662
      %695 = vst.msk [vmem:[#allocation3 + $0x78] sm:$0xff] %vm459, %v663
      %696 = vst.msk [vmem:[#allocation3 + $0x90] sm:$0xff] %vm459, %v664
      %697 = vst.msk [vmem:[#allocation3 + $0xa8] sm:$0xff] %vm459, %v665
      %698 = vst.msk [vmem:[#allocation3 + $0xc0] sm:$0xff] %vm459, %v666
      %699 = vst.msk [vmem:[#allocation3 + $0xd8] sm:$0xff] %vm459, %v667
      %700 = vst.msk [vmem:[#allocation3 + $0xf0] sm:$0xff] %vm459, %v668
      %701 = vst.msk [vmem:[#allocation3 + $0x108] sm:$0xff] %vm459, %v669
      %702 = vst.msk [vmem:[#allocation3 + $0x120] sm:$0xff] %vm459, %v670
      %703 = vst.msk [vmem:[#allocation3 + $0x138] sm:$0xff] %vm459, %v671
      %704 = vst.msk [vmem:[#allocation3 + $0x150] sm:$0xff] %vm459, %v672
      %705 = vst.msk [vmem:[#allocation3 + $0x168] sm:$0xff] %vm459, %v673
      %706 = vst.msk [vmem:[#allocation3 + $0x180] sm:$0xff] %vm459, %v674
      %707 = vst.msk [vmem:[#allocation3 + $0x198] sm:$0xff] %vm459, %v675
      %708 = vst.msk [vmem:[#allocation3 + $0x1b0] sm:$0xff] %vm459, %v676
      %709 = vst.msk [vmem:[#allocation3 + $0x1c8] sm:$0xff] %vm459, %v677
      %710 = vst.msk [vmem:[#allocation3 + $0x1e0] sm:$0xff] %vm459, %v678
      %711 = vst.msk [vmem:[#allocation3 + $0x1f8] sm:$0xff] %vm459, %v679
      %712 = vst.msk [vmem:[#allocation3 + $0x210] sm:$0xff] %vm459, %v680
      %713 = vst.msk [vmem:[#allocation3 + $0x228] sm:$0xff] %vm459, %v681
      %714 = vst.msk [vmem:[#allocation3 + $0x240] sm:$0xff] %vm459, %v682
      %715 = vst.msk [vmem:[#allocation3 + $0x258] sm:$0xff] %vm459, %v683
      %716 = vst.msk [vmem:[#allocation3 + $0x270] sm:$0xff] %vm459, %v684
      %717 = vst.msk [vmem:[#allocation3 + $0x288] sm:$0xff] %vm459, %v685
      %718 = vst.msk [vmem:[#allocation3 + $0x2a0] sm:$0xff] %vm459, %v686
      %719 = vst.msk [vmem:[#allocation3 + $0x2b8] sm:$0xff] %vm459, %v687
      %720 = vst.msk [vmem:[#allocation3 + $0x2d0] sm:$0xff] %vm459, %v688
      %721 = vst.msk [vmem:[#allocation3 + $0x2e8] sm:$0xff] %vm459, %v689
      %v722 = vld [vmem:[#allocation2 + $0x1] sm:$0xff]
      %v723 = vld [vmem:[#allocation2 + $0x9] sm:$0xff]
      %v724 = vld [vmem:[#allocation2 + $0x19] sm:$0xff]
      %v725 = vld [vmem:[#allocation2 + $0x21] sm:$0xff]
      %v726 = vld [vmem:[#allocation2 + $0x31] sm:$0xff]
      %v727 = vld [vmem:[#allocation2 + $0x39] sm:$0xff]
      %v728 = vld [vmem:[#allocation2 + $0x49] sm:$0xff]
      %v729 = vld [vmem:[#allocation2 + $0x51] sm:$0xff]
      %v730 = vld [vmem:[#allocation2 + $0x61] sm:$0xff]
      %v731 = vld [vmem:[#allocation2 + $0x69] sm:$0xff]
      %v732 = vld [vmem:[#allocation2 + $0x79] sm:$0xff]
      %v733 = vld [vmem:[#allocation2 + $0x81] sm:$0xff]
      %v734 = vld [vmem:[#allocation2 + $0x91] sm:$0xff]
      %v735 = vld [vmem:[#allocation2 + $0x99] sm:$0xff]
      %v736 = vld [vmem:[#allocation2 + $0xa9] sm:$0xff]
      %v737 = vld [vmem:[#allocation2 + $0xb1] sm:$0xff]
      %v738 = vld [vmem:[#allocation2 + $0xc1] sm:$0xff]
      %v739 = vld [vmem:[#allocation2 + $0xc9] sm:$0xff]
      %v740 = vld [vmem:[#allocation2 + $0xd9] sm:$0xff]
      %v741 = vld [vmem:[#allocation2 + $0xe1] sm:$0xff]
      %v742 = vld [vmem:[#allocation2 + $0xf1] sm:$0xff]
      %v743 = vld [vmem:[#allocation2 + $0xf9] sm:$0xff]
      %v744 = vld [vmem:[#allocation2 + $0x109] sm:$0xff]
      %v745 = vld [vmem:[#allocation2 + $0x111] sm:$0xff]
      %v746 = vld [vmem:[#allocation2 + $0x121] sm:$0xff]
      %v747 = vld [vmem:[#allocation2 + $0x129] sm:$0xff]
      %v748 = vld [vmem:[#allocation2 + $0x139] sm:$0xff]
      %v749 = vld [vmem:[#allocation2 + $0x141] sm:$0xff]
      %v750 = vld [vmem:[#allocation2 + $0x151] sm:$0xff]
      %v751 = vld [vmem:[#allocation2 + $0x159] sm:$0xff]
      %v752 = vld [vmem:[#allocation2 + $0x169] sm:$0xff]
      %v753 = vld [vmem:[#allocation2 + $0x171] sm:$0xff]
      %786 = vrot.lane.b32.xlu0 %v722, 32
      %v787 = vpop.permute.xlu0 %786
      %788 = vrot.lane.b32.xlu0 %v723, 32
      %v789 = vpop.permute.xlu0 %788
      %790 = vrot.lane.b32.xlu0 %v724, 32
      %v791 = vpop.permute.xlu0 %790
      %792 = vrot.lane.b32.xlu0 %v725, 32
      %v793 = vpop.permute.xlu0 %792
      %794 = vrot.lane.b32.xlu0 %v726, 32
      %v795 = vpop.permute.xlu0 %794
      %796 = vrot.lane.b32.xlu0 %v727, 32
      %v797 = vpop.permute.xlu0 %796
      %798 = vrot.lane.b32.xlu0 %v728, 32
      %v799 = vpop.permute.xlu0 %798
      %800 = vrot.lane.b32.xlu0 %v729, 32
      %v801 = vpop.permute.xlu0 %800
      %802 = vrot.lane.b32.xlu0 %v730, 32
      %v803 = vpop.permute.xlu0 %802
      %804 = vrot.lane.b32.xlu0 %v731, 32
      %v805 = vpop.permute.xlu0 %804
      %806 = vrot.lane.b32.xlu0 %v732, 32
      %v807 = vpop.permute.xlu0 %806
      %808 = vrot.lane.b32.xlu0 %v733, 32
      %v809 = vpop.permute.xlu0 %808
      %810 = vrot.lane.b32.xlu0 %v734, 32
      %v811 = vpop.permute.xlu0 %810
      %812 = vrot.lane.b32.xlu0 %v735, 32
      %v813 = vpop.permute.xlu0 %812
      %814 = vrot.lane.b32.xlu0 %v736, 32
      %v815 = vpop.permute.xlu0 %814
      %816 = vrot.lane.b32.xlu0 %v737, 32
      %v817 = vpop.permute.xlu0 %816
      %818 = vrot.lane.b32.xlu0 %v738, 32
      %v819 = vpop.permute.xlu0 %818
      %820 = vrot.lane.b32.xlu0 %v739, 32
      %v821 = vpop.permute.xlu0 %820
      %822 = vrot.lane.b32.xlu0 %v740, 32
      %v823 = vpop.permute.xlu0 %822
      %824 = vrot.lane.b32.xlu0 %v741, 32
      %v825 = vpop.permute.xlu0 %824
      %826 = vrot.lane.b32.xlu0 %v742, 32
      %v827 = vpop.permute.xlu0 %826
      %828 = vrot.lane.b32.xlu0 %v743, 32
      %v829 = vpop.permute.xlu0 %828
      %830 = vrot.lane.b32.xlu0 %v744, 32
      %v831 = vpop.permute.xlu0 %830
      %832 = vrot.lane.b32.xlu0 %v745, 32
      %v833 = vpop.permute.xlu0 %832
      %834 = vrot.lane.b32.xlu0 %v746, 32
      %v835 = vpop.permute.xlu0 %834
      %836 = vrot.lane.b32.xlu0 %v747, 32
      %v837 = vpop.permute.xlu0 %836
      %838 = vrot.lane.b32.xlu0 %v748, 32
      %v839 = vpop.permute.xlu0 %838
      %840 = vrot.lane.b32.xlu0 %v749, 32
      %v841 = vpop.permute.xlu0 %840
      %842 = vrot.lane.b32.xlu0 %v750, 32
      %v843 = vpop.permute.xlu0 %842
      %844 = vrot.lane.b32.xlu0 %v751, 32
      %v845 = vpop.permute.xlu0 %844
      %846 = vrot.lane.b32.xlu0 %v752, 32
      %v847 = vpop.permute.xlu0 %846
      %848 = vrot.lane.b32.xlu0 %v753, 32
      %v849 = vpop.permute.xlu0 %848
      %vm882 = vcmask 523520
      %883 = vst.msk [vmem:[#allocation3] sm:$0xff] %vm882, %v787
      %884 = vst.msk [vmem:[#allocation3 + $0x18] sm:$0xff] %vm882, %v789
      %885 = vst.msk [vmem:[#allocation3 + $0x30] sm:$0xff] %vm882, %v791
      %886 = vst.msk [vmem:[#allocation3 + $0x48] sm:$0xff] %vm882, %v793
      %887 = vst.msk [vmem:[#allocation3 + $0x60] sm:$0xff] %vm882, %v795
      %888 = vst.msk [vmem:[#allocation3 + $0x78] sm:$0xff] %vm882, %v797
      %889 = vst.msk [vmem:[#allocation3 + $0x90] sm:$0xff] %vm882, %v799
      %890 = vst.msk [vmem:[#allocation3 + $0xa8] sm:$0xff] %vm882, %v801
      %891 = vst.msk [vmem:[#allocation3 + $0xc0] sm:$0xff] %vm882, %v803
      %892 = vst.msk [vmem:[#allocation3 + $0xd8] sm:$0xff] %vm882, %v805
      %893 = vst.msk [vmem:[#allocation3 + $0xf0] sm:$0xff] %vm882, %v807
      %894 = vst.msk [vmem:[#allocation3 + $0x108] sm:$0xff] %vm882, %v809
      %895 = vst.msk [vmem:[#allocation3 + $0x120] sm:$0xff] %vm882, %v811
      %896 = vst.msk [vmem:[#allocation3 + $0x138] sm:$0xff] %vm882, %v813
      %897 = vst.msk [vmem:[#allocation3 + $0x150] sm:$0xff] %vm882, %v815
      %898 = vst.msk [vmem:[#allocation3 + $0x168] sm:$0xff] %vm882, %v817
      %899 = vst.msk [vmem:[#allocation3 + $0x180] sm:$0xff] %vm882, %v819
      %900 = vst.msk [vmem:[#allocation3 + $0x198] sm:$0xff] %vm882, %v821
      %901 = vst.msk [vmem:[#allocation3 + $0x1b0] sm:$0xff] %vm882, %v823
      %902 = vst.msk [vmem:[#allocation3 + $0x1c8] sm:$0xff] %vm882, %v825
      %903 = vst.msk [vmem:[#allocation3 + $0x1e0] sm:$0xff] %vm882, %v827
      %904 = vst.msk [vmem:[#allocation3 + $0x1f8] sm:$0xff] %vm882, %v829
      %905 = vst.msk [vmem:[#allocation3 + $0x210] sm:$0xff] %vm882, %v831
      %906 = vst.msk [vmem:[#allocation3 + $0x228] sm:$0xff] %vm882, %v833
      %907 = vst.msk [vmem:[#allocation3 + $0x240] sm:$0xff] %vm882, %v835
      %908 = vst.msk [vmem:[#allocation3 + $0x258] sm:$0xff] %vm882, %v837
      %909 = vst.msk [vmem:[#allocation3 + $0x270] sm:$0xff] %vm882, %v839
      %910 = vst.msk [vmem:[#allocation3 + $0x288] sm:$0xff] %vm882, %v841
      %911 = vst.msk [vmem:[#allocation3 + $0x2a0] sm:$0xff] %vm882, %v843
      %912 = vst.msk [vmem:[#allocation3 + $0x2b8] sm:$0xff] %vm882, %v845
      %913 = vst.msk [vmem:[#allocation3 + $0x2d0] sm:$0xff] %vm882, %v847
      %914 = vst.msk [vmem:[#allocation3 + $0x2e8] sm:$0xff] %vm882, %v849
      %v915 = vld [vmem:[#allocation2 + $0x2] sm:$0xff]
      %v916 = vld [vmem:[#allocation2 + $0xa] sm:$0xff]
      %v917 = vld [vmem:[#allocation2 + $0x1a] sm:$0xff]
      %v918 = vld [vmem:[#allocation2 + $0x22] sm:$0xff]
      %v919 = vld [vmem:[#allocation2 + $0x32] sm:$0xff]
      %v920 = vld [vmem:[#allocation2 + $0x3a] sm:$0xff]
      %v921 = vld [vmem:[#allocation2 + $0x4a] sm:$0xff]
      %v922 = vld [vmem:[#allocation2 + $0x52] sm:$0xff]
      %v923 = vld [vmem:[#allocation2 + $0x62] sm:$0xff]
      %v924 = vld [vmem:[#allocation2 + $0x6a] sm:$0xff]
      %v925 = vld [vmem:[#allocation2 + $0x7a] sm:$0xff]
      %v926 = vld [vmem:[#allocation2 + $0x82] sm:$0xff]
      %v927 = vld [vmem:[#allocation2 + $0x92] sm:$0xff]
      %v928 = vld [vmem:[#allocation2 + $0x9a] sm:$0xff]
      %v929 = vld [vmem:[#allocation2 + $0xaa] sm:$0xff]
      %v930 = vld [vmem:[#allocation2 + $0xb2] sm:$0xff]
      %v931 = vld [vmem:[#allocation2 + $0xc2] sm:$0xff]
      %v932 = vld [vmem:[#allocation2 + $0xca] sm:$0xff]
      %v933 = vld [vmem:[#allocation2 + $0xda] sm:$0xff]
      %v934 = vld [vmem:[#allocation2 + $0xe2] sm:$0xff]
      %v935 = vld [vmem:[#allocation2 + $0xf2] sm:$0xff]
      %v936 = vld [vmem:[#allocation2 + $0xfa] sm:$0xff]
      %v937 = vld [vmem:[#allocation2 + $0x10a] sm:$0xff]
      %v938 = vld [vmem:[#allocation2 + $0x112] sm:$0xff]
      %v939 = vld [vmem:[#allocation2 + $0x122] sm:$0xff]
      %v940 = vld [vmem:[#allocation2 + $0x12a] sm:$0xff]
      %v941 = vld [vmem:[#allocation2 + $0x13a] sm:$0xff]
      %v942 = vld [vmem:[#allocation2 + $0x142] sm:$0xff]
      %v943 = vld [vmem:[#allocation2 + $0x152] sm:$0xff]
      %v944 = vld [vmem:[#allocation2 + $0x15a] sm:$0xff]
      %v945 = vld [vmem:[#allocation2 + $0x16a] sm:$0xff]
      %v946 = vld [vmem:[#allocation2 + $0x172] sm:$0xff]
      %979 = vrot.lane.b32.xlu0 %v915, 64
      %v980 = vpop.permute.xlu0 %979
      %981 = vrot.lane.b32.xlu0 %v916, 64
      %v982 = vpop.permute.xlu0 %981
      %983 = vrot.lane.b32.xlu0 %v917, 64
      %v984 = vpop.permute.xlu0 %983
      %985 = vrot.lane.b32.xlu0 %v918, 64
      %v986 = vpop.permute.xlu0 %985
      %987 = vrot.lane.b32.xlu0 %v919, 64
      %v988 = vpop.permute.xlu0 %987
      %989 = vrot.lane.b32.xlu0 %v920, 64
      %v990 = vpop.permute.xlu0 %989
      %991 = vrot.lane.b32.xlu0 %v921, 64
      %v992 = vpop.permute.xlu0 %991
      %993 = vrot.lane.b32.xlu0 %v922, 64
      %v994 = vpop.permute.xlu0 %993
      %995 = vrot.lane.b32.xlu0 %v923, 64
      %v996 = vpop.permute.xlu0 %995
      %997 = vrot.lane.b32.xlu0 %v924, 64
      %v998 = vpop.permute.xlu0 %997
      %999 = vrot.lane.b32.xlu0 %v925, 64
      %v1000 = vpop.permute.xlu0 %999
      %1001 = vrot.lane.b32.xlu0 %v926, 64
      %v1002 = vpop.permute.xlu0 %1001
      %1003 = vrot.lane.b32.xlu0 %v927, 64
      %v1004 = vpop.permute.xlu0 %1003
      %1005 = vrot.lane.b32.xlu0 %v928, 64
      %v1006 = vpop.permute.xlu0 %1005
      %1007 = vrot.lane.b32.xlu0 %v929, 64
      %v1008 = vpop.permute.xlu0 %1007
      %1009 = vrot.lane.b32.xlu0 %v930, 64
      %v1010 = vpop.permute.xlu0 %1009
      %1011 = vrot.lane.b32.xlu0 %v931, 64
      %v1012 = vpop.permute.xlu0 %1011
      %1013 = vrot.lane.b32.xlu0 %v932, 64
      %v1014 = vpop.permute.xlu0 %1013
      %1015 = vrot.lane.b32.xlu0 %v933, 64
      %v1016 = vpop.permute.xlu0 %1015
      %1017 = vrot.lane.b32.xlu0 %v934, 64
      %v1018 = vpop.permute.xlu0 %1017
      %1019 = vrot.lane.b32.xlu0 %v935, 64
      %v1020 = vpop.permute.xlu0 %1019
      %1021 = vrot.lane.b32.xlu0 %v936, 64
      %v1022 = vpop.permute.xlu0 %1021
      %1023 = vrot.lane.b32.xlu0 %v937, 64
      %v1024 = vpop.permute.xlu0 %1023
      %1025 = vrot.lane.b32.xlu0 %v938, 64
      %v1026 = vpop.permute.xlu0 %1025
      %1027 = vrot.lane.b32.xlu0 %v939, 64
      %v1028 = vpop.permute.xlu0 %1027
      %1029 = vrot.lane.b32.xlu0 %v940, 64
      %v1030 = vpop.permute.xlu0 %1029
      %1031 = vrot.lane.b32.xlu0 %v941, 64
      %v1032 = vpop.permute.xlu0 %1031
      %1033 = vrot.lane.b32.xlu0 %v942, 64
      %v1034 = vpop.permute.xlu0 %1033
      %1035 = vrot.lane.b32.xlu0 %v943, 64
      %v1036 = vpop.permute.xlu0 %1035
      %1037 = vrot.lane.b32.xlu0 %v944, 64
      %v1038 = vpop.permute.xlu0 %1037
      %1039 = vrot.lane.b32.xlu0 %v945, 64
      %v1040 = vpop.permute.xlu0 %1039
      %1041 = vrot.lane.b32.xlu0 %v946, 64
      %v1042 = vpop.permute.xlu0 %1041
      %vm1075 = vcmask 785920
      %1076 = vst.msk [vmem:[#allocation3] sm:$0xff] %vm1075, %v980
      %1077 = vst.msk [vmem:[#allocation3 + $0x18] sm:$0xff] %vm1075, %v982
      %1078 = vst.msk [vmem:[#allocation3 + $0x30] sm:$0xff] %vm1075, %v984
      %1079 = vst.msk [vmem:[#allocation3 + $0x48] sm:$0xff] %vm1075, %v986
      %1080 = vst.msk [vmem:[#allocation3 + $0x60] sm:$0xff] %vm1075, %v988
      %1081 = vst.msk [vmem:[#allocation3 + $0x78] sm:$0xff] %vm1075, %v990
      %1082 = vst.msk [vmem:[#allocation3 + $0x90] sm:$0xff] %vm1075, %v992
      %1083 = vst.msk [vmem:[#allocation3 + $0xa8] sm:$0xff] %vm1075, %v994
      %1084 = vst.msk [vmem:[#allocation3 + $0xc0] sm:$0xff] %vm1075, %v996
      %1085 = vst.msk [vmem:[#allocation3 + $0xd8] sm:$0xff] %vm1075, %v998
      %1086 = vst.msk [vmem:[#allocation3 + $0xf0] sm:$0xff] %vm1075, %v1000
      %1087 = vst.msk [vmem:[#allocation3 + $0x108] sm:$0xff] %vm1075, %v1002
      %1088 = vst.msk [vmem:[#allocation3 + $0x120] sm:$0xff] %vm1075, %v1004
      %1089 = vst.msk [vmem:[#allocation3 + $0x138] sm:$0xff] %vm1075, %v1006
      %1090 = vst.msk [vmem:[#allocation3 + $0x150] sm:$0xff] %vm1075, %v1008
      %1091 = vst.msk [vmem:[#allocation3 + $0x168] sm:$0xff] %vm1075, %v1010
      %1092 = vst.msk [vmem:[#allocation3 + $0x180] sm:$0xff] %vm1075, %v1012
      %1093 = vst.msk [vmem:[#allocation3 + $0x198] sm:$0xff] %vm1075, %v1014
      %1094 = vst.msk [vmem:[#allocation3 + $0x1b0] sm:$0xff] %vm1075, %v1016
      %1095 = vst.msk [vmem:[#allocation3 + $0x1c8] sm:$0xff] %vm1075, %v1018
      %1096 = vst.msk [vmem:[#allocation3 + $0x1e0] sm:$0xff] %vm1075, %v1020
      %1097 = vst.msk [vmem:[#allocation3 + $0x1f8] sm:$0xff] %vm1075, %v1022
      %1098 = vst.msk [vmem:[#allocation3 + $0x210] sm:$0xff] %vm1075, %v1024
      %1099 = vst.msk [vmem:[#allocation3 + $0x228] sm:$0xff] %vm1075, %v1026
      %1100 = vst.msk [vmem:[#allocation3 + $0x240] sm:$0xff] %vm1075, %v1028
      %1101 = vst.msk [vmem:[#allocation3 + $0x258] sm:$0xff] %vm1075, %v1030
      %1102 = vst.msk [vmem:[#allocation3 + $0x270] sm:$0xff] %vm1075, %v1032
      %1103 = vst.msk [vmem:[#allocation3 + $0x288] sm:$0xff] %vm1075, %v1034
      %1104 = vst.msk [vmem:[#allocation3 + $0x2a0] sm:$0xff] %vm1075, %v1036
      %1105 = vst.msk [vmem:[#allocation3 + $0x2b8] sm:$0xff] %vm1075, %v1038
      %1106 = vst.msk [vmem:[#allocation3 + $0x2d0] sm:$0xff] %vm1075, %v1040
      %1107 = vst.msk [vmem:[#allocation3 + $0x2e8] sm:$0xff] %vm1075, %v1042
      %v1108 = vld [vmem:[%s625] sm:$0xff]
      %v1109 = vld [vmem:[%s625 + $0x8] sm:$0xff]
      %v1110 = vld [vmem:[%s625 + $0x18] sm:$0xff]
      %v1111 = vld [vmem:[%s625 + $0x20] sm:$0xff]
      %v1112 = vld [vmem:[%s625 + $0x30] sm:$0xff]
      %v1113 = vld [vmem:[%s625 + $0x38] sm:$0xff]
      %v1114 = vld [vmem:[%s625 + $0x48] sm:$0xff]
      %v1115 = vld [vmem:[%s625 + $0x50] sm:$0xff]
      %v1116 = vld [vmem:[%s625 + $0x60] sm:$0xff]
      %v1117 = vld [vmem:[%s625 + $0x68] sm:$0xff]
      %v1118 = vld [vmem:[%s625 + $0x78] sm:$0xff]
      %v1119 = vld [vmem:[%s625 + $0x80] sm:$0xff]
      %v1120 = vld [vmem:[%s625 + $0x90] sm:$0xff]
      %v1121 = vld [vmem:[%s625 + $0x98] sm:$0xff]
      %v1122 = vld [vmem:[%s625 + $0xa8] sm:$0xff]
      %v1123 = vld [vmem:[%s625 + $0xb0] sm:$0xff]
      %v1124 = vld [vmem:[%s625 + $0xc0] sm:$0xff]
      %v1125 = vld [vmem:[%s625 + $0xc8] sm:$0xff]
      %v1126 = vld [vmem:[%s625 + $0xd8] sm:$0xff]
      %v1127 = vld [vmem:[%s625 + $0xe0] sm:$0xff]
      %v1128 = vld [vmem:[%s625 + $0xf0] sm:$0xff]
      %v1129 = vld [vmem:[%s625 + $0xf8] sm:$0xff]
      %v1130 = vld [vmem:[%s625 + $0x108] sm:$0xff]
      %v1131 = vld [vmem:[%s625 + $0x110] sm:$0xff]
      %v1132 = vld [vmem:[%s625 + $0x120] sm:$0xff]
      %v1133 = vld [vmem:[%s625 + $0x128] sm:$0xff]
      %v1134 = vld [vmem:[%s625 + $0x138] sm:$0xff]
      %v1135 = vld [vmem:[%s625 + $0x140] sm:$0xff]
      %v1136 = vld [vmem:[%s625 + $0x150] sm:$0xff]
      %v1137 = vld [vmem:[%s625 + $0x158] sm:$0xff]
      %v1138 = vld [vmem:[%s625 + $0x168] sm:$0xff]
      %v1139 = vld [vmem:[%s625 + $0x170] sm:$0xff]
      %1172 = vrot.lane.b32.xlu0 %v1108, 96
      %v1173 = vpop.permute.xlu0 %1172
      %1174 = vrot.lane.b32.xlu0 %v1109, 96
      %v1175 = vpop.permute.xlu0 %1174
      %1176 = vrot.lane.b32.xlu0 %v1110, 96
      %v1177 = vpop.permute.xlu0 %1176
      %1178 = vrot.lane.b32.xlu0 %v1111, 96
      %v1179 = vpop.permute.xlu0 %1178
      %1180 = vrot.lane.b32.xlu0 %v1112, 96
      %v1181 = vpop.permute.xlu0 %1180
      %1182 = vrot.lane.b32.xlu0 %v1113, 96
      %v1183 = vpop.permute.xlu0 %1182
      %1184 = vrot.lane.b32.xlu0 %v1114, 96
      %v1185 = vpop.permute.xlu0 %1184
      %1186 = vrot.lane.b32.xlu0 %v1115, 96
      %v1187 = vpop.permute.xlu0 %1186
      %1188 = vrot.lane.b32.xlu0 %v1116, 96
      %v1189 = vpop.permute.xlu0 %1188
      %1190 = vrot.lane.b32.xlu0 %v1117, 96
      %v1191 = vpop.permute.xlu0 %1190
      %1192 = vrot.lane.b32.xlu0 %v1118, 96
      %v1193 = vpop.permute.xlu0 %1192
      %1194 = vrot.lane.b32.xlu0 %v1119, 96
      %v1195 = vpop.permute.xlu0 %1194
      %1196 = vrot.lane.b32.xlu0 %v1120, 96
      %v1197 = vpop.permute.xlu0 %1196
      %1198 = vrot.lane.b32.xlu0 %v1121, 96
      %v1199 = vpop.permute.xlu0 %1198
      %1200 = vrot.lane.b32.xlu0 %v1122, 96
      %v1201 = vpop.permute.xlu0 %1200
      %1202 = vrot.lane.b32.xlu0 %v1123, 96
      %v1203 = vpop.permute.xlu0 %1202
      %1204 = vrot.lane.b32.xlu0 %v1124, 96
      %v1205 = vpop.permute.xlu0 %1204
      %1206 = vrot.lane.b32.xlu0 %v1125, 96
      %v1207 = vpop.permute.xlu0 %1206
      %1208 = vrot.lane.b32.xlu0 %v1126, 96
      %v1209 = vpop.permute.xlu0 %1208
      %1210 = vrot.lane.b32.xlu0 %v1127, 96
      %v1211 = vpop.permute.xlu0 %1210
      %1212 = vrot.lane.b32.xlu0 %v1128, 96
      %v1213 = vpop.permute.xlu0 %1212
      %1214 = vrot.lane.b32.xlu0 %v1129, 96
      %v1215 = vpop.permute.xlu0 %1214
      %1216 = vrot.lane.b32.xlu0 %v1130, 96
      %v1217 = vpop.permute.xlu0 %1216
      %1218 = vrot.lane.b32.xlu0 %v1131, 96
      %v1219 = vpop.permute.xlu0 %1218
      %1220 = vrot.lane.b32.xlu0 %v1132, 96
      %v1221 = vpop.permute.xlu0 %1220
      %1222 = vrot.lane.b32.xlu0 %v1133, 96
      %v1223 = vpop.permute.xlu0 %1222
      %1224 = vrot.lane.b32.xlu0 %v1134, 96
      %v1225 = vpop.permute.xlu0 %1224
      %1226 = vrot.lane.b32.xlu0 %v1135, 96
      %v1227 = vpop.permute.xlu0 %1226
      %1228 = vrot.lane.b32.xlu0 %v1136, 96
      %v1229 = vpop.permute.xlu0 %1228
      %1230 = vrot.lane.b32.xlu0 %v1137, 96
      %v1231 = vpop.permute.xlu0 %1230
      %1232 = vrot.lane.b32.xlu0 %v1138, 96
      %v1233 = vpop.permute.xlu0 %1232
      %1234 = vrot.lane.b32.xlu0 %v1139, 96
      %v1235 = vpop.permute.xlu0 %1234
      %vm1268 = vcmask 1048320
      %1269 = vst.msk [vmem:[#allocation3] sm:$0xff] %vm1268, %v1173
      %1270 = vst.msk [vmem:[#allocation3 + $0x18] sm:$0xff] %vm1268, %v1175
      %1271 = vst.msk [vmem:[#allocation3 + $0x30] sm:$0xff] %vm1268, %v1177
      %1272 = vst.msk [vmem:[#allocation3 + $0x48] sm:$0xff] %vm1268, %v1179
      %1273 = vst.msk [vmem:[#allocation3 + $0x60] sm:$0xff] %vm1268, %v1181
      %1274 = vst.msk [vmem:[#allocation3 + $0x78] sm:$0xff] %vm1268, %v1183
      %1275 = vst.msk [vmem:[#allocation3 + $0x90] sm:$0xff] %vm1268, %v1185
      %1276 = vst.msk [vmem:[#allocation3 + $0xa8] sm:$0xff] %vm1268, %v1187
      %1277 = vst.msk [vmem:[#allocation3 + $0xc0] sm:$0xff] %vm1268, %v1189
      %1278 = vst.msk [vmem:[#allocation3 + $0xd8] sm:$0xff] %vm1268, %v1191
      %1279 = vst.msk [vmem:[#allocation3 + $0xf0] sm:$0xff] %vm1268, %v1193
      %1280 = vst.msk [vmem:[#allocation3 + $0x108] sm:$0xff] %vm1268, %v1195
      %1281 = vst.msk [vmem:[#allocation3 + $0x120] sm:$0xff] %vm1268, %v1197
      %1282 = vst.msk [vmem:[#allocation3 + $0x138] sm:$0xff] %vm1268, %v1199
      %1283 = vst.msk [vmem:[#allocation3 + $0x150] sm:$0xff] %vm1268, %v1201
      %1284 = vst.msk [vmem:[#allocation3 + $0x168] sm:$0xff] %vm1268, %v1203
      %1285 = vst.msk [vmem:[#allocation3 + $0x180] sm:$0xff] %vm1268, %v1205
      %1286 = vst.msk [vmem:[#allocation3 + $0x198] sm:$0xff] %vm1268, %v1207
      %1287 = vst.msk [vmem:[#allocation3 + $0x1b0] sm:$0xff] %vm1268, %v1209
      %1288 = vst.msk [vmem:[#allocation3 + $0x1c8] sm:$0xff] %vm1268, %v1211
      %1289 = vst.msk [vmem:[#allocation3 + $0x1e0] sm:$0xff] %vm1268, %v1213
      %1290 = vst.msk [vmem:[#allocation3 + $0x1f8] sm:$0xff] %vm1268, %v1215
      %1291 = vst.msk [vmem:[#allocation3 + $0x210] sm:$0xff] %vm1268, %v1217
      %1292 = vst.msk [vmem:[#allocation3 + $0x228] sm:$0xff] %vm1268, %v1219
      %1293 = vst.msk [vmem:[#allocation3 + $0x240] sm:$0xff] %vm1268, %v1221
      %1294 = vst.msk [vmem:[#allocation3 + $0x258] sm:$0xff] %vm1268, %v1223
      %1295 = vst.msk [vmem:[#allocation3 + $0x270] sm:$0xff] %vm1268, %v1225
      %1296 = vst.msk [vmem:[#allocation3 + $0x288] sm:$0xff] %vm1268, %v1227
      %1297 = vst.msk [vmem:[#allocation3 + $0x2a0] sm:$0xff] %vm1268, %v1229
      %1298 = vst.msk [vmem:[#allocation3 + $0x2b8] sm:$0xff] %vm1268, %v1231
      %1299 = vst.msk [vmem:[#allocation3 + $0x2d0] sm:$0xff] %vm1268, %v1233
      %1300 = vst.msk [vmem:[#allocation3 + $0x2e8] sm:$0xff] %vm1268, %v1235
      %v1301 = vld [vmem:[%s625 + $0x1] sm:$0xff]
      %v1302 = vld [vmem:[%s625 + $0x9] sm:$0xff]
      %v1303 = vld [vmem:[%s625 + $0x19] sm:$0xff]
      %v1304 = vld [vmem:[%s625 + $0x21] sm:$0xff]
      %v1305 = vld [vmem:[%s625 + $0x31] sm:$0xff]
      %v1306 = vld [vmem:[%s625 + $0x39] sm:$0xff]
      %v1307 = vld [vmem:[%s625 + $0x49] sm:$0xff]
      %v1308 = vld [vmem:[%s625 + $0x51] sm:$0xff]
      %v1309 = vld [vmem:[%s625 + $0x61] sm:$0xff]
      %v1310 = vld [vmem:[%s625 + $0x69] sm:$0xff]
      %v1311 = vld [vmem:[%s625 + $0x79] sm:$0xff]
      %v1312 = vld [vmem:[%s625 + $0x81] sm:$0xff]
      %v1313 = vld [vmem:[%s625 + $0x91] sm:$0xff]
      %v1314 = vld [vmem:[%s625 + $0x99] sm:$0xff]
      %v1315 = vld [vmem:[%s625 + $0xa9] sm:$0xff]
      %v1316 = vld [vmem:[%s625 + $0xb1] sm:$0xff]
      %v1317 = vld [vmem:[%s625 + $0xc1] sm:$0xff]
      %v1318 = vld [vmem:[%s625 + $0xc9] sm:$0xff]
      %v1319 = vld [vmem:[%s625 + $0xd9] sm:$0xff]
      %v1320 = vld [vmem:[%s625 + $0xe1] sm:$0xff]
      %v1321 = vld [vmem:[%s625 + $0xf1] sm:$0xff]
      %v1322 = vld [vmem:[%s625 + $0xf9] sm:$0xff]
      %v1323 = vld [vmem:[%s625 + $0x109] sm:$0xff]
      %v1324 = vld [vmem:[%s625 + $0x111] sm:$0xff]
      %v1325 = vld [vmem:[%s625 + $0x121] sm:$0xff]
      %v1326 = vld [vmem:[%s625 + $0x129] sm:$0xff]
      %v1327 = vld [vmem:[%s625 + $0x139] sm:$0xff]
      %v1328 = vld [vmem:[%s625 + $0x141] sm:$0xff]
      %v1329 = vld [vmem:[%s625 + $0x151] sm:$0xff]
      %v1330 = vld [vmem:[%s625 + $0x159] sm:$0xff]
      %v1331 = vld [vmem:[%s625 + $0x169] sm:$0xff]
      %v1332 = vld [vmem:[%s625 + $0x171] sm:$0xff]
      %1333 = vst.msk [vmem:[#allocation3 + $0x8] sm:$0xff] %vm459, %v1301
      %1334 = vst.msk [vmem:[#allocation3 + $0x20] sm:$0xff] %vm459, %v1302
      %1335 = vst.msk [vmem:[#allocation3 + $0x38] sm:$0xff] %vm459, %v1303
      %1336 = vst.msk [vmem:[#allocation3 + $0x50] sm:$0xff] %vm459, %v1304
      %1337 = vst.msk [vmem:[#allocation3 + $0x68] sm:$0xff] %vm459, %v1305
      %1338 = vst.msk [vmem:[#allocation3 + $0x80] sm:$0xff] %vm459, %v1306
      %1339 = vst.msk [vmem:[#allocation3 + $0x98] sm:$0xff] %vm459, %v1307
      %1340 = vst.msk [vmem:[#allocation3 + $0xb0] sm:$0xff] %vm459, %v1308
      %1341 = vst.msk [vmem:[#allocation3 + $0xc8] sm:$0xff] %vm459, %v1309
      %1342 = vst.msk [vmem:[#allocation3 + $0xe0] sm:$0xff] %vm459, %v1310
      %1343 = vst.msk [vmem:[#allocation3 + $0xf8] sm:$0xff] %vm459, %v1311
      %1344 = vst.msk [vmem:[#allocation3 + $0x110] sm:$0xff] %vm459, %v1312
      %1345 = vst.msk [vmem:[#allocation3 + $0x128] sm:$0xff] %vm459, %v1313
      %1346 = vst.msk [vmem:[#allocation3 + $0x140] sm:$0xff] %vm459, %v1314
      %1347 = vst.msk [vmem:[#allocation3 + $0x158] sm:$0xff] %vm459, %v1315
      %1348 = vst.msk [vmem:[#allocation3 + $0x170] sm:$0xff] %vm459, %v1316
      %1349 = vst.msk [vmem:[#allocation3 + $0x188] sm:$0xff] %vm459, %v1317
      %1350 = vst.msk [vmem:[#allocation3 + $0x1a0] sm:$0xff] %vm459, %v1318
      %1351 = vst.msk [vmem:[#allocation3 + $0x1b8] sm:$0xff] %vm459, %v1319
      %1352 = vst.msk [vmem:[#allocation3 + $0x1d0] sm:$0xff] %vm459, %v1320
      %1353 = vst.msk [vmem:[#allocation3 + $0x1e8] sm:$0xff] %vm459, %v1321
      %1354 = vst.msk [vmem:[#allocation3 + $0x200] sm:$0xff] %vm459, %v1322
      %1355 = vst.msk [vmem:[#allocation3 + $0x218] sm:$0xff] %vm459, %v1323
      %1356 = vst.msk [vmem:[#allocation3 + $0x230] sm:$0xff] %vm459, %v1324
      %1357 = vst.msk [vmem:[#allocation3 + $0x248] sm:$0xff] %vm459, %v1325
      %1358 = vst.msk [vmem:[#allocation3 + $0x260] sm:$0xff] %vm459, %v1326
      %1359 = vst.msk [vmem:[#allocation3 + $0x278] sm:$0xff] %vm459, %v1327
      %1360 = vst.msk [vmem:[#allocation3 + $0x290] sm:$0xff] %vm459, %v1328
      %1361 = vst.msk [vmem:[#allocation3 + $0x2a8] sm:$0xff] %vm459, %v1329
      %1362 = vst.msk [vmem:[#allocation3 + $0x2c0] sm:$0xff] %vm459, %v1330
      %1363 = vst.msk [vmem:[#allocation3 + $0x2d8] sm:$0xff] %vm459, %v1331
      %1364 = vst.msk [vmem:[#allocation3 + $0x2f0] sm:$0xff] %vm459, %v1332
      %v1365 = vld [vmem:[%s625 + $0x2] sm:$0xff]
      %v1366 = vld [vmem:[%s625 + $0xa] sm:$0xff]
      %v1367 = vld [vmem:[%s625 + $0x1a] sm:$0xff]
      %v1368 = vld [vmem:[%s625 + $0x22] sm:$0xff]
      %v1369 = vld [vmem:[%s625 + $0x32] sm:$0xff]
      %v1370 = vld [vmem:[%s625 + $0x3a] sm:$0xff]
      %v1371 = vld [vmem:[%s625 + $0x4a] sm:$0xff]
      %v1372 = vld [vmem:[%s625 + $0x52] sm:$0xff]
      %v1373 = vld [vmem:[%s625 + $0x62] sm:$0xff]
      %v1374 = vld [vmem:[%s625 + $0x6a] sm:$0xff]
      %v1375 = vld [vmem:[%s625 + $0x7a] sm:$0xff]
      %v1376 = vld [vmem:[%s625 + $0x82] sm:$0xff]
      %v1377 = vld [vmem:[%s625 + $0x92] sm:$0xff]
      %v1378 = vld [vmem:[%s625 + $0x9a] sm:$0xff]
      %v1379 = vld [vmem:[%s625 + $0xaa] sm:$0xff]
      %v1380 = vld [vmem:[%s625 + $0xb2] sm:$0xff]
      %v1381 = vld [vmem:[%s625 + $0xc2] sm:$0xff]
      %v1382 = vld [vmem:[%s625 + $0xca] sm:$0xff]
      %v1383 = vld [vmem:[%s625 + $0xda] sm:$0xff]
      %v1384 = vld [vmem:[%s625 + $0xe2] sm:$0xff]
      %v1385 = vld [vmem:[%s625 + $0xf2] sm:$0xff]
      %v1386 = vld [vmem:[%s625 + $0xfa] sm:$0xff]
      %v1387 = vld [vmem:[%s625 + $0x10a] sm:$0xff]
      %v1388 = vld [vmem:[%s625 + $0x112] sm:$0xff]
      %v1389 = vld [vmem:[%s625 + $0x122] sm:$0xff]
      %v1390 = vld [vmem:[%s625 + $0x12a] sm:$0xff]
      %v1391 = vld [vmem:[%s625 + $0x13a] sm:$0xff]
      %v1392 = vld [vmem:[%s625 + $0x142] sm:$0xff]
      %v1393 = vld [vmem:[%s625 + $0x152] sm:$0xff]
      %v1394 = vld [vmem:[%s625 + $0x15a] sm:$0xff]
      %v1395 = vld [vmem:[%s625 + $0x16a] sm:$0xff]
      %v1396 = vld [vmem:[%s625 + $0x172] sm:$0xff]
      %1429 = vrot.lane.b32.xlu0 %v1365, 32
      %v1430 = vpop.permute.xlu0 %1429
      %1431 = vrot.lane.b32.xlu0 %v1366, 32
      %v1432 = vpop.permute.xlu0 %1431
      %1433 = vrot.lane.b32.xlu0 %v1367, 32
      %v1434 = vpop.permute.xlu0 %1433
      %1435 = vrot.lane.b32.xlu0 %v1368, 32
      %v1436 = vpop.permute.xlu0 %1435
      %1437 = vrot.lane.b32.xlu0 %v1369, 32
      %v1438 = vpop.permute.xlu0 %1437
      %1439 = vrot.lane.b32.xlu0 %v1370, 32
      %v1440 = vpop.permute.xlu0 %1439
      %1441 = vrot.lane.b32.xlu0 %v1371, 32
      %v1442 = vpop.permute.xlu0 %1441
      %1443 = vrot.lane.b32.xlu0 %v1372, 32
      %v1444 = vpop.permute.xlu0 %1443
      %1445 = vrot.lane.b32.xlu0 %v1373, 32
      %v1446 = vpop.permute.xlu0 %1445
      %1447 = vrot.lane.b32.xlu0 %v1374, 32
      %v1448 = vpop.permute.xlu0 %1447
      %1449 = vrot.lane.b32.xlu0 %v1375, 32
      %v1450 = vpop.permute.xlu0 %1449
      %1451 = vrot.lane.b32.xlu0 %v1376, 32
      %v1452 = vpop.permute.xlu0 %1451
      %1453 = vrot.lane.b32.xlu0 %v1377, 32
      %v1454 = vpop.permute.xlu0 %1453
      %1455 = vrot.lane.b32.xlu0 %v1378, 32
      %v1456 = vpop.permute.xlu0 %1455
      %1457 = vrot.lane.b32.xlu0 %v1379, 32
      %v1458 = vpop.permute.xlu0 %1457
      %1459 = vrot.lane.b32.xlu0 %v1380, 32
      %v1460 = vpop.permute.xlu0 %1459
      %1461 = vrot.lane.b32.xlu0 %v1381, 32
      %v1462 = vpop.permute.xlu0 %1461
      %1463 = vrot.lane.b32.xlu0 %v1382, 32
      %v1464 = vpop.permute.xlu0 %1463
      %1465 = vrot.lane.b32.xlu0 %v1383, 32
      %v1466 = vpop.permute.xlu0 %1465
      %1467 = vrot.lane.b32.xlu0 %v1384, 32
      %v1468 = vpop.permute.xlu0 %1467
      %1469 = vrot.lane.b32.xlu0 %v1385, 32
      %v1470 = vpop.permute.xlu0 %1469
      %1471 = vrot.lane.b32.xlu0 %v1386, 32
      %v1472 = vpop.permute.xlu0 %1471
      %1473 = vrot.lane.b32.xlu0 %v1387, 32
      %v1474 = vpop.permute.xlu0 %1473
      %1475 = vrot.lane.b32.xlu0 %v1388, 32
      %v1476 = vpop.permute.xlu0 %1475
      %1477 = vrot.lane.b32.xlu0 %v1389, 32
      %v1478 = vpop.permute.xlu0 %1477
      %1479 = vrot.lane.b32.xlu0 %v1390, 32
      %v1480 = vpop.permute.xlu0 %1479
      %1481 = vrot.lane.b32.xlu0 %v1391, 32
      %v1482 = vpop.permute.xlu0 %1481
      %1483 = vrot.lane.b32.xlu0 %v1392, 32
      %v1484 = vpop.permute.xlu0 %1483
      %1485 = vrot.lane.b32.xlu0 %v1393, 32
      %v1486 = vpop.permute.xlu0 %1485
      %1487 = vrot.lane.b32.xlu0 %v1394, 32
      %v1488 = vpop.permute.xlu0 %1487
      %1489 = vrot.lane.b32.xlu0 %v1395, 32
      %v1490 = vpop.permute.xlu0 %1489
      %1491 = vrot.lane.b32.xlu0 %v1396, 32
      %v1492 = vpop.permute.xlu0 %1491
      %1525 = vst.msk [vmem:[#allocation3 + $0x8] sm:$0xff] %vm882, %v1430
      %1526 = vst.msk [vmem:[#allocation3 + $0x20] sm:$0xff] %vm882, %v1432
      %1527 = vst.msk [vmem:[#allocation3 + $0x38] sm:$0xff] %vm882, %v1434
      %1528 = vst.msk [vmem:[#allocation3 + $0x50] sm:$0xff] %vm882, %v1436
      %1529 = vst.msk [vmem:[#allocation3 + $0x68] sm:$0xff] %vm882, %v1438
      %1530 = vst.msk [vmem:[#allocation3 + $0x80] sm:$0xff] %vm882, %v1440
      %1531 = vst.msk [vmem:[#allocation3 + $0x98] sm:$0xff] %vm882, %v1442
      %1532 = vst.msk [vmem:[#allocation3 + $0xb0] sm:$0xff] %vm882, %v1444
      %1533 = vst.msk [vmem:[#allocation3 + $0xc8] sm:$0xff] %vm882, %v1446
      %1534 = vst.msk [vmem:[#allocation3 + $0xe0] sm:$0xff] %vm882, %v1448
      %1535 = vst.msk [vmem:[#allocation3 + $0xf8] sm:$0xff] %vm882, %v1450
      %1536 = vst.msk [vmem:[#allocation3 + $0x110] sm:$0xff] %vm882, %v1452
      %1537 = vst.msk [vmem:[#allocation3 + $0x128] sm:$0xff] %vm882, %v1454
      %1538 = vst.msk [vmem:[#allocation3 + $0x140] sm:$0xff] %vm882, %v1456
      %1539 = vst.msk [vmem:[#allocation3 + $0x158] sm:$0xff] %vm882, %v1458
      %1540 = vst.msk [vmem:[#allocation3 + $0x170] sm:$0xff] %vm882, %v1460
      %1541 = vst.msk [vmem:[#allocation3 + $0x188] sm:$0xff] %vm882, %v1462
      %1542 = vst.msk [vmem:[#allocation3 + $0x1a0] sm:$0xff] %vm882, %v1464
      %1543 = vst.msk [vmem:[#allocation3 + $0x1b8] sm:$0xff] %vm882, %v1466
      %1544 = vst.msk [vmem:[#allocation3 + $0x1d0] sm:$0xff] %vm882, %v1468
      %1545 = vst.msk [vmem:[#allocation3 + $0x1e8] sm:$0xff] %vm882, %v1470
      %1546 = vst.msk [vmem:[#allocation3 + $0x200] sm:$0xff] %vm882, %v1472
      %1547 = vst.msk [vmem:[#allocation3 + $0x218] sm:$0xff] %vm882, %v1474
      %1548 = vst.msk [vmem:[#allocation3 + $0x230] sm:$0xff] %vm882, %v1476
      %1549 = vst.msk [vmem:[#allocation3 + $0x248] sm:$0xff] %vm882, %v1478
      %1550 = vst.msk [vmem:[#allocation3 + $0x260] sm:$0xff] %vm882, %v1480
      %1551 = vst.msk [vmem:[#allocation3 + $0x278] sm:$0xff] %vm882, %v1482
      %1552 = vst.msk [vmem:[#allocation3 + $0x290] sm:$0xff] %vm882, %v1484
      %1553 = vst.msk [vmem:[#allocation3 + $0x2a8] sm:$0xff] %vm882, %v1486
      %1554 = vst.msk [vmem:[#allocation3 + $0x2c0] sm:$0xff] %vm882, %v1488
      %1555 = vst.msk [vmem:[#allocation3 + $0x2d8] sm:$0xff] %vm882, %v1490
      %1556 = vst.msk [vmem:[#allocation3 + $0x2f0] sm:$0xff] %vm882, %v1492
      %s1557 = scalar_lea.vmem [#allocation2], 48
      %v1558 = vld [vmem:[%s1557] sm:$0xff]
      %v1559 = vld [vmem:[%s1557 + $0x8] sm:$0xff]
      %v1560 = vld [vmem:[%s1557 + $0x18] sm:$0xff]
      %v1561 = vld [vmem:[%s1557 + $0x20] sm:$0xff]
      %v1562 = vld [vmem:[%s1557 + $0x30] sm:$0xff]
      %v1563 = vld [vmem:[%s1557 + $0x38] sm:$0xff]
      %v1564 = vld [vmem:[%s1557 + $0x48] sm:$0xff]
      %v1565 = vld [vmem:[%s1557 + $0x50] sm:$0xff]
      %v1566 = vld [vmem:[%s1557 + $0x60] sm:$0xff]
      %v1567 = vld [vmem:[%s1557 + $0x68] sm:$0xff]
      %v1568 = vld [vmem:[%s1557 + $0x78] sm:$0xff]
      %v1569 = vld [vmem:[%s1557 + $0x80] sm:$0xff]
      %v1570 = vld [vmem:[%s1557 + $0x90] sm:$0xff]
      %v1571 = vld [vmem:[%s1557 + $0x98] sm:$0xff]
      %v1572 = vld [vmem:[%s1557 + $0xa8] sm:$0xff]
      %v1573 = vld [vmem:[%s1557 + $0xb0] sm:$0xff]
      %v1574 = vld [vmem:[%s1557 + $0xc0] sm:$0xff]
      %v1575 = vld [vmem:[%s1557 + $0xc8] sm:$0xff]
      %v1576 = vld [vmem:[%s1557 + $0xd8] sm:$0xff]
      %v1577 = vld [vmem:[%s1557 + $0xe0] sm:$0xff]
      %v1578 = vld [vmem:[%s1557 + $0xf0] sm:$0xff]
      %v1579 = vld [vmem:[%s1557 + $0xf8] sm:$0xff]
      %v1580 = vld [vmem:[%s1557 + $0x108] sm:$0xff]
      %v1581 = vld [vmem:[%s1557 + $0x110] sm:$0xff]
      %v1582 = vld [vmem:[%s1557 + $0x120] sm:$0xff]
      %v1583 = vld [vmem:[%s1557 + $0x128] sm:$0xff]
      %v1584 = vld [vmem:[%s1557 + $0x138] sm:$0xff]
      %v1585 = vld [vmem:[%s1557 + $0x140] sm:$0xff]
      %v1586 = vld [vmem:[%s1557 + $0x150] sm:$0xff]
      %v1587 = vld [vmem:[%s1557 + $0x158] sm:$0xff]
      %v1588 = vld [vmem:[%s1557 + $0x168] sm:$0xff]
      %v1589 = vld [vmem:[%s1557 + $0x170] sm:$0xff]
      %1622 = vrot.lane.b32.xlu0 %v1558, 64
      %v1623 = vpop.permute.xlu0 %1622
      %1624 = vrot.lane.b32.xlu0 %v1559, 64
      %v1625 = vpop.permute.xlu0 %1624
      %1626 = vrot.lane.b32.xlu0 %v1560, 64
      %v1627 = vpop.permute.xlu0 %1626
      %1628 = vrot.lane.b32.xlu0 %v1561, 64
      %v1629 = vpop.permute.xlu0 %1628
      %1630 = vrot.lane.b32.xlu0 %v1562, 64
      %v1631 = vpop.permute.xlu0 %1630
      %1632 = vrot.lane.b32.xlu0 %v1563, 64
      %v1633 = vpop.permute.xlu0 %1632
      %1634 = vrot.lane.b32.xlu0 %v1564, 64
      %v1635 = vpop.permute.xlu0 %1634
      %1636 = vrot.lane.b32.xlu0 %v1565, 64
      %v1637 = vpop.permute.xlu0 %1636
      %1638 = vrot.lane.b32.xlu0 %v1566, 64
      %v1639 = vpop.permute.xlu0 %1638
      %1640 = vrot.lane.b32.xlu0 %v1567, 64
      %v1641 = vpop.permute.xlu0 %1640
      %1642 = vrot.lane.b32.xlu0 %v1568, 64
      %v1643 = vpop.permute.xlu0 %1642
      %1644 = vrot.lane.b32.xlu0 %v1569, 64
      %v1645 = vpop.permute.xlu0 %1644
      %1646 = vrot.lane.b32.xlu0 %v1570, 64
      %v1647 = vpop.permute.xlu0 %1646
      %1648 = vrot.lane.b32.xlu0 %v1571, 64
      %v1649 = vpop.permute.xlu0 %1648
      %1650 = vrot.lane.b32.xlu0 %v1572, 64
      %v1651 = vpop.permute.xlu0 %1650
      %1652 = vrot.lane.b32.xlu0 %v1573, 64
      %v1653 = vpop.permute.xlu0 %1652
      %1654 = vrot.lane.b32.xlu0 %v1574, 64
      %v1655 = vpop.permute.xlu0 %1654
      %1656 = vrot.lane.b32.xlu0 %v1575, 64
      %v1657 = vpop.permute.xlu0 %1656
      %1658 = vrot.lane.b32.xlu0 %v1576, 64
      %v1659 = vpop.permute.xlu0 %1658
      %1660 = vrot.lane.b32.xlu0 %v1577, 64
      %v1661 = vpop.permute.xlu0 %1660
      %1662 = vrot.lane.b32.xlu0 %v1578, 64
      %v1663 = vpop.permute.xlu0 %1662
      %1664 = vrot.lane.b32.xlu0 %v1579, 64
      %v1665 = vpop.permute.xlu0 %1664
      %1666 = vrot.lane.b32.xlu0 %v1580, 64
      %v1667 = vpop.permute.xlu0 %1666
      %1668 = vrot.lane.b32.xlu0 %v1581, 64
      %v1669 = vpop.permute.xlu0 %1668
      %1670 = vrot.lane.b32.xlu0 %v1582, 64
      %v1671 = vpop.permute.xlu0 %1670
      %1672 = vrot.lane.b32.xlu0 %v1583, 64
      %v1673 = vpop.permute.xlu0 %1672
      %1674 = vrot.lane.b32.xlu0 %v1584, 64
      %v1675 = vpop.permute.xlu0 %1674
      %1676 = vrot.lane.b32.xlu0 %v1585, 64
      %v1677 = vpop.permute.xlu0 %1676
      %1678 = vrot.lane.b32.xlu0 %v1586, 64
      %v1679 = vpop.permute.xlu0 %1678
      %1680 = vrot.lane.b32.xlu0 %v1587, 64
      %v1681 = vpop.permute.xlu0 %1680
      %1682 = vrot.lane.b32.xlu0 %v1588, 64
      %v1683 = vpop.permute.xlu0 %1682
      %1684 = vrot.lane.b32.xlu0 %v1589, 64
      %v1685 = vpop.permute.xlu0 %1684
      %1718 = vst.msk [vmem:[#allocation3 + $0x8] sm:$0xff] %vm1075, %v1623
      %1719 = vst.msk [vmem:[#allocation3 + $0x20] sm:$0xff] %vm1075, %v1625
      %1720 = vst.msk [vmem:[#allocation3 + $0x38] sm:$0xff] %vm1075, %v1627
      %1721 = vst.msk [vmem:[#allocation3 + $0x50] sm:$0xff] %vm1075, %v1629
      %1722 = vst.msk [vmem:[#allocation3 + $0x68] sm:$0xff] %vm1075, %v1631
      %1723 = vst.msk [vmem:[#allocation3 + $0x80] sm:$0xff] %vm1075, %v1633
      %1724 = vst.msk [vmem:[#allocation3 + $0x98] sm:$0xff] %vm1075, %v1635
      %1725 = vst.msk [vmem:[#allocation3 + $0xb0] sm:$0xff] %vm1075, %v1637
      %1726 = vst.msk [vmem:[#allocation3 + $0xc8] sm:$0xff] %vm1075, %v1639
      %1727 = vst.msk [vmem:[#allocation3 + $0xe0] sm:$0xff] %vm1075, %v1641
      %1728 = vst.msk [vmem:[#allocation3 + $0xf8] sm:$0xff] %vm1075, %v1643
      %1729 = vst.msk [vmem:[#allocation3 + $0x110] sm:$0xff] %vm1075, %v1645
      %1730 = vst.msk [vmem:[#allocation3 + $0x128] sm:$0xff] %vm1075, %v1647
      %1731 = vst.msk [vmem:[#allocation3 + $0x140] sm:$0xff] %vm1075, %v1649
      %1732 = vst.msk [vmem:[#allocation3 + $0x158] sm:$0xff] %vm1075, %v1651
      %1733 = vst.msk [vmem:[#allocation3 + $0x170] sm:$0xff] %vm1075, %v1653
      %1734 = vst.msk [vmem:[#allocation3 + $0x188] sm:$0xff] %vm1075, %v1655
      %1735 = vst.msk [vmem:[#allocation3 + $0x1a0] sm:$0xff] %vm1075, %v1657
      %1736 = vst.msk [vmem:[#allocation3 + $0x1b8] sm:$0xff] %vm1075, %v1659
      %1737 = vst.msk [vmem:[#allocation3 + $0x1d0] sm:$0xff] %vm1075, %v1661
      %1738 = vst.msk [vmem:[#allocation3 + $0x1e8] sm:$0xff] %vm1075, %v1663
      %1739 = vst.msk [vmem:[#allocation3 + $0x200] sm:$0xff] %vm1075, %v1665
      %1740 = vst.msk [vmem:[#allocation3 + $0x218] sm:$0xff] %vm1075, %v1667
      %1741 = vst.msk [vmem:[#allocation3 + $0x230] sm:$0xff] %vm1075, %v1669
      %1742 = vst.msk [vmem:[#allocation3 + $0x248] sm:$0xff] %vm1075, %v1671
      %1743 = vst.msk [vmem:[#allocation3 + $0x260] sm:$0xff] %vm1075, %v1673
      %1744 = vst.msk [vmem:[#allocation3 + $0x278] sm:$0xff] %vm1075, %v1675
      %1745 = vst.msk [vmem:[#allocation3 + $0x290] sm:$0xff] %vm1075, %v1677
      %1746 = vst.msk [vmem:[#allocation3 + $0x2a8] sm:$0xff] %vm1075, %v1679
      %1747 = vst.msk [vmem:[#allocation3 + $0x2c0] sm:$0xff] %vm1075, %v1681
      %1748 = vst.msk [vmem:[#allocation3 + $0x2d8] sm:$0xff] %vm1075, %v1683
      %1749 = vst.msk [vmem:[#allocation3 + $0x2f0] sm:$0xff] %vm1075, %v1685
      %v1750 = vld [vmem:[%s1557 + $0x1] sm:$0xff]
      %v1751 = vld [vmem:[%s1557 + $0x9] sm:$0xff]
      %v1752 = vld [vmem:[%s1557 + $0x19] sm:$0xff]
      %v1753 = vld [vmem:[%s1557 + $0x21] sm:$0xff]
      %v1754 = vld [vmem:[%s1557 + $0x31] sm:$0xff]
      %v1755 = vld [vmem:[%s1557 + $0x39] sm:$0xff]
      %v1756 = vld [vmem:[%s1557 + $0x49] sm:$0xff]
      %v1757 = vld [vmem:[%s1557 + $0x51] sm:$0xff]
      %v1758 = vld [vmem:[%s1557 + $0x61] sm:$0xff]
      %v1759 = vld [vmem:[%s1557 + $0x69] sm:$0xff]
      %v1760 = vld [vmem:[%s1557 + $0x79] sm:$0xff]
      %v1761 = vld [vmem:[%s1557 + $0x81] sm:$0xff]
      %v1762 = vld [vmem:[%s1557 + $0x91] sm:$0xff]
      %v1763 = vld [vmem:[%s1557 + $0x99] sm:$0xff]
      %v1764 = vld [vmem:[%s1557 + $0xa9] sm:$0xff]
      %v1765 = vld [vmem:[%s1557 + $0xb1] sm:$0xff]
      %v1766 = vld [vmem:[%s1557 + $0xc1] sm:$0xff]
      %v1767 = vld [vmem:[%s1557 + $0xc9] sm:$0xff]
      %v1768 = vld [vmem:[%s1557 + $0xd9] sm:$0xff]
      %v1769 = vld [vmem:[%s1557 + $0xe1] sm:$0xff]
      %v1770 = vld [vmem:[%s1557 + $0xf1] sm:$0xff]
      %v1771 = vld [vmem:[%s1557 + $0xf9] sm:$0xff]
      %v1772 = vld [vmem:[%s1557 + $0x109] sm:$0xff]
      %v1773 = vld [vmem:[%s1557 + $0x111] sm:$0xff]
      %v1774 = vld [vmem:[%s1557 + $0x121] sm:$0xff]
      %v1775 = vld [vmem:[%s1557 + $0x129] sm:$0xff]
      %v1776 = vld [vmem:[%s1557 + $0x139] sm:$0xff]
      %v1777 = vld [vmem:[%s1557 + $0x141] sm:$0xff]
      %v1778 = vld [vmem:[%s1557 + $0x151] sm:$0xff]
      %v1779 = vld [vmem:[%s1557 + $0x159] sm:$0xff]
      %v1780 = vld [vmem:[%s1557 + $0x169] sm:$0xff]
      %v1781 = vld [vmem:[%s1557 + $0x171] sm:$0xff]
      %1814 = vrot.lane.b32.xlu0 %v1750, 96
      %v1815 = vpop.permute.xlu0 %1814
      %1816 = vrot.lane.b32.xlu0 %v1751, 96
      %v1817 = vpop.permute.xlu0 %1816
      %1818 = vrot.lane.b32.xlu0 %v1752, 96
      %v1819 = vpop.permute.xlu0 %1818
      %1820 = vrot.lane.b32.xlu0 %v1753, 96
      %v1821 = vpop.permute.xlu0 %1820
      %1822 = vrot.lane.b32.xlu0 %v1754, 96
      %v1823 = vpop.permute.xlu0 %1822
      %1824 = vrot.lane.b32.xlu0 %v1755, 96
      %v1825 = vpop.permute.xlu0 %1824
      %1826 = vrot.lane.b32.xlu0 %v1756, 96
      %v1827 = vpop.permute.xlu0 %1826
      %1828 = vrot.lane.b32.xlu0 %v1757, 96
      %v1829 = vpop.permute.xlu0 %1828
      %1830 = vrot.lane.b32.xlu0 %v1758, 96
      %v1831 = vpop.permute.xlu0 %1830
      %1832 = vrot.lane.b32.xlu0 %v1759, 96
      %v1833 = vpop.permute.xlu0 %1832
      %1834 = vrot.lane.b32.xlu0 %v1760, 96
      %v1835 = vpop.permute.xlu0 %1834
      %1836 = vrot.lane.b32.xlu0 %v1761, 96
      %v1837 = vpop.permute.xlu0 %1836
      %1838 = vrot.lane.b32.xlu0 %v1762, 96
      %v1839 = vpop.permute.xlu0 %1838
      %1840 = vrot.lane.b32.xlu0 %v1763, 96
      %v1841 = vpop.permute.xlu0 %1840
      %1842 = vrot.lane.b32.xlu0 %v1764, 96
      %v1843 = vpop.permute.xlu0 %1842
      %1844 = vrot.lane.b32.xlu0 %v1765, 96
      %v1845 = vpop.permute.xlu0 %1844
      %1846 = vrot.lane.b32.xlu0 %v1766, 96
      %v1847 = vpop.permute.xlu0 %1846
      %1848 = vrot.lane.b32.xlu0 %v1767, 96
      %v1849 = vpop.permute.xlu0 %1848
      %1850 = vrot.lane.b32.xlu0 %v1768, 96
      %v1851 = vpop.permute.xlu0 %1850
      %1852 = vrot.lane.b32.xlu0 %v1769, 96
      %v1853 = vpop.permute.xlu0 %1852
      %1854 = vrot.lane.b32.xlu0 %v1770, 96
      %v1855 = vpop.permute.xlu0 %1854
      %1856 = vrot.lane.b32.xlu0 %v1771, 96
      %v1857 = vpop.permute.xlu0 %1856
      %1858 = vrot.lane.b32.xlu0 %v1772, 96
      %v1859 = vpop.permute.xlu0 %1858
      %1860 = vrot.lane.b32.xlu0 %v1773, 96
      %v1861 = vpop.permute.xlu0 %1860
      %1862 = vrot.lane.b32.xlu0 %v1774, 96
      %v1863 = vpop.permute.xlu0 %1862
      %1864 = vrot.lane.b32.xlu0 %v1775, 96
      %v1865 = vpop.permute.xlu0 %1864
      %1866 = vrot.lane.b32.xlu0 %v1776, 96
      %v1867 = vpop.permute.xlu0 %1866
      %1868 = vrot.lane.b32.xlu0 %v1777, 96
      %v1869 = vpop.permute.xlu0 %1868
      %1870 = vrot.lane.b32.xlu0 %v1778, 96
      %v1871 = vpop.permute.xlu0 %1870
      %1872 = vrot.lane.b32.xlu0 %v1779, 96
      %v1873 = vpop.permute.xlu0 %1872
      %1874 = vrot.lane.b32.xlu0 %v1780, 96
      %v1875 = vpop.permute.xlu0 %1874
      %1876 = vrot.lane.b32.xlu0 %v1781, 96
      %v1877 = vpop.permute.xlu0 %1876
      %1910 = vst.msk [vmem:[#allocation3 + $0x8] sm:$0xff] %vm1268, %v1815
      %1911 = vst.msk [vmem:[#allocation3 + $0x20] sm:$0xff] %vm1268, %v1817
      %1912 = vst.msk [vmem:[#allocation3 + $0x38] sm:$0xff] %vm1268, %v1819
      %1913 = vst.msk [vmem:[#allocation3 + $0x50] sm:$0xff] %vm1268, %v1821
      %1914 = vst.msk [vmem:[#allocation3 + $0x68] sm:$0xff] %vm1268, %v1823
      %1915 = vst.msk [vmem:[#allocation3 + $0x80] sm:$0xff] %vm1268, %v1825
      %1916 = vst.msk [vmem:[#allocation3 + $0x98] sm:$0xff] %vm1268, %v1827
      %1917 = vst.msk [vmem:[#allocation3 + $0xb0] sm:$0xff] %vm1268, %v1829
      %1918 = vst.msk [vmem:[#allocation3 + $0xc8] sm:$0xff] %vm1268, %v1831
      %1919 = vst.msk [vmem:[#allocation3 + $0xe0] sm:$0xff] %vm1268, %v1833
      %1920 = vst.msk [vmem:[#allocation3 + $0xf8] sm:$0xff] %vm1268, %v1835
      %1921 = vst.msk [vmem:[#allocation3 + $0x110] sm:$0xff] %vm1268, %v1837
      %1922 = vst.msk [vmem:[#allocation3 + $0x128] sm:$0xff] %vm1268, %v1839
      %1923 = vst.msk [vmem:[#allocation3 + $0x140] sm:$0xff] %vm1268, %v1841
      %1924 = vst.msk [vmem:[#allocation3 + $0x158] sm:$0xff] %vm1268, %v1843
      %1925 = vst.msk [vmem:[#allocation3 + $0x170] sm:$0xff] %vm1268, %v1845
      %1926 = vst.msk [vmem:[#allocation3 + $0x188] sm:$0xff] %vm1268, %v1847
      %1927 = vst.msk [vmem:[#allocation3 + $0x1a0] sm:$0xff] %vm1268, %v1849
      %1928 = vst.msk [vmem:[#allocation3 + $0x1b8] sm:$0xff] %vm1268, %v1851
      %1929 = vst.msk [vmem:[#allocation3 + $0x1d0] sm:$0xff] %vm1268, %v1853
      %1930 = vst.msk [vmem:[#allocation3 + $0x1e8] sm:$0xff] %vm1268, %v1855
      %1931 = vst.msk [vmem:[#allocation3 + $0x200] sm:$0xff] %vm1268, %v1857
      %1932 = vst.msk [vmem:[#allocation3 + $0x218] sm:$0xff] %vm1268, %v1859
      %1933 = vst.msk [vmem:[#allocation3 + $0x230] sm:$0xff] %vm1268, %v1861
      %1934 = vst.msk [vmem:[#allocation3 + $0x248] sm:$0xff] %vm1268, %v1863
      %1935 = vst.msk [vmem:[#allocation3 + $0x260] sm:$0xff] %vm1268, %v1865
      %1936 = vst.msk [vmem:[#allocation3 + $0x278] sm:$0xff] %vm1268, %v1867
      %1937 = vst.msk [vmem:[#allocation3 + $0x290] sm:$0xff] %vm1268, %v1869
      %1938 = vst.msk [vmem:[#allocation3 + $0x2a8] sm:$0xff] %vm1268, %v1871
      %1939 = vst.msk [vmem:[#allocation3 + $0x2c0] sm:$0xff] %vm1268, %v1873
      %1940 = vst.msk [vmem:[#allocation3 + $0x2d8] sm:$0xff] %vm1268, %v1875
      %1941 = vst.msk [vmem:[#allocation3 + $0x2f0] sm:$0xff] %vm1268, %v1877
      %v1942 = vld [vmem:[%s1557 + $0x2] sm:$0xff]
      %v1943 = vld [vmem:[%s1557 + $0xa] sm:$0xff]
      %v1944 = vld [vmem:[%s1557 + $0x1a] sm:$0xff]
      %v1945 = vld [vmem:[%s1557 + $0x22] sm:$0xff]
      %v1946 = vld [vmem:[%s1557 + $0x32] sm:$0xff]
      %v1947 = vld [vmem:[%s1557 + $0x3a] sm:$0xff]
      %v1948 = vld [vmem:[%s1557 + $0x4a] sm:$0xff]
      %v1949 = vld [vmem:[%s1557 + $0x52] sm:$0xff]
      %v1950 = vld [vmem:[%s1557 + $0x62] sm:$0xff]
      %v1951 = vld [vmem:[%s1557 + $0x6a] sm:$0xff]
      %v1952 = vld [vmem:[%s1557 + $0x7a] sm:$0xff]
      %v1953 = vld [vmem:[%s1557 + $0x82] sm:$0xff]
      %v1954 = vld [vmem:[%s1557 + $0x92] sm:$0xff]
      %v1955 = vld [vmem:[%s1557 + $0x9a] sm:$0xff]
      %v1956 = vld [vmem:[%s1557 + $0xaa] sm:$0xff]
      %v1957 = vld [vmem:[%s1557 + $0xb2] sm:$0xff]
      %v1958 = vld [vmem:[%s1557 + $0xc2] sm:$0xff]
      %v1959 = vld [vmem:[%s1557 + $0xca] sm:$0xff]
      %v1960 = vld [vmem:[%s1557 + $0xda] sm:$0xff]
      %v1961 = vld [vmem:[%s1557 + $0xe2] sm:$0xff]
      %v1962 = vld [vmem:[%s1557 + $0xf2] sm:$0xff]
      %v1963 = vld [vmem:[%s1557 + $0xfa] sm:$0xff]
      %v1964 = vld [vmem:[%s1557 + $0x10a] sm:$0xff]
      %v1965 = vld [vmem:[%s1557 + $0x112] sm:$0xff]
      %v1966 = vld [vmem:[%s1557 + $0x122] sm:$0xff]
      %v1967 = vld [vmem:[%s1557 + $0x12a] sm:$0xff]
      %v1968 = vld [vmem:[%s1557 + $0x13a] sm:$0xff]
      %v1969 = vld [vmem:[%s1557 + $0x142] sm:$0xff]
      %v1970 = vld [vmem:[%s1557 + $0x152] sm:$0xff]
      %v1971 = vld [vmem:[%s1557 + $0x15a] sm:$0xff]
      %v1972 = vld [vmem:[%s1557 + $0x16a] sm:$0xff]
      %v1973 = vld [vmem:[%s1557 + $0x172] sm:$0xff]
      %1974 = vst.msk [vmem:[#allocation3 + $0x10] sm:$0xff] %vm459, %v1942
      %1975 = vst.msk [vmem:[#allocation3 + $0x28] sm:$0xff] %vm459, %v1943
      %1976 = vst.msk [vmem:[#allocation3 + $0x40] sm:$0xff] %vm459, %v1944
      %1977 = vst.msk [vmem:[#allocation3 + $0x58] sm:$0xff] %vm459, %v1945
      %1978 = vst.msk [vmem:[#allocation3 + $0x70] sm:$0xff] %vm459, %v1946
      %1979 = vst.msk [vmem:[#allocation3 + $0x88] sm:$0xff] %vm459, %v1947
      %1980 = vst.msk [vmem:[#allocation3 + $0xa0] sm:$0xff] %vm459, %v1948
      %1981 = vst.msk [vmem:[#allocation3 + $0xb8] sm:$0xff] %vm459, %v1949
      %1982 = vst.msk [vmem:[#allocation3 + $0xd0] sm:$0xff] %vm459, %v1950
      %1983 = vst.msk [vmem:[#allocation3 + $0xe8] sm:$0xff] %vm459, %v1951
      %1984 = vst.msk [vmem:[#allocation3 + $0x100] sm:$0xff] %vm459, %v1952
      %1985 = vst.msk [vmem:[#allocation3 + $0x118] sm:$0xff] %vm459, %v1953
      %1986 = vst.msk [vmem:[#allocation3 + $0x130] sm:$0xff] %vm459, %v1954
      %1987 = vst.msk [vmem:[#allocation3 + $0x148] sm:$0xff] %vm459, %v1955
      %1988 = vst.msk [vmem:[#allocation3 + $0x160] sm:$0xff] %vm459, %v1956
      %1989 = vst.msk [vmem:[#allocation3 + $0x178] sm:$0xff] %vm459, %v1957
      %1990 = vst.msk [vmem:[#allocation3 + $0x190] sm:$0xff] %vm459, %v1958
      %1991 = vst.msk [vmem:[#allocation3 + $0x1a8] sm:$0xff] %vm459, %v1959
      %1992 = vst.msk [vmem:[#allocation3 + $0x1c0] sm:$0xff] %vm459, %v1960
      %1993 = vst.msk [vmem:[#allocation3 + $0x1d8] sm:$0xff] %vm459, %v1961
      %1994 = vst.msk [vmem:[#allocation3 + $0x1f0] sm:$0xff] %vm459, %v1962
      %1995 = vst.msk [vmem:[#allocation3 + $0x208] sm:$0xff] %vm459, %v1963
      %1996 = vst.msk [vmem:[#allocation3 + $0x220] sm:$0xff] %vm459, %v1964
      %1997 = vst.msk [vmem:[#allocation3 + $0x238] sm:$0xff] %vm459, %v1965
      %1998 = vst.msk [vmem:[#allocation3 + $0x250] sm:$0xff] %vm459, %v1966
      %1999 = vst.msk [vmem:[#allocation3 + $0x268] sm:$0xff] %vm459, %v1967
      %2000 = vst.msk [vmem:[#allocation3 + $0x280] sm:$0xff] %vm459, %v1968
      %2001 = vst.msk [vmem:[#allocation3 + $0x298] sm:$0xff] %vm459, %v1969
      %2002 = vst.msk [vmem:[#allocation3 + $0x2b0] sm:$0xff] %vm459, %v1970
      %2003 = vst.msk [vmem:[#allocation3 + $0x2c8] sm:$0xff] %vm459, %v1971
      %2004 = vst.msk [vmem:[#allocation3 + $0x2e0] sm:$0xff] %vm459, %v1972
      %2005 = vst.msk [vmem:[#allocation3 + $0x2f8] sm:$0xff] %vm459, %v1973
      %v2006 = vld [vmem:[#allocation3] sm:$0xff]
      %v2007 = vld [vmem:[#allocation3 + $0x8] sm:$0xff]
      %v2008 = vld [vmem:[#allocation3 + $0x10] sm:$0xff]
      %v2009 = vld [vmem:[#allocation3 + $0x18] sm:$0xff]
      %v2010 = vld [vmem:[#allocation3 + $0x20] sm:$0xff]
      %v2011 = vld [vmem:[#allocation3 + $0x28] sm:$0xff]
      %v2012 = vld [vmem:[#allocation3 + $0x30] sm:$0xff]
      %v2013 = vld [vmem:[#allocation3 + $0x38] sm:$0xff]
      %v2014 = vld [vmem:[#allocation3 + $0x40] sm:$0xff]
      %v2015 = vld [vmem:[#allocation3 + $0x48] sm:$0xff]
      %v2016 = vld [vmem:[#allocation3 + $0x50] sm:$0xff]
      %v2017 = vld [vmem:[#allocation3 + $0x58] sm:$0xff]
      %v2018 = vld [vmem:[#allocation3 + $0x60] sm:$0xff]
      %v2019 = vld [vmem:[#allocation3 + $0x68] sm:$0xff]
      %v2020 = vld [vmem:[#allocation3 + $0x70] sm:$0xff]
      %v2021 = vld [vmem:[#allocation3 + $0x78] sm:$0xff]
      %v2022 = vld [vmem:[#allocation3 + $0x80] sm:$0xff]
      %v2023 = vld [vmem:[#allocation3 + $0x88] sm:$0xff]
      %v2024 = vld [vmem:[#allocation3 + $0x90] sm:$0xff]
      %v2025 = vld [vmem:[#allocation3 + $0x98] sm:$0xff]
      %v2026 = vld [vmem:[#allocation3 + $0xa0] sm:$0xff]
      %v2027 = vld [vmem:[#allocation3 + $0xa8] sm:$0xff]
      %v2028 = vld [vmem:[#allocation3 + $0xb0] sm:$0xff]
      %v2029 = vld [vmem:[#allocation3 + $0xb8] sm:$0xff]
      %v2030 = vld [vmem:[#allocation3 + $0xc0] sm:$0xff]
      %v2031 = vld [vmem:[#allocation3 + $0xc8] sm:$0xff]
      %v2032 = vld [vmem:[#allocation3 + $0xd0] sm:$0xff]
      %v2033 = vld [vmem:[#allocation3 + $0xd8] sm:$0xff]
      %v2034 = vld [vmem:[#allocation3 + $0xe0] sm:$0xff]
      %v2035 = vld [vmem:[#allocation3 + $0xe8] sm:$0xff]
      %v2036 = vld [vmem:[#allocation3 + $0xf0] sm:$0xff]
      %v2037 = vld [vmem:[#allocation3 + $0xf8] sm:$0xff]
      %v2038 = vld [vmem:[#allocation3 + $0x100] sm:$0xff]
      %v2039 = vld [vmem:[#allocation3 + $0x108] sm:$0xff]
      %v2040 = vld [vmem:[#allocation3 + $0x110] sm:$0xff]
      %v2041 = vld [vmem:[#allocation3 + $0x118] sm:$0xff]
      %v2042 = vld [vmem:[#allocation3 + $0x120] sm:$0xff]
      %v2043 = vld [vmem:[#allocation3 + $0x128] sm:$0xff]
      %v2044 = vld [vmem:[#allocation3 + $0x130] sm:$0xff]
      %v2045 = vld [vmem:[#allocation3 + $0x138] sm:$0xff]
      %v2046 = vld [vmem:[#allocation3 + $0x140] sm:$0xff]
      %v2047 = vld [vmem:[#allocation3 + $0x148] sm:$0xff]
      %v2048 = vld [vmem:[#allocation3 + $0x150] sm:$0xff]
      %v2049 = vld [vmem:[#allocation3 + $0x158] sm:$0xff]
      %v2050 = vld [vmem:[#allocation3 + $0x160] sm:$0xff]
      %v2051 = vld [vmem:[#allocation3 + $0x168] sm:$0xff]
      %v2052 = vld [vmem:[#allocation3 + $0x170] sm:$0xff]
      %v2053 = vld [vmem:[#allocation3 + $0x178] sm:$0xff]
      %v2054 = vld [vmem:[#allocation3 + $0x180] sm:$0xff]
      %v2055 = vld [vmem:[#allocation3 + $0x188] sm:$0xff]
      %v2056 = vld [vmem:[#allocation3 + $0x190] sm:$0xff]
      %v2057 = vld [vmem:[#allocation3 + $0x198] sm:$0xff]
      %v2058 = vld [vmem:[#allocation3 + $0x1a0] sm:$0xff]
      %v2059 = vld [vmem:[#allocation3 + $0x1a8] sm:$0xff]
      %v2060 = vld [vmem:[#allocation3 + $0x1b0] sm:$0xff]
      %v2061 = vld [vmem:[#allocation3 + $0x1b8] sm:$0xff]
      %v2062 = vld [vmem:[#allocation3 + $0x1c0] sm:$0xff]
      %v2063 = vld [vmem:[#allocation3 + $0x1c8] sm:$0xff]
      %v2064 = vld [vmem:[#allocation3 + $0x1d0] sm:$0xff]
      %v2065 = vld [vmem:[#allocation3 + $0x1d8] sm:$0xff]
      %v2066 = vld [vmem:[#allocation3 + $0x1e0] sm:$0xff]
      %v2067 = vld [vmem:[#allocation3 + $0x1e8] sm:$0xff]
      %v2068 = vld [vmem:[#allocation3 + $0x1f0] sm:$0xff]
      %v2069 = vld [vmem:[#allocation3 + $0x1f8] sm:$0xff]
      %v2070 = vld [vmem:[#allocation3 + $0x200] sm:$0xff]
      %v2071 = vld [vmem:[#allocation3 + $0x208] sm:$0xff]
      %v2072 = vld [vmem:[#allocation3 + $0x210] sm:$0xff]
      %v2073 = vld [vmem:[#allocation3 + $0x218] sm:$0xff]
      %v2074 = vld [vmem:[#allocation3 + $0x220] sm:$0xff]
      %v2075 = vld [vmem:[#allocation3 + $0x228] sm:$0xff]
      %v2076 = vld [vmem:[#allocation3 + $0x230] sm:$0xff]
      %v2077 = vld [vmem:[#allocation3 + $0x238] sm:$0xff]
      %v2078 = vld [vmem:[#allocation3 + $0x240] sm:$0xff]
      %v2079 = vld [vmem:[#allocation3 + $0x248] sm:$0xff]
      %v2080 = vld [vmem:[#allocation3 + $0x250] sm:$0xff]
      %v2081 = vld [vmem:[#allocation3 + $0x258] sm:$0xff]
      %v2082 = vld [vmem:[#allocation3 + $0x260] sm:$0xff]
      %v2083 = vld [vmem:[#allocation3 + $0x268] sm:$0xff]
      %v2084 = vld [vmem:[#allocation3 + $0x270] sm:$0xff]
      %v2085 = vld [vmem:[#allocation3 + $0x278] sm:$0xff]
      %v2086 = vld [vmem:[#allocation3 + $0x280] sm:$0xff]
      %v2087 = vld [vmem:[#allocation3 + $0x288] sm:$0xff]
      %v2088 = vld [vmem:[#allocation3 + $0x290] sm:$0xff]
      %v2089 = vld [vmem:[#allocation3 + $0x298] sm:$0xff]
      %v2090 = vld [vmem:[#allocation3 + $0x2a0] sm:$0xff]
      %v2091 = vld [vmem:[#allocation3 + $0x2a8] sm:$0xff]
      %v2092 = vld [vmem:[#allocation3 + $0x2b0] sm:$0xff]
      %v2093 = vld [vmem:[#allocation3 + $0x2b8] sm:$0xff]
      %v2094 = vld [vmem:[#allocation3 + $0x2c0] sm:$0xff]
      %v2095 = vld [vmem:[#allocation3 + $0x2c8] sm:$0xff]
      %v2096 = vld [vmem:[#allocation3 + $0x2d0] sm:$0xff]
      %v2097 = vld [vmem:[#allocation3 + $0x2d8] sm:$0xff]
      %v2098 = vld [vmem:[#allocation3 + $0x2e0] sm:$0xff]
      %v2099 = vld [vmem:[#allocation3 + $0x2e8] sm:$0xff]
      %v2100 = vld [vmem:[#allocation3 + $0x2f0] sm:$0xff]
      %v2101 = vld [vmem:[#allocation3 + $0x2f8] sm:$0xff]
      %v2102 = vld [vmem:[%s3] sm:$0xff]
      %v2103 = vld [vmem:[%s3 + $0x8] sm:$0xff]
      %v2104 = vld [vmem:[%s3 + $0x10] sm:$0xff]
      %v2105 = vld [vmem:[%s3 + $0x18] sm:$0xff]
      %v2106 = vld [vmem:[%s3 + $0x20] sm:$0xff]
      %v2107 = vld [vmem:[%s3 + $0x28] sm:$0xff]
      %v2108 = vld [vmem:[%s3 + $0x30] sm:$0xff]
      %v2109 = vld [vmem:[%s3 + $0x38] sm:$0xff]
      %v2110 = vld [vmem:[%s3 + $0x40] sm:$0xff]
      %v2111 = vld [vmem:[%s3 + $0x48] sm:$0xff]
      %v2112 = vld [vmem:[%s3 + $0x50] sm:$0xff]
      %v2113 = vld [vmem:[%s3 + $0x58] sm:$0xff]
      %v2114 = vld [vmem:[%s3 + $0x60] sm:$0xff]
      %v2115 = vld [vmem:[%s3 + $0x68] sm:$0xff]
      %v2116 = vld [vmem:[%s3 + $0x70] sm:$0xff]
      %v2117 = vld [vmem:[%s3 + $0x78] sm:$0xff]
      %v2118 = vld [vmem:[%s3 + $0x80] sm:$0xff]
      %v2119 = vld [vmem:[%s3 + $0x88] sm:$0xff]
      %v2120 = vld [vmem:[%s3 + $0x90] sm:$0xff]
      %v2121 = vld [vmem:[%s3 + $0x98] sm:$0xff]
      %v2122 = vld [vmem:[%s3 + $0xa0] sm:$0xff]
      %v2123 = vld [vmem:[%s3 + $0xa8] sm:$0xff]
      %v2124 = vld [vmem:[%s3 + $0xb0] sm:$0xff]
      %v2125 = vld [vmem:[%s3 + $0xb8] sm:$0xff]
      %v2126 = vld [vmem:[%s3 + $0xc0] sm:$0xff]
      %v2127 = vld [vmem:[%s3 + $0xc8] sm:$0xff]
      %v2128 = vld [vmem:[%s3 + $0xd0] sm:$0xff]
      %v2129 = vld [vmem:[%s3 + $0xd8] sm:$0xff]
      %v2130 = vld [vmem:[%s3 + $0xe0] sm:$0xff]
      %v2131 = vld [vmem:[%s3 + $0xe8] sm:$0xff]
      %v2132 = vld [vmem:[%s3 + $0xf0] sm:$0xff]
      %v2133 = vld [vmem:[%s3 + $0xf8] sm:$0xff]
      %v2134 = vld [vmem:[%s3 + $0x100] sm:$0xff]
      %v2135 = vld [vmem:[%s3 + $0x108] sm:$0xff]
      %v2136 = vld [vmem:[%s3 + $0x110] sm:$0xff]
      %v2137 = vld [vmem:[%s3 + $0x118] sm:$0xff]
      %v2139 = vsel %vm459, %v2008, 0
      %v2142 = vsel %vm459, %v2011, 0
      %v2145 = vsel %vm459, %v2014, 0
      %v2148 = vsel %vm459, %v2017, 0
      %v2151 = vsel %vm459, %v2020, 0
      %v2154 = vsel %vm459, %v2023, 0
      %v2157 = vsel %vm459, %v2026, 0
      %v2160 = vsel %vm459, %v2029, 0
      %v2163 = vsel %vm459, %v2032, 0
      %v2166 = vsel %vm459, %v2035, 0
      %v2169 = vsel %vm459, %v2038, 0
      %v2172 = vsel %vm459, %v2041, 0
      %v2175 = vsel %vm459, %v2044, 0
      %v2178 = vsel %vm459, %v2047, 0
      %v2181 = vsel %vm459, %v2050, 0
      %v2184 = vsel %vm459, %v2053, 0
      %v2187 = vsel %vm459, %v2056, 0
      %v2190 = vsel %vm459, %v2059, 0
      %v2193 = vsel %vm459, %v2062, 0
      %v2196 = vsel %vm459, %v2065, 0
      %v2199 = vsel %vm459, %v2068, 0
      %v2202 = vsel %vm459, %v2071, 0
      %v2205 = vsel %vm459, %v2074, 0
      %v2208 = vsel %vm459, %v2077, 0
      %v2211 = vsel %vm459, %v2080, 0
      %v2214 = vsel %vm459, %v2083, 0
      %v2217 = vsel %vm459, %v2086, 0
      %v2220 = vsel %vm459, %v2089, 0
      %v2223 = vsel %vm459, %v2092, 0
      %v2226 = vsel %vm459, %v2095, 0
      %v2229 = vsel %vm459, %v2098, 0
      %v2232 = vsel %vm459, %v2101, 0
      %2234 = vmatprep.subr.mxu0 0.0
      %2235 = vmatpush1.msra.mxu0 %v2102
      %2236 = vmatprep.subr.mxu0 0.0
      %2237 = vmatpush1.msra.mxu0 %v2103
      %2238 = vmatprep.subr.mxu0 0.0
      %2239 = vmatpush1.msra.mxu0 %v2104
      %2240 = vmatprep.subr.mxu0 0.0
      %2241 = vmatpush1.msra.mxu0 %v2105
      %2242 = vmatprep.subr.mxu0 0.0
      %2243 = vmatpush1.msra.mxu0 %v2106
      %2244 = vmatprep.subr.mxu0 0.0
      %2245 = vmatpush1.msra.mxu0 %v2107
      %2246 = vmatprep.subr.mxu0 0.0
      %2247 = vmatpush1.msra.mxu0 %v2108
      %2248 = vmatprep.subr.mxu0 0.0
      %2249 = vmatpush1.msra.mxu0 %v2109
      %2250 = vmatprep.subr.mxu0 0.0
      %2251 = vmatpush1.msra.mxu0 %v2110
      %2252 = vmatprep.subr.mxu0 0.0
      %2253 = vmatpush1.msra.mxu0 %v2111
      %2254 = vmatprep.subr.mxu0 0.0
      %2255 = vmatpush1.msra.mxu0 %v2112
      %2256 = vmatprep.subr.mxu0 0.0
      %2257 = vmatpush1.msra.mxu0 %v2113
      %2258 = vmatprep.subr.mxu0 0.0
      %2259 = vmatpush1.msra.mxu0 %v2114
      %2260 = vmatprep.subr.mxu0 0.0
      %2261 = vmatpush1.msra.mxu0 %v2115
      %2262 = vmatprep.subr.mxu0 0.0
      %2263 = vmatpush1.msra.mxu0 %v2116
      %2264 = vmatprep.subr.mxu0 0.0
      %2265 = vmatpush1.msra.mxu0 %v2117
      %2266 = vmatprep.subr.mxu0 0.0
      %2267 = vmatpush1.msra.mxu0 %v2118
      %2268 = vmatprep.subr.mxu0 0.0
      %2269 = vmatpush1.msra.mxu0 %v2119
      %2270 = vmatprep.subr.mxu0 0.0
      %2271 = vmatpush1.msra.mxu0 %v2120
      %2272 = vmatprep.subr.mxu0 0.0
      %2273 = vmatpush1.msra.mxu0 %v2121
      %2274 = vmatprep.subr.mxu0 0.0
      %2275 = vmatpush1.msra.mxu0 %v2122
      %2276 = vmatprep.subr.mxu0 0.0
      %2277 = vmatpush1.msra.mxu0 %v2123
      %2278 = vmatprep.subr.mxu0 0.0
      %2279 = vmatpush1.msra.mxu0 %v2124
      %2280 = vmatprep.subr.mxu0 0.0
      %2281 = vmatpush1.msra.mxu0 %v2125
      %2282 = vmatprep.subr.mxu0 0.0
      %2283 = vmatpush1.msra.mxu0 %v2126
      %2284 = vmatprep.subr.mxu0 0.0
      %2285 = vmatpush1.msra.mxu0 %v2127
      %2286 = vmatprep.subr.mxu0 0.0
      %2287 = vmatpush1.msra.mxu0 %v2128
      %2288 = vmatprep.subr.mxu0 0.0
      %2289 = vmatpush1.msra.mxu0 %v2129
      %2290 = vmatprep.subr.mxu0 0.0
      %2291 = vmatpush1.msra.mxu0 %v2130
      %2292 = vmatprep.subr.mxu0 0.0
      %2293 = vmatpush1.msra.mxu0 %v2131
      %2294 = vmatprep.subr.mxu0 0.0
      %2295 = vmatpush1.msra.mxu0 %v2132
      %2296 = vmatprep.subr.mxu0 0.0
      %2297 = vmatpush1.msra.mxu0 %v2133
      %2298 = vmatprep.mubr.f32.mxu0 %v2007
      %2299 = vmatmul.mubr.f32.gmra.mrb[0].mxu0 %v2006
      %v2300 = vpop.f32.mrb[0].mxu0
      %v2301 = vadd.f32 0.0, %v2300
      %v2302 = vpop.f32.mrb[0].mxu0
      %2303 = vmatprep.mubr.f32.mxu0 %v2010
      %2304 = vmatmul.mubr.f32.gmra.mrb[0].mxu0 %v2009
      %v2305 = vpop.f32.mrb[0].mxu0
      %v2306 = vadd.f32 0.0, %v2305
      %v2307 = vpop.f32.mrb[0].mxu0
      %2308 = vmatprep.mubr.f32.mxu0 %v2013
      %2309 = vmatmul.mubr.f32.gmra.mrb[0].mxu0 %v2012
      %v2310 = vpop.f32.mrb[0].mxu0
      %v2311 = vadd.f32 0.0, %v2310
      %v2312 = vpop.f32.mrb[0].mxu0
      %2313 = vmatprep.mubr.f32.mxu0 %v2016
      %2314 = vmatmul.mubr.f32.gmra.mrb[0].mxu0 %v2015
      %v2315 = vpop.f32.mrb[0].mxu0
      %v2316 = vadd.f32 0.0, %v2315
      %v2317 = vpop.f32.mrb[0].mxu0
      %2318 = vmatprep.mubr.f32.mxu0 %v2019
      %2319 = vmatmul.mubr.f32.gmra.mrb[0].mxu0 %v2018
      %v2320 = vpop.f32.mrb[0].mxu0
      %v2321 = vadd.f32 0.0, %v2320
      %v2322 = vpop.f32.mrb[0].mxu0
      %2323 = vmatprep.mubr.f32.mxu0 %v2022
      %2324 = vmatmul.mubr.f32.gmra.mrb[0].mxu0 %v2021
      %v2325 = vpop.f32.mrb[0].mxu0
      %v2326 = vadd.f32 0.0, %v2325
      %v2327 = vpop.f32.mrb[0].mxu0
      %2328 = vmatprep.mubr.f32.mxu0 %v2025
      %2329 = vmatmul.mubr.f32.gmra.mrb[0].mxu0 %v2024
      %v2330 = vpop.f32.mrb[0].mxu0
      %v2331 = vadd.f32 0.0, %v2330
      %v2332 = vpop.f32.mrb[0].mxu0
      %2333 = vmatprep.mubr.f32.mxu0 %v2028
      %2334 = vmatmul.mubr.f32.gmra.mrb[0].mxu0 %v2027
      %v2335 = vpop.f32.mrb[0].mxu0
      %v2336 = vadd.f32 0.0, %v2335
      %v2337 = vpop.f32.mrb[0].mxu0
      %2338 = vmatprep.mubr.f32.mxu0 %v2031
      %2339 = vmatmul.mubr.f32.gmra.mrb[0].mxu0 %v2030
      %v2340 = vpop.f32.mrb[0].mxu0
      %v2341 = vadd.f32 0.0, %v2340
      %v2342 = vpop.f32.mrb[0].mxu0
      %2343 = vmatprep.mubr.f32.mxu0 %v2034
      %2344 = vmatmul.mubr.f32.gmra.mrb[0].mxu0 %v2033
      %v2345 = vpop.f32.mrb[0].mxu0
      %v2346 = vadd.f32 0.0, %v2345
      %v2347 = vpop.f32.mrb[0].mxu0
      %2348 = vmatprep.mubr.f32.mxu0 %v2037
      %2349 = vmatmul.mubr.f32.gmra.mrb[0].mxu0 %v2036
      %v2350 = vpop.f32.mrb[0].mxu0
      %v2351 = vadd.f32 0.0, %v2350
      %v2352 = vpop.f32.mrb[0].mxu0
      %2353 = vmatprep.mubr.f32.mxu0 %v2040
      %2354 = vmatmul.mubr.f32.gmra.mrb[0].mxu0 %v2039
      %v2355 = vpop.f32.mrb[0].mxu0
      %v2356 = vadd.f32 0.0, %v2355
      %v2357 = vpop.f32.mrb[0].mxu0
      %2358 = vmatprep.mubr.f32.mxu0 %v2043
      %2359 = vmatmul.mubr.f32.gmra.mrb[0].mxu0 %v2042
      %v2360 = vpop.f32.mrb[0].mxu0
      %v2361 = vadd.f32 0.0, %v2360
      %v2362 = vpop.f32.mrb[0].mxu0
      %2363 = vmatprep.mubr.f32.mxu0 %v2046
      %2364 = vmatmul.mubr.f32.gmra.mrb[0].mxu0 %v2045
      %v2365 = vpop.f32.mrb[0].mxu0
      %v2366 = vadd.f32 0.0, %v2365
      %v2367 = vpop.f32.mrb[0].mxu0
      %2368 = vmatprep.mubr.f32.mxu0 %v2049
      %2369 = vmatmul.mubr.f32.gmra.mrb[0].mxu0 %v2048
      %v2370 = vpop.f32.mrb[0].mxu0
      %v2371 = vadd.f32 0.0, %v2370
      %v2372 = vpop.f32.mrb[0].mxu0
      %2373 = vmatprep.mubr.f32.mxu0 %v2052
      %2374 = vmatmul.mubr.f32.gmra.mrb[0].mxu0 %v2051
      %v2375 = vpop.f32.mrb[0].mxu0
      %v2376 = vadd.f32 0.0, %v2375
      %v2377 = vpop.f32.mrb[0].mxu0
      %2378 = vmatprep.mubr.f32.mxu0 %v2055
      %2379 = vmatmul.mubr.f32.gmra.mrb[0].mxu0 %v2054
      %v2380 = vpop.f32.mrb[0].mxu0
      %v2381 = vadd.f32 0.0, %v2380
      %v2382 = vpop.f32.mrb[0].mxu0
      %2383 = vmatprep.mubr.f32.mxu0 %v2058
      %2384 = vmatmul.mubr.f32.gmra.mrb[0].mxu0 %v2057
      %v2385 = vpop.f32.mrb[0].mxu0
      %v2386 = vadd.f32 0.0, %v2385
      %v2387 = vpop.f32.mrb[0].mxu0
      %2388 = vmatprep.mubr.f32.mxu0 %v2061
      %2389 = vmatmul.mubr.f32.gmra.mrb[0].mxu0 %v2060
      %v2390 = vpop.f32.mrb[0].mxu0
      %v2391 = vadd.f32 0.0, %v2390
      %v2392 = vpop.f32.mrb[0].mxu0
      %2393 = vmatprep.mubr.f32.mxu0 %v2064
      %2394 = vmatmul.mubr.f32.gmra.mrb[0].mxu0 %v2063
      %v2395 = vpop.f32.mrb[0].mxu0
      %v2396 = vadd.f32 0.0, %v2395
      %v2397 = vpop.f32.mrb[0].mxu0
      %2398 = vmatprep.mubr.f32.mxu0 %v2067
      %2399 = vmatmul.mubr.f32.gmra.mrb[0].mxu0 %v2066
      %v2400 = vpop.f32.mrb[0].mxu0
      %v2401 = vadd.f32 0.0, %v2400
      %v2402 = vpop.f32.mrb[0].mxu0
      %2403 = vmatprep.mubr.f32.mxu0 %v2070
      %2404 = vmatmul.mubr.f32.gmra.mrb[0].mxu0 %v2069
      %v2405 = vpop.f32.mrb[0].mxu0
      %v2406 = vadd.f32 0.0, %v2405
      %v2407 = vpop.f32.mrb[0].mxu0
      %2408 = vmatprep.mubr.f32.mxu0 %v2073
      %2409 = vmatmul.mubr.f32.gmra.mrb[0].mxu0 %v2072
      %v2410 = vpop.f32.mrb[0].mxu0
      %v2411 = vadd.f32 0.0, %v2410
      %v2412 = vpop.f32.mrb[0].mxu0
      %2413 = vmatprep.mubr.f32.mxu0 %v2076
      %2414 = vmatmul.mubr.f32.gmra.mrb[0].mxu0 %v2075
      %v2415 = vpop.f32.mrb[0].mxu0
      %v2416 = vadd.f32 0.0, %v2415
      %v2417 = vpop.f32.mrb[0].mxu0
      %2418 = vmatprep.mubr.f32.mxu0 %v2079
      %2419 = vmatmul.mubr.f32.gmra.mrb[0].mxu0 %v2078
      %v2420 = vpop.f32.mrb[0].mxu0
      %v2421 = vadd.f32 0.0, %v2420
      %v2422 = vpop.f32.mrb[0].mxu0
      %2423 = vmatprep.mubr.f32.mxu0 %v2082
      %2424 = vmatmul.mubr.f32.gmra.mrb[0].mxu0 %v2081
      %v2425 = vpop.f32.mrb[0].mxu0
      %v2426 = vadd.f32 0.0, %v2425
      %v2427 = vpop.f32.mrb[0].mxu0
      %2428 = vmatprep.mubr.f32.mxu0 %v2085
      %2429 = vmatmul.mubr.f32.gmra.mrb[0].mxu0 %v2084
      %v2430 = vpop.f32.mrb[0].mxu0
      %v2431 = vadd.f32 0.0, %v2430
      %v2432 = vpop.f32.mrb[0].mxu0
      %2433 = vmatprep.mubr.f32.mxu0 %v2088
      %2434 = vmatmul.mubr.f32.gmra.mrb[0].mxu0 %v2087
      %v2435 = vpop.f32.mrb[0].mxu0
      %v2436 = vadd.f32 0.0, %v2435
      %v2437 = vpop.f32.mrb[0].mxu0
      %2438 = vmatprep.mubr.f32.mxu0 %v2091
      %2439 = vmatmul.mubr.f32.gmra.mrb[0].mxu0 %v2090
      %v2440 = vpop.f32.mrb[0].mxu0
      %v2441 = vadd.f32 0.0, %v2440
      %v2442 = vpop.f32.mrb[0].mxu0
      %2443 = vmatprep.mubr.f32.mxu0 %v2094
      %2444 = vmatmul.mubr.f32.gmra.mrb[0].mxu0 %v2093
      %v2445 = vpop.f32.mrb[0].mxu0
      %v2446 = vadd.f32 0.0, %v2445
      %v2447 = vpop.f32.mrb[0].mxu0
      %2448 = vmatprep.mubr.f32.mxu0 %v2097
      %2449 = vmatmul.mubr.f32.gmra.mrb[0].mxu0 %v2096
      %v2450 = vpop.f32.mrb[0].mxu0
      %v2451 = vadd.f32 0.0, %v2450
      %v2452 = vpop.f32.mrb[0].mxu0
      %2453 = vmatprep.mubr.f32.mxu0 %v2100
      %2454 = vmatmul.mubr.f32.gmra.mrb[0].mxu0 %v2099
      %v2455 = vpop.f32.mrb[0].mxu0
      %v2456 = vadd.f32 0.0, %v2455
      %v2457 = vpop.f32.mrb[0].mxu0
      %2458 = vdwg.mxu0
      %2459 = vmatprep.subr.mxu0 0.0
      %2460 = vmatpush1.msra.mxu0 %v2134
      %2461 = vmatprep.subr.mxu0 0.0
      %2462 = vmatpush1.msra.mxu0 %v2135
      %2463 = vmatprep.subr.mxu0 0.0
      %2464 = vmatpush1.msra.mxu0 %v2136
      %2465 = vmatprep.subr.mxu0 0.0
      %2466 = vmatpush1.msra.mxu0 %v2137
      %2467 = vmatprep.subr.mxu0 0.0
      %2468 = vmatpush1.msra.mxu0 0.0
      %2469 = vmatprep.subr.mxu0 0.0
      %2470 = vmatpush1.msra.mxu0 0.0
      %2471 = vmatprep.subr.mxu0 0.0
      %2472 = vmatpush1.msra.mxu0 0.0
      %2473 = vmatprep.subr.mxu0 0.0
      %2474 = vmatpush1.msra.mxu0 0.0
      %2475 = vmatprep.subr.mxu0 0.0
      %2476 = vmatpush1.msra.mxu0 0.0
      %2477 = vmatprep.subr.mxu0 0.0
      %2478 = vmatpush1.msra.mxu0 0.0
      %2479 = vmatprep.subr.mxu0 0.0
      %2480 = vmatpush1.msra.mxu0 0.0
      %2481 = vmatprep.subr.mxu0 0.0
      %2482 = vmatpush1.msra.mxu0 0.0
      %2483 = vmatprep.subr.mxu0 0.0
      %2484 = vmatpush1.msra.mxu0 0.0
      %2485 = vmatprep.subr.mxu0 0.0
      %2486 = vmatpush1.msra.mxu0 0.0
      %2487 = vmatprep.subr.mxu0 0.0
      %2488 = vmatpush1.msra.mxu0 0.0
      %2489 = vmatprep.subr.mxu0 0.0
      %2490 = vmatpush1.msra.mxu0 0.0
      %2491 = vmatprep.subr.mxu0 0.0
      %2492 = vmatpush1.msra.mxu0 0.0
      %2493 = vmatprep.subr.mxu0 0.0
      %2494 = vmatpush1.msra.mxu0 0.0
      %2495 = vmatprep.subr.mxu0 0.0
      %2496 = vmatpush1.msra.mxu0 0.0
      %2497 = vmatprep.subr.mxu0 0.0
      %2498 = vmatpush1.msra.mxu0 0.0
      %2499 = vmatprep.subr.mxu0 0.0
      %2500 = vmatpush1.msra.mxu0 0.0
      %2501 = vmatprep.subr.mxu0 0.0
      %2502 = vmatpush1.msra.mxu0 0.0
      %2503 = vmatprep.subr.mxu0 0.0
      %2504 = vmatpush1.msra.mxu0 0.0
      %2505 = vmatprep.subr.mxu0 0.0
      %2506 = vmatpush1.msra.mxu0 0.0
      %2507 = vmatprep.subr.mxu0 0.0
      %2508 = vmatpush1.msra.mxu0 0.0
      %2509 = vmatprep.subr.mxu0 0.0
      %2510 = vmatpush1.msra.mxu0 0.0
      %2511 = vmatprep.subr.mxu0 0.0
      %2512 = vmatpush1.msra.mxu0 0.0
      %2513 = vmatprep.subr.mxu0 0.0
      %2514 = vmatpush1.msra.mxu0 0.0
      %2515 = vmatprep.subr.mxu0 0.0
      %2516 = vmatpush1.msra.mxu0 0.0
      %2517 = vmatprep.subr.mxu0 0.0
      %2518 = vmatpush1.msra.mxu0 0.0
      %2519 = vmatprep.subr.mxu0 0.0
      %2520 = vmatpush1.msra.mxu0 0.0
      %2521 = vmatprep.subr.mxu0 0.0
      %2522 = vmatpush1.msra.mxu0 0.0
      %2523 = vmatprep.mubr.f32.mxu0 0.0
      %2524 = vmatmul.mubr.f32.gmra.mrb[0].mxu0 %v2139
      %v2525 = vpop.f32.mrb[0].mxu0
      %v2526 = vadd.f32 %v2301, %v2525
      %v2527 = vpop.f32.mrb[0].mxu0
      %2528 = vmatprep.mubr.f32.mxu0 0.0
      %2529 = vmatmul.mubr.f32.gmra.mrb[0].mxu0 %v2142
      %v2530 = vpop.f32.mrb[0].mxu0
      %v2531 = vadd.f32 %v2306, %v2530
      %v2532 = vpop.f32.mrb[0].mxu0
      %2533 = vmatprep.mubr.f32.mxu0 0.0
      %2534 = vmatmul.mubr.f32.gmra.mrb[0].mxu0 %v2145
      %v2535 = vpop.f32.mrb[0].mxu0
      %v2536 = vadd.f32 %v2311, %v2535
      %v2537 = vpop.f32.mrb[0].mxu0
      %2538 = vmatprep.mubr.f32.mxu0 0.0
      %2539 = vmatmul.mubr.f32.gmra.mrb[0].mxu0 %v2148
      %v2540 = vpop.f32.mrb[0].mxu0
      %v2541 = vadd.f32 %v2316, %v2540
      %v2542 = vpop.f32.mrb[0].mxu0
      %2543 = vmatprep.mubr.f32.mxu0 0.0
      %2544 = vmatmul.mubr.f32.gmra.mrb[0].mxu0 %v2151
      %v2545 = vpop.f32.mrb[0].mxu0
      %v2546 = vadd.f32 %v2321, %v2545
      %v2547 = vpop.f32.mrb[0].mxu0
      %2548 = vmatprep.mubr.f32.mxu0 0.0
      %2549 = vmatmul.mubr.f32.gmra.mrb[0].mxu0 %v2154
      %v2550 = vpop.f32.mrb[0].mxu0
      %v2551 = vadd.f32 %v2326, %v2550
      %v2552 = vpop.f32.mrb[0].mxu0
      %2553 = vmatprep.mubr.f32.mxu0 0.0
      %2554 = vmatmul.mubr.f32.gmra.mrb[0].mxu0 %v2157
      %v2555 = vpop.f32.mrb[0].mxu0
      %v2556 = vadd.f32 %v2331, %v2555
      %v2557 = vpop.f32.mrb[0].mxu0
      %2558 = vmatprep.mubr.f32.mxu0 0.0
      %2559 = vmatmul.mubr.f32.gmra.mrb[0].mxu0 %v2160
      %v2560 = vpop.f32.mrb[0].mxu0
      %v2561 = vadd.f32 %v2336, %v2560
      %v2562 = vpop.f32.mrb[0].mxu0
      %2563 = vmatprep.mubr.f32.mxu0 0.0
      %2564 = vmatmul.mubr.f32.gmra.mrb[0].mxu0 %v2163
      %v2565 = vpop.f32.mrb[0].mxu0
      %v2566 = vadd.f32 %v2341, %v2565
      %v2567 = vpop.f32.mrb[0].mxu0
      %2568 = vmatprep.mubr.f32.mxu0 0.0
      %2569 = vmatmul.mubr.f32.gmra.mrb[0].mxu0 %v2166
      %v2570 = vpop.f32.mrb[0].mxu0
      %v2571 = vadd.f32 %v2346, %v2570
      %v2572 = vpop.f32.mrb[0].mxu0
      %2573 = vmatprep.mubr.f32.mxu0 0.0
      %2574 = vmatmul.mubr.f32.gmra.mrb[0].mxu0 %v2169
      %v2575 = vpop.f32.mrb[0].mxu0
      %v2576 = vadd.f32 %v2351, %v2575
      %v2577 = vpop.f32.mrb[0].mxu0
      %2578 = vmatprep.mubr.f32.mxu0 0.0
      %2579 = vmatmul.mubr.f32.gmra.mrb[0].mxu0 %v2172
      %v2580 = vpop.f32.mrb[0].mxu0
      %v2581 = vadd.f32 %v2356, %v2580
      %v2582 = vpop.f32.mrb[0].mxu0
      %2583 = vmatprep.mubr.f32.mxu0 0.0
      %2584 = vmatmul.mubr.f32.gmra.mrb[0].mxu0 %v2175
      %v2585 = vpop.f32.mrb[0].mxu0
      %v2586 = vadd.f32 %v2361, %v2585
      %v2587 = vpop.f32.mrb[0].mxu0
      %2588 = vmatprep.mubr.f32.mxu0 0.0
      %2589 = vmatmul.mubr.f32.gmra.mrb[0].mxu0 %v2178
      %v2590 = vpop.f32.mrb[0].mxu0
      %v2591 = vadd.f32 %v2366, %v2590
      %v2592 = vpop.f32.mrb[0].mxu0
      %2593 = vmatprep.mubr.f32.mxu0 0.0
      %2594 = vmatmul.mubr.f32.gmra.mrb[0].mxu0 %v2181
      %v2595 = vpop.f32.mrb[0].mxu0
      %v2596 = vadd.f32 %v2371, %v2595
      %v2597 = vpop.f32.mrb[0].mxu0
      %2598 = vmatprep.mubr.f32.mxu0 0.0
      %2599 = vmatmul.mubr.f32.gmra.mrb[0].mxu0 %v2184
      %v2600 = vpop.f32.mrb[0].mxu0
      %v2601 = vadd.f32 %v2376, %v2600
      %v2602 = vpop.f32.mrb[0].mxu0
      %2603 = vmatprep.mubr.f32.mxu0 0.0
      %2604 = vmatmul.mubr.f32.gmra.mrb[0].mxu0 %v2187
      %v2605 = vpop.f32.mrb[0].mxu0
      %v2606 = vadd.f32 %v2381, %v2605
      %v2607 = vpop.f32.mrb[0].mxu0
      %2608 = vmatprep.mubr.f32.mxu0 0.0
      %2609 = vmatmul.mubr.f32.gmra.mrb[0].mxu0 %v2190
      %v2610 = vpop.f32.mrb[0].mxu0
      %v2611 = vadd.f32 %v2386, %v2610
      %v2612 = vpop.f32.mrb[0].mxu0
      %2613 = vmatprep.mubr.f32.mxu0 0.0
      %2614 = vmatmul.mubr.f32.gmra.mrb[0].mxu0 %v2193
      %v2615 = vpop.f32.mrb[0].mxu0
      %v2616 = vadd.f32 %v2391, %v2615
      %v2617 = vpop.f32.mrb[0].mxu0
      %2618 = vmatprep.mubr.f32.mxu0 0.0
      %2619 = vmatmul.mubr.f32.gmra.mrb[0].mxu0 %v2196
      %v2620 = vpop.f32.mrb[0].mxu0
      %v2621 = vadd.f32 %v2396, %v2620
      %v2622 = vpop.f32.mrb[0].mxu0
      %2623 = vmatprep.mubr.f32.mxu0 0.0
      %2624 = vmatmul.mubr.f32.gmra.mrb[0].mxu0 %v2199
      %v2625 = vpop.f32.mrb[0].mxu0
      %v2626 = vadd.f32 %v2401, %v2625
      %v2627 = vpop.f32.mrb[0].mxu0
      %2628 = vmatprep.mubr.f32.mxu0 0.0
      %2629 = vmatmul.mubr.f32.gmra.mrb[0].mxu0 %v2202
      %v2630 = vpop.f32.mrb[0].mxu0
      %v2631 = vadd.f32 %v2406, %v2630
      %v2632 = vpop.f32.mrb[0].mxu0
      %2633 = vmatprep.mubr.f32.mxu0 0.0
      %2634 = vmatmul.mubr.f32.gmra.mrb[0].mxu0 %v2205
      %v2635 = vpop.f32.mrb[0].mxu0
      %v2636 = vadd.f32 %v2411, %v2635
      %v2637 = vpop.f32.mrb[0].mxu0
      %2638 = vmatprep.mubr.f32.mxu0 0.0
      %2639 = vmatmul.mubr.f32.gmra.mrb[0].mxu0 %v2208
      %v2640 = vpop.f32.mrb[0].mxu0
      %v2641 = vadd.f32 %v2416, %v2640
      %v2642 = vpop.f32.mrb[0].mxu0
      %2643 = vmatprep.mubr.f32.mxu0 0.0
      %2644 = vmatmul.mubr.f32.gmra.mrb[0].mxu0 %v2211
      %v2645 = vpop.f32.mrb[0].mxu0
      %v2646 = vadd.f32 %v2421, %v2645
      %v2647 = vpop.f32.mrb[0].mxu0
      %2648 = vmatprep.mubr.f32.mxu0 0.0
      %2649 = vmatmul.mubr.f32.gmra.mrb[0].mxu0 %v2214
      %v2650 = vpop.f32.mrb[0].mxu0
      %v2651 = vadd.f32 %v2426, %v2650
      %v2652 = vpop.f32.mrb[0].mxu0
      %2653 = vmatprep.mubr.f32.mxu0 0.0
      %2654 = vmatmul.mubr.f32.gmra.mrb[0].mxu0 %v2217
      %v2655 = vpop.f32.mrb[0].mxu0
      %v2656 = vadd.f32 %v2431, %v2655
      %v2657 = vpop.f32.mrb[0].mxu0
      %2658 = vmatprep.mubr.f32.mxu0 0.0
      %2659 = vmatmul.mubr.f32.gmra.mrb[0].mxu0 %v2220
      %v2660 = vpop.f32.mrb[0].mxu0
      %v2661 = vadd.f32 %v2436, %v2660
      %v2662 = vpop.f32.mrb[0].mxu0
      %2663 = vmatprep.mubr.f32.mxu0 0.0
      %2664 = vmatmul.mubr.f32.gmra.mrb[0].mxu0 %v2223
      %v2665 = vpop.f32.mrb[0].mxu0
      %v2666 = vadd.f32 %v2441, %v2665
      %v2667 = vpop.f32.mrb[0].mxu0
      %2668 = vmatprep.mubr.f32.mxu0 0.0
      %2669 = vmatmul.mubr.f32.gmra.mrb[0].mxu0 %v2226
      %v2670 = vpop.f32.mrb[0].mxu0
      %v2671 = vadd.f32 %v2446, %v2670
      %v2672 = vpop.f32.mrb[0].mxu0
      %2673 = vmatprep.mubr.f32.mxu0 0.0
      %2674 = vmatmul.mubr.f32.gmra.mrb[0].mxu0 %v2229
      %v2675 = vpop.f32.mrb[0].mxu0
      %v2676 = vadd.f32 %v2451, %v2675
      %v2677 = vpop.f32.mrb[0].mxu0
      %2678 = vmatprep.mubr.f32.mxu0 0.0
      %2679 = vmatmul.mubr.f32.gmra.mrb[0].mxu0 %v2232
      %v2680 = vpop.f32.mrb[0].mxu0
      %v2681 = vadd.f32 %v2456, %v2680
      %v2682 = vpop.f32.mrb[0].mxu0
      %2683 = vdwg.mxu0
      %v2684 = vld [vmem:[%s4] sm:$0x1]
      %v2686 = vlaneseq
      %v2687 = vshrl.u32 %v2686, 7
      %v2688 = vsub.s32 0, %v2687
      %v2689 = vrot.slane %v2684, %v2688
      %v2691 = vmul.f32 %v2526, %v2689
      %v2692 = vmul.f32 %v2531, %v2689
      %v2693 = vmul.f32 %v2536, %v2689
      %v2694 = vmul.f32 %v2541, %v2689
      %v2695 = vmul.f32 %v2546, %v2689
      %v2696 = vmul.f32 %v2551, %v2689
      %v2697 = vmul.f32 %v2556, %v2689
      %v2698 = vmul.f32 %v2561, %v2689
      %v2699 = vmul.f32 %v2566, %v2689
      %v2700 = vmul.f32 %v2571, %v2689
      %v2701 = vmul.f32 %v2576, %v2689
      %v2702 = vmul.f32 %v2581, %v2689
      %v2703 = vmul.f32 %v2586, %v2689
      %v2704 = vmul.f32 %v2591, %v2689
      %v2705 = vmul.f32 %v2596, %v2689
      %v2706 = vmul.f32 %v2601, %v2689
      %v2707 = vmul.f32 %v2606, %v2689
      %v2708 = vmul.f32 %v2611, %v2689
      %v2709 = vmul.f32 %v2616, %v2689
      %v2710 = vmul.f32 %v2621, %v2689
      %v2711 = vmul.f32 %v2626, %v2689
      %v2712 = vmul.f32 %v2631, %v2689
      %v2713 = vmul.f32 %v2636, %v2689
      %v2714 = vmul.f32 %v2641, %v2689
      %v2715 = vmul.f32 %v2646, %v2689
      %v2716 = vmul.f32 %v2651, %v2689
      %v2717 = vmul.f32 %v2656, %v2689
      %v2718 = vmul.f32 %v2661, %v2689
      %v2719 = vmul.f32 %v2666, %v2689
      %v2720 = vmul.f32 %v2671, %v2689
      %v2721 = vmul.f32 %v2676, %v2689
      %v2722 = vmul.f32 %v2681, %v2689
      %v2723 = vld [vmem:[%s5] sm:$0x1]
      %v2725 = vlaneseq
      %v2726 = vshrl.u32 %v2725, 7
      %v2727 = vsub.s32 0, %v2726
      %v2728 = vrot.slane %v2723, %v2727
      %v2730 = vadd.f32 %v2691, %v2728
      %v2731 = vadd.f32 %v2692, %v2728
      %v2732 = vadd.f32 %v2693, %v2728
      %v2733 = vadd.f32 %v2694, %v2728
      %v2734 = vadd.f32 %v2695, %v2728
      %v2735 = vadd.f32 %v2696, %v2728
      %v2736 = vadd.f32 %v2697, %v2728
      %v2737 = vadd.f32 %v2698, %v2728
      %v2738 = vadd.f32 %v2699, %v2728
      %v2739 = vadd.f32 %v2700, %v2728
      %v2740 = vadd.f32 %v2701, %v2728
      %v2741 = vadd.f32 %v2702, %v2728
      %v2742 = vadd.f32 %v2703, %v2728
      %v2743 = vadd.f32 %v2704, %v2728
      %v2744 = vadd.f32 %v2705, %v2728
      %v2745 = vadd.f32 %v2706, %v2728
      %v2746 = vadd.f32 %v2707, %v2728
      %v2747 = vadd.f32 %v2708, %v2728
      %v2748 = vadd.f32 %v2709, %v2728
      %v2749 = vadd.f32 %v2710, %v2728
      %v2750 = vadd.f32 %v2711, %v2728
      %v2751 = vadd.f32 %v2712, %v2728
      %v2752 = vadd.f32 %v2713, %v2728
      %v2753 = vadd.f32 %v2714, %v2728
      %v2754 = vadd.f32 %v2715, %v2728
      %v2755 = vadd.f32 %v2716, %v2728
      %v2756 = vadd.f32 %v2717, %v2728
      %v2757 = vadd.f32 %v2718, %v2728
      %v2758 = vadd.f32 %v2719, %v2728
      %v2759 = vadd.f32 %v2720, %v2728
      %v2760 = vadd.f32 %v2721, %v2728
      %v2761 = vadd.f32 %v2722, %v2728
      %v2762 = vmax.f32 %v2730, 0.0
      %v2763 = vmax.f32 %v2731, 0.0
      %v2764 = vmax.f32 %v2732, 0.0
      %v2765 = vmax.f32 %v2733, 0.0
      %v2766 = vmax.f32 %v2734, 0.0
      %v2767 = vmax.f32 %v2735, 0.0
      %v2768 = vmax.f32 %v2736, 0.0
      %v2769 = vmax.f32 %v2737, 0.0
      %v2770 = vmax.f32 %v2738, 0.0
      %v2771 = vmax.f32 %v2739, 0.0
      %v2772 = vmax.f32 %v2740, 0.0
      %v2773 = vmax.f32 %v2741, 0.0
      %v2774 = vmax.f32 %v2742, 0.0
      %v2775 = vmax.f32 %v2743, 0.0
      %v2776 = vmax.f32 %v2744, 0.0
      %v2777 = vmax.f32 %v2745, 0.0
      %v2778 = vmax.f32 %v2746, 0.0
      %v2779 = vmax.f32 %v2747, 0.0
      %v2780 = vmax.f32 %v2748, 0.0
      %v2781 = vmax.f32 %v2749, 0.0
      %v2782 = vmax.f32 %v2750, 0.0
      %v2783 = vmax.f32 %v2751, 0.0
      %v2784 = vmax.f32 %v2752, 0.0
      %v2785 = vmax.f32 %v2753, 0.0
      %v2786 = vmax.f32 %v2754, 0.0
      %v2787 = vmax.f32 %v2755, 0.0
      %v2788 = vmax.f32 %v2756, 0.0
      %v2789 = vmax.f32 %v2757, 0.0
      %v2790 = vmax.f32 %v2758, 0.0
      %v2791 = vmax.f32 %v2759, 0.0
      %v2792 = vmax.f32 %v2760, 0.0
      %v2793 = vmax.f32 %v2761, 0.0
      %2794 = vst.msk [vmem:[%s625 + $0x1] sm:$0xff] %vm459, %v2762
      %2795 = vst.msk [vmem:[%s625 + $0x9] sm:$0xff] %vm459, %v2763
      %2796 = vst.msk [vmem:[%s625 + $0x19] sm:$0xff] %vm459, %v2764
      %2797 = vst.msk [vmem:[%s625 + $0x21] sm:$0xff] %vm459, %v2765
      %2798 = vst.msk [vmem:[%s625 + $0x31] sm:$0xff] %vm459, %v2766
      %2799 = vst.msk [vmem:[%s625 + $0x39] sm:$0xff] %vm459, %v2767
      %2800 = vst.msk [vmem:[%s625 + $0x49] sm:$0xff] %vm459, %v2768
      %2801 = vst.msk [vmem:[%s625 + $0x51] sm:$0xff] %vm459, %v2769
      %2802 = vst.msk [vmem:[%s625 + $0x61] sm:$0xff] %vm459, %v2770
      %2803 = vst.msk [vmem:[%s625 + $0x69] sm:$0xff] %vm459, %v2771
      %2804 = vst.msk [vmem:[%s625 + $0x79] sm:$0xff] %vm459, %v2772
      %2805 = vst.msk [vmem:[%s625 + $0x81] sm:$0xff] %vm459, %v2773
      %2806 = vst.msk [vmem:[%s625 + $0x91] sm:$0xff] %vm459, %v2774
      %2807 = vst.msk [vmem:[%s625 + $0x99] sm:$0xff] %vm459, %v2775
      %2808 = vst.msk [vmem:[%s625 + $0xa9] sm:$0xff] %vm459, %v2776
      %2809 = vst.msk [vmem:[%s625 + $0xb1] sm:$0xff] %vm459, %v2777
      %2810 = vst.msk [vmem:[%s625 + $0xc1] sm:$0xff] %vm459, %v2778
      %2811 = vst.msk [vmem:[%s625 + $0xc9] sm:$0xff] %vm459, %v2779
      %2812 = vst.msk [vmem:[%s625 + $0xd9] sm:$0xff] %vm459, %v2780
      %2813 = vst.msk [vmem:[%s625 + $0xe1] sm:$0xff] %vm459, %v2781
      %2814 = vst.msk [vmem:[%s625 + $0xf1] sm:$0xff] %vm459, %v2782
      %2815 = vst.msk [vmem:[%s625 + $0xf9] sm:$0xff] %vm459, %v2783
      %2816 = vst.msk [vmem:[%s625 + $0x109] sm:$0xff] %vm459, %v2784
      %2817 = vst.msk [vmem:[%s625 + $0x111] sm:$0xff] %vm459, %v2785
      %2818 = vst.msk [vmem:[%s625 + $0x121] sm:$0xff] %vm459, %v2786
      %2819 = vst.msk [vmem:[%s625 + $0x129] sm:$0xff] %vm459, %v2787
      %2820 = vst.msk [vmem:[%s625 + $0x139] sm:$0xff] %vm459, %v2788
      %2821 = vst.msk [vmem:[%s625 + $0x141] sm:$0xff] %vm459, %v2789
      %2822 = vst.msk [vmem:[%s625 + $0x151] sm:$0xff] %vm459, %v2790
      %2823 = vst.msk [vmem:[%s625 + $0x159] sm:$0xff] %vm459, %v2791
      %2824 = vst.msk [vmem:[%s625 + $0x169] sm:$0xff] %vm459, %v2792
      %2825 = vst.msk [vmem:[%s625 + $0x171] sm:$0xff] %vm459, %v2793
      %v2826 = vld [vmem:[#allocation2] sm:$0xff]
      %v2827 = vld [vmem:[#allocation2 + $0x8] sm:$0xff]
      %v2828 = vld [vmem:[#allocation2 + $0x18] sm:$0xff]
      %v2829 = vld [vmem:[#allocation2 + $0x20] sm:$0xff]
      %v2830 = vld [vmem:[#allocation2 + $0x30] sm:$0xff]
      %v2831 = vld [vmem:[#allocation2 + $0x38] sm:$0xff]
      %v2832 = vld [vmem:[#allocation2 + $0x48] sm:$0xff]
      %v2833 = vld [vmem:[#allocation2 + $0x50] sm:$0xff]
      %v2834 = vld [vmem:[#allocation2 + $0x60] sm:$0xff]
      %v2835 = vld [vmem:[#allocation2 + $0x68] sm:$0xff]
      %v2836 = vld [vmem:[#allocation2 + $0x78] sm:$0xff]
      %v2837 = vld [vmem:[#allocation2 + $0x80] sm:$0xff]
      %v2838 = vld [vmem:[#allocation2 + $0x90] sm:$0xff]
      %v2839 = vld [vmem:[#allocation2 + $0x98] sm:$0xff]
      %v2840 = vld [vmem:[#allocation2 + $0xa8] sm:$0xff]
      %v2841 = vld [vmem:[#allocation2 + $0xb0] sm:$0xff]
      %v2842 = vld [vmem:[#allocation2 + $0xc0] sm:$0xff]
      %v2843 = vld [vmem:[#allocation2 + $0xc8] sm:$0xff]
      %v2844 = vld [vmem:[#allocation2 + $0xd8] sm:$0xff]
      %v2845 = vld [vmem:[#allocation2 + $0xe0] sm:$0xff]
      %v2846 = vld [vmem:[#allocation2 + $0xf0] sm:$0xff]
      %v2847 = vld [vmem:[#allocation2 + $0xf8] sm:$0xff]
      %v2848 = vld [vmem:[#allocation2 + $0x108] sm:$0xff]
      %v2849 = vld [vmem:[#allocation2 + $0x110] sm:$0xff]
      %v2850 = vld [vmem:[#allocation2 + $0x120] sm:$0xff]
      %v2851 = vld [vmem:[#allocation2 + $0x128] sm:$0xff]
      %v2852 = vld [vmem:[#allocation2 + $0x138] sm:$0xff]
      %v2853 = vld [vmem:[#allocation2 + $0x140] sm:$0xff]
      %v2854 = vld [vmem:[#allocation2 + $0x150] sm:$0xff]
      %v2855 = vld [vmem:[#allocation2 + $0x158] sm:$0xff]
      %v2856 = vld [vmem:[#allocation2 + $0x168] sm:$0xff]
      %v2857 = vld [vmem:[#allocation2 + $0x170] sm:$0xff]
      %2858 = vst.msk [vmem:[#allocation3] sm:$0xff] %vm459, %v2826
      %2859 = vst.msk [vmem:[#allocation3 + $0x18] sm:$0xff] %vm459, %v2827
      %2860 = vst.msk [vmem:[#allocation3 + $0x30] sm:$0xff] %vm459, %v2828
      %2861 = vst.msk [vmem:[#allocation3 + $0x48] sm:$0xff] %vm459, %v2829
      %2862 = vst.msk [vmem:[#allocation3 + $0x60] sm:$0xff] %vm459, %v2830
      %2863 = vst.msk [vmem:[#allocation3 + $0x78] sm:$0xff] %vm459, %v2831
      %2864 = vst.msk [vmem:[#allocation3 + $0x90] sm:$0xff] %vm459, %v2832
      %2865 = vst.msk [vmem:[#allocation3 + $0xa8] sm:$0xff] %vm459, %v2833
      %2866 = vst.msk [vmem:[#allocation3 + $0xc0] sm:$0xff] %vm459, %v2834
      %2867 = vst.msk [vmem:[#allocation3 + $0xd8] sm:$0xff] %vm459, %v2835
      %2868 = vst.msk [vmem:[#allocation3 + $0xf0] sm:$0xff] %vm459, %v2836
      %2869 = vst.msk [vmem:[#allocation3 + $0x108] sm:$0xff] %vm459, %v2837
      %2870 = vst.msk [vmem:[#allocation3 + $0x120] sm:$0xff] %vm459, %v2838
      %2871 = vst.msk [vmem:[#allocation3 + $0x138] sm:$0xff] %vm459, %v2839
      %2872 = vst.msk [vmem:[#allocation3 + $0x150] sm:$0xff] %vm459, %v2840
      %2873 = vst.msk [vmem:[#allocation3 + $0x168] sm:$0xff] %vm459, %v2841
      %2874 = vst.msk [vmem:[#allocation3 + $0x180] sm:$0xff] %vm459, %v2842
      %2875 = vst.msk [vmem:[#allocation3 + $0x198] sm:$0xff] %vm459, %v2843
      %2876 = vst.msk [vmem:[#allocation3 + $0x1b0] sm:$0xff] %vm459, %v2844
      %2877 = vst.msk [vmem:[#allocation3 + $0x1c8] sm:$0xff] %vm459, %v2845
      %2878 = vst.msk [vmem:[#allocation3 + $0x1e0] sm:$0xff] %vm459, %v2846
      %2879 = vst.msk [vmem:[#allocation3 + $0x1f8] sm:$0xff] %vm459, %v2847
      %2880 = vst.msk [vmem:[#allocation3 + $0x210] sm:$0xff] %vm459, %v2848
      %2881 = vst.msk [vmem:[#allocation3 + $0x228] sm:$0xff] %vm459, %v2849
      %2882 = vst.msk [vmem:[#allocation3 + $0x240] sm:$0xff] %vm459, %v2850
      %2883 = vst.msk [vmem:[#allocation3 + $0x258] sm:$0xff] %vm459, %v2851
      %2884 = vst.msk [vmem:[#allocation3 + $0x270] sm:$0xff] %vm459, %v2852
      %2885 = vst.msk [vmem:[#allocation3 + $0x288] sm:$0xff] %vm459, %v2853
      %2886 = vst.msk [vmem:[#allocation3 + $0x2a0] sm:$0xff] %vm459, %v2854
      %2887 = vst.msk [vmem:[#allocation3 + $0x2b8] sm:$0xff] %vm459, %v2855
      %2888 = vst.msk [vmem:[#allocation3 + $0x2d0] sm:$0xff] %vm459, %v2856
      %2889 = vst.msk [vmem:[#allocation3 + $0x2e8] sm:$0xff] %vm459, %v2857
      %v2890 = vld [vmem:[#allocation2 + $0x1] sm:$0xff]
      %v2891 = vld [vmem:[#allocation2 + $0x9] sm:$0xff]
      %v2892 = vld [vmem:[#allocation2 + $0x19] sm:$0xff]
      %v2893 = vld [vmem:[#allocation2 + $0x21] sm:$0xff]
      %v2894 = vld [vmem:[#allocation2 + $0x31] sm:$0xff]
      %v2895 = vld [vmem:[#allocation2 + $0x39] sm:$0xff]
      %v2896 = vld [vmem:[#allocation2 + $0x49] sm:$0xff]
      %v2897 = vld [vmem:[#allocation2 + $0x51] sm:$0xff]
      %v2898 = vld [vmem:[#allocation2 + $0x61] sm:$0xff]
      %v2899 = vld [vmem:[#allocation2 + $0x69] sm:$0xff]
      %v2900 = vld [vmem:[#allocation2 + $0x79] sm:$0xff]
      %v2901 = vld [vmem:[#allocation2 + $0x81] sm:$0xff]
      %v2902 = vld [vmem:[#allocation2 + $0x91] sm:$0xff]
      %v2903 = vld [vmem:[#allocation2 + $0x99] sm:$0xff]
      %v2904 = vld [vmem:[#allocation2 + $0xa9] sm:$0xff]
      %v2905 = vld [vmem:[#allocation2 + $0xb1] sm:$0xff]
      %v2906 = vld [vmem:[#allocation2 + $0xc1] sm:$0xff]
      %v2907 = vld [vmem:[#allocation2 + $0xc9] sm:$0xff]
      %v2908 = vld [vmem:[#allocation2 + $0xd9] sm:$0xff]
      %v2909 = vld [vmem:[#allocation2 + $0xe1] sm:$0xff]
      %v2910 = vld [vmem:[#allocation2 + $0xf1] sm:$0xff]
      %v2911 = vld [vmem:[#allocation2 + $0xf9] sm:$0xff]
      %v2912 = vld [vmem:[#allocation2 + $0x109] sm:$0xff]
      %v2913 = vld [vmem:[#allocation2 + $0x111] sm:$0xff]
      %v2914 = vld [vmem:[#allocation2 + $0x121] sm:$0xff]
      %v2915 = vld [vmem:[#allocation2 + $0x129] sm:$0xff]
      %v2916 = vld [vmem:[#allocation2 + $0x139] sm:$0xff]
      %v2917 = vld [vmem:[#allocation2 + $0x141] sm:$0xff]
      %v2918 = vld [vmem:[#allocation2 + $0x151] sm:$0xff]
      %v2919 = vld [vmem:[#allocation2 + $0x159] sm:$0xff]
      %v2920 = vld [vmem:[#allocation2 + $0x169] sm:$0xff]
      %v2921 = vld [vmem:[#allocation2 + $0x171] sm:$0xff]
      %2954 = vrot.lane.b32.xlu0 %v2890, 32
      %v2955 = vpop.permute.xlu0 %2954
      %2956 = vrot.lane.b32.xlu0 %v2891, 32
      %v2957 = vpop.permute.xlu0 %2956
      %2958 = vrot.lane.b32.xlu0 %v2892, 32
      %v2959 = vpop.permute.xlu0 %2958
      %2960 = vrot.lane.b32.xlu0 %v2893, 32
      %v2961 = vpop.permute.xlu0 %2960
      %2962 = vrot.lane.b32.xlu0 %v2894, 32
      %v2963 = vpop.permute.xlu0 %2962
      %2964 = vrot.lane.b32.xlu0 %v2895, 32
      %v2965 = vpop.permute.xlu0 %2964
      %2966 = vrot.lane.b32.xlu0 %v2896, 32
      %v2967 = vpop.permute.xlu0 %2966
      %2968 = vrot.lane.b32.xlu0 %v2897, 32
      %v2969 = vpop.permute.xlu0 %2968
      %2970 = vrot.lane.b32.xlu0 %v2898, 32
      %v2971 = vpop.permute.xlu0 %2970
      %2972 = vrot.lane.b32.xlu0 %v2899, 32
      %v2973 = vpop.permute.xlu0 %2972
      %2974 = vrot.lane.b32.xlu0 %v2900, 32
      %v2975 = vpop.permute.xlu0 %2974
      %2976 = vrot.lane.b32.xlu0 %v2901, 32
      %v2977 = vpop.permute.xlu0 %2976
      %2978 = vrot.lane.b32.xlu0 %v2902, 32
      %v2979 = vpop.permute.xlu0 %2978
      %2980 = vrot.lane.b32.xlu0 %v2903, 32
      %v2981 = vpop.permute.xlu0 %2980
      %2982 = vrot.lane.b32.xlu0 %v2904, 32
      %v2983 = vpop.permute.xlu0 %2982
      %2984 = vrot.lane.b32.xlu0 %v2905, 32
      %v2985 = vpop.permute.xlu0 %2984
      %2986 = vrot.lane.b32.xlu0 %v2906, 32
      %v2987 = vpop.permute.xlu0 %2986
      %2988 = vrot.lane.b32.xlu0 %v2907, 32
      %v2989 = vpop.permute.xlu0 %2988
      %2990 = vrot.lane.b32.xlu0 %v2908, 32
      %v2991 = vpop.permute.xlu0 %2990
      %2992 = vrot.lane.b32.xlu0 %v2909, 32
      %v2993 = vpop.permute.xlu0 %2992
      %2994 = vrot.lane.b32.xlu0 %v2910, 32
      %v2995 = vpop.permute.xlu0 %2994
      %2996 = vrot.lane.b32.xlu0 %v2911, 32
      %v2997 = vpop.permute.xlu0 %2996
      %2998 = vrot.lane.b32.xlu0 %v2912, 32
      %v2999 = vpop.permute.xlu0 %2998
      %3000 = vrot.lane.b32.xlu0 %v2913, 32
      %v3001 = vpop.permute.xlu0 %3000
      %3002 = vrot.lane.b32.xlu0 %v2914, 32
      %v3003 = vpop.permute.xlu0 %3002
      %3004 = vrot.lane.b32.xlu0 %v2915, 32
      %v3005 = vpop.permute.xlu0 %3004
      %3006 = vrot.lane.b32.xlu0 %v2916, 32
      %v3007 = vpop.permute.xlu0 %3006
      %3008 = vrot.lane.b32.xlu0 %v2917, 32
      %v3009 = vpop.permute.xlu0 %3008
      %3010 = vrot.lane.b32.xlu0 %v2918, 32
      %v3011 = vpop.permute.xlu0 %3010
      %3012 = vrot.lane.b32.xlu0 %v2919, 32
      %v3013 = vpop.permute.xlu0 %3012
      %3014 = vrot.lane.b32.xlu0 %v2920, 32
      %v3015 = vpop.permute.xlu0 %3014
      %3016 = vrot.lane.b32.xlu0 %v2921, 32
      %v3017 = vpop.permute.xlu0 %3016
      %3050 = vst.msk [vmem:[#allocation3] sm:$0xff] %vm882, %v2955
      %3051 = vst.msk [vmem:[#allocation3 + $0x18] sm:$0xff] %vm882, %v2957
      %3052 = vst.msk [vmem:[#allocation3 + $0x30] sm:$0xff] %vm882, %v2959
      %3053 = vst.msk [vmem:[#allocation3 + $0x48] sm:$0xff] %vm882, %v2961
      %3054 = vst.msk [vmem:[#allocation3 + $0x60] sm:$0xff] %vm882, %v2963
      %3055 = vst.msk [vmem:[#allocation3 + $0x78] sm:$0xff] %vm882, %v2965
      %3056 = vst.msk [vmem:[#allocation3 + $0x90] sm:$0xff] %vm882, %v2967
      %3057 = vst.msk [vmem:[#allocation3 + $0xa8] sm:$0xff] %vm882, %v2969
      %3058 = vst.msk [vmem:[#allocation3 + $0xc0] sm:$0xff] %vm882, %v2971
      %3059 = vst.msk [vmem:[#allocation3 + $0xd8] sm:$0xff] %vm882, %v2973
      %3060 = vst.msk [vmem:[#allocation3 + $0xf0] sm:$0xff] %vm882, %v2975
      %3061 = vst.msk [vmem:[#allocation3 + $0x108] sm:$0xff] %vm882, %v2977
      %3062 = vst.msk [vmem:[#allocation3 + $0x120] sm:$0xff] %vm882, %v2979
      %3063 = vst.msk [vmem:[#allocation3 + $0x138] sm:$0xff] %vm882, %v2981
      %3064 = vst.msk [vmem:[#allocation3 + $0x150] sm:$0xff] %vm882, %v2983
      %3065 = vst.msk [vmem:[#allocation3 + $0x168] sm:$0xff] %vm882, %v2985
      %3066 = vst.msk [vmem:[#allocation3 + $0x180] sm:$0xff] %vm882, %v2987
      %3067 = vst.msk [vmem:[#allocation3 + $0x198] sm:$0xff] %vm882, %v2989
      %3068 = vst.msk [vmem:[#allocation3 + $0x1b0] sm:$0xff] %vm882, %v2991
      %3069 = vst.msk [vmem:[#allocation3 + $0x1c8] sm:$0xff] %vm882, %v2993
      %3070 = vst.msk [vmem:[#allocation3 + $0x1e0] sm:$0xff] %vm882, %v2995
      %3071 = vst.msk [vmem:[#allocation3 + $0x1f8] sm:$0xff] %vm882, %v2997
      %3072 = vst.msk [vmem:[#allocation3 + $0x210] sm:$0xff] %vm882, %v2999
      %3073 = vst.msk [vmem:[#allocation3 + $0x228] sm:$0xff] %vm882, %v3001
      %3074 = vst.msk [vmem:[#allocation3 + $0x240] sm:$0xff] %vm882, %v3003
      %3075 = vst.msk [vmem:[#allocation3 + $0x258] sm:$0xff] %vm882, %v3005
      %3076 = vst.msk [vmem:[#allocation3 + $0x270] sm:$0xff] %vm882, %v3007
      %3077 = vst.msk [vmem:[#allocation3 + $0x288] sm:$0xff] %vm882, %v3009
      %3078 = vst.msk [vmem:[#allocation3 + $0x2a0] sm:$0xff] %vm882, %v3011
      %3079 = vst.msk [vmem:[#allocation3 + $0x2b8] sm:$0xff] %vm882, %v3013
      %3080 = vst.msk [vmem:[#allocation3 + $0x2d0] sm:$0xff] %vm882, %v3015
      %3081 = vst.msk [vmem:[#allocation3 + $0x2e8] sm:$0xff] %vm882, %v3017
      %v3082 = vld [vmem:[#allocation2 + $0x2] sm:$0xff]
      %v3083 = vld [vmem:[#allocation2 + $0xa] sm:$0xff]
      %v3084 = vld [vmem:[#allocation2 + $0x1a] sm:$0xff]
      %v3085 = vld [vmem:[#allocation2 + $0x22] sm:$0xff]
      %v3086 = vld [vmem:[#allocation2 + $0x32] sm:$0xff]
      %v3087 = vld [vmem:[#allocation2 + $0x3a] sm:$0xff]
      %v3088 = vld [vmem:[#allocation2 + $0x4a] sm:$0xff]
      %v3089 = vld [vmem:[#allocation2 + $0x52] sm:$0xff]
      %v3090 = vld [vmem:[#allocation2 + $0x62] sm:$0xff]
      %v3091 = vld [vmem:[#allocation2 + $0x6a] sm:$0xff]
      %v3092 = vld [vmem:[#allocation2 + $0x7a] sm:$0xff]
      %v3093 = vld [vmem:[#allocation2 + $0x82] sm:$0xff]
      %v3094 = vld [vmem:[#allocation2 + $0x92] sm:$0xff]
      %v3095 = vld [vmem:[#allocation2 + $0x9a] sm:$0xff]
      %v3096 = vld [vmem:[#allocation2 + $0xaa] sm:$0xff]
      %v3097 = vld [vmem:[#allocation2 + $0xb2] sm:$0xff]
      %v3098 = vld [vmem:[#allocation2 + $0xc2] sm:$0xff]
      %v3099 = vld [vmem:[#allocation2 + $0xca] sm:$0xff]
      %v3100 = vld [vmem:[#allocation2 + $0xda] sm:$0xff]
      %v3101 = vld [vmem:[#allocation2 + $0xe2] sm:$0xff]
      %v3102 = vld [vmem:[#allocation2 + $0xf2] sm:$0xff]
      %v3103 = vld [vmem:[#allocation2 + $0xfa] sm:$0xff]
      %v3104 = vld [vmem:[#allocation2 + $0x10a] sm:$0xff]
      %v3105 = vld [vmem:[#allocation2 + $0x112] sm:$0xff]
      %v3106 = vld [vmem:[#allocation2 + $0x122] sm:$0xff]
      %v3107 = vld [vmem:[#allocation2 + $0x12a] sm:$0xff]
      %v3108 = vld [vmem:[#allocation2 + $0x13a] sm:$0xff]
      %v3109 = vld [vmem:[#allocation2 + $0x142] sm:$0xff]
      %v3110 = vld [vmem:[#allocation2 + $0x152] sm:$0xff]
      %v3111 = vld [vmem:[#allocation2 + $0x15a] sm:$0xff]
      %v3112 = vld [vmem:[#allocation2 + $0x16a] sm:$0xff]
      %v3113 = vld [vmem:[#allocation2 + $0x172] sm:$0xff]
      %3146 = vrot.lane.b32.xlu0 %v3082, 64
      %v3147 = vpop.permute.xlu0 %3146
      %3148 = vrot.lane.b32.xlu0 %v3083, 64
      %v3149 = vpop.permute.xlu0 %3148
      %3150 = vrot.lane.b32.xlu0 %v3084, 64
      %v3151 = vpop.permute.xlu0 %3150
      %3152 = vrot.lane.b32.xlu0 %v3085, 64
      %v3153 = vpop.permute.xlu0 %3152
      %3154 = vrot.lane.b32.xlu0 %v3086, 64
      %v3155 = vpop.permute.xlu0 %3154
      %3156 = vrot.lane.b32.xlu0 %v3087, 64
      %v3157 = vpop.permute.xlu0 %3156
      %3158 = vrot.lane.b32.xlu0 %v3088, 64
      %v3159 = vpop.permute.xlu0 %3158
      %3160 = vrot.lane.b32.xlu0 %v3089, 64
      %v3161 = vpop.permute.xlu0 %3160
      %3162 = vrot.lane.b32.xlu0 %v3090, 64
      %v3163 = vpop.permute.xlu0 %3162
      %3164 = vrot.lane.b32.xlu0 %v3091, 64
      %v3165 = vpop.permute.xlu0 %3164
      %3166 = vrot.lane.b32.xlu0 %v3092, 64
      %v3167 = vpop.permute.xlu0 %3166
      %3168 = vrot.lane.b32.xlu0 %v3093, 64
      %v3169 = vpop.permute.xlu0 %3168
      %3170 = vrot.lane.b32.xlu0 %v3094, 64
      %v3171 = vpop.permute.xlu0 %3170
      %3172 = vrot.lane.b32.xlu0 %v3095, 64
      %v3173 = vpop.permute.xlu0 %3172
      %3174 = vrot.lane.b32.xlu0 %v3096, 64
      %v3175 = vpop.permute.xlu0 %3174
      %3176 = vrot.lane.b32.xlu0 %v3097, 64
      %v3177 = vpop.permute.xlu0 %3176
      %3178 = vrot.lane.b32.xlu0 %v3098, 64
      %v3179 = vpop.permute.xlu0 %3178
      %3180 = vrot.lane.b32.xlu0 %v3099, 64
      %v3181 = vpop.permute.xlu0 %3180
      %3182 = vrot.lane.b32.xlu0 %v3100, 64
      %v3183 = vpop.permute.xlu0 %3182
      %3184 = vrot.lane.b32.xlu0 %v3101, 64
      %v3185 = vpop.permute.xlu0 %3184
      %3186 = vrot.lane.b32.xlu0 %v3102, 64
      %v3187 = vpop.permute.xlu0 %3186
      %3188 = vrot.lane.b32.xlu0 %v3103, 64
      %v3189 = vpop.permute.xlu0 %3188
      %3190 = vrot.lane.b32.xlu0 %v3104, 64
      %v3191 = vpop.permute.xlu0 %3190
      %3192 = vrot.lane.b32.xlu0 %v3105, 64
      %v3193 = vpop.permute.xlu0 %3192
      %3194 = vrot.lane.b32.xlu0 %v3106, 64
      %v3195 = vpop.permute.xlu0 %3194
      %3196 = vrot.lane.b32.xlu0 %v3107, 64
      %v3197 = vpop.permute.xlu0 %3196
      %3198 = vrot.lane.b32.xlu0 %v3108, 64
      %v3199 = vpop.permute.xlu0 %3198
      %3200 = vrot.lane.b32.xlu0 %v3109, 64
      %v3201 = vpop.permute.xlu0 %3200
      %3202 = vrot.lane.b32.xlu0 %v3110, 64
      %v3203 = vpop.permute.xlu0 %3202
      %3204 = vrot.lane.b32.xlu0 %v3111, 64
      %v3205 = vpop.permute.xlu0 %3204
      %3206 = vrot.lane.b32.xlu0 %v3112, 64
      %v3207 = vpop.permute.xlu0 %3206
      %3208 = vrot.lane.b32.xlu0 %v3113, 64
      %v3209 = vpop.permute.xlu0 %3208
      %3242 = vst.msk [vmem:[#allocation3] sm:$0xff] %vm1075, %v3147
      %3243 = vst.msk [vmem:[#allocation3 + $0x18] sm:$0xff] %vm1075, %v3149
      %3244 = vst.msk [vmem:[#allocation3 + $0x30] sm:$0xff] %vm1075, %v3151
      %3245 = vst.msk [vmem:[#allocation3 + $0x48] sm:$0xff] %vm1075, %v3153
      %3246 = vst.msk [vmem:[#allocation3 + $0x60] sm:$0xff] %vm1075, %v3155
      %3247 = vst.msk [vmem:[#allocation3 + $0x78] sm:$0xff] %vm1075, %v3157
      %3248 = vst.msk [vmem:[#allocation3 + $0x90] sm:$0xff] %vm1075, %v3159
      %3249 = vst.msk [vmem:[#allocation3 + $0xa8] sm:$0xff] %vm1075, %v3161
      %3250 = vst.msk [vmem:[#allocation3 + $0xc0] sm:$0xff] %vm1075, %v3163
      %3251 = vst.msk [vmem:[#allocation3 + $0xd8] sm:$0xff] %vm1075, %v3165
      %3252 = vst.msk [vmem:[#allocation3 + $0xf0] sm:$0xff] %vm1075, %v3167
      %3253 = vst.msk [vmem:[#allocation3 + $0x108] sm:$0xff] %vm1075, %v3169
      %3254 = vst.msk [vmem:[#allocation3 + $0x120] sm:$0xff] %vm1075, %v3171
      %3255 = vst.msk [vmem:[#allocation3 + $0x138] sm:$0xff] %vm1075, %v3173
      %3256 = vst.msk [vmem:[#allocation3 + $0x150] sm:$0xff] %vm1075, %v3175
      %3257 = vst.msk [vmem:[#allocation3 + $0x168] sm:$0xff] %vm1075, %v3177
      %3258 = vst.msk [vmem:[#allocation3 + $0x180] sm:$0xff] %vm1075, %v3179
      %3259 = vst.msk [vmem:[#allocation3 + $0x198] sm:$0xff] %vm1075, %v3181
      %3260 = vst.msk [vmem:[#allocation3 + $0x1b0] sm:$0xff] %vm1075, %v3183
      %3261 = vst.msk [vmem:[#allocation3 + $0x1c8] sm:$0xff] %vm1075, %v3185
      %3262 = vst.msk [vmem:[#allocation3 + $0x1e0] sm:$0xff] %vm1075, %v3187
      %3263 = vst.msk [vmem:[#allocation3 + $0x1f8] sm:$0xff] %vm1075, %v3189
      %3264 = vst.msk [vmem:[#allocation3 + $0x210] sm:$0xff] %vm1075, %v3191
      %3265 = vst.msk [vmem:[#allocation3 + $0x228] sm:$0xff] %vm1075, %v3193
      %3266 = vst.msk [vmem:[#allocation3 + $0x240] sm:$0xff] %vm1075, %v3195
      %3267 = vst.msk [vmem:[#allocation3 + $0x258] sm:$0xff] %vm1075, %v3197
      %3268 = vst.msk [vmem:[#allocation3 + $0x270] sm:$0xff] %vm1075, %v3199
      %3269 = vst.msk [vmem:[#allocation3 + $0x288] sm:$0xff] %vm1075, %v3201
      %3270 = vst.msk [vmem:[#allocation3 + $0x2a0] sm:$0xff] %vm1075, %v3203
      %3271 = vst.msk [vmem:[#allocation3 + $0x2b8] sm:$0xff] %vm1075, %v3205
      %3272 = vst.msk [vmem:[#allocation3 + $0x2d0] sm:$0xff] %vm1075, %v3207
      %3273 = vst.msk [vmem:[#allocation3 + $0x2e8] sm:$0xff] %vm1075, %v3209
      %v3274 = vld [vmem:[%s625] sm:$0xff]
      %v3275 = vld [vmem:[%s625 + $0x8] sm:$0xff]
      %v3276 = vld [vmem:[%s625 + $0x18] sm:$0xff]
      %v3277 = vld [vmem:[%s625 + $0x20] sm:$0xff]
      %v3278 = vld [vmem:[%s625 + $0x30] sm:$0xff]
      %v3279 = vld [vmem:[%s625 + $0x38] sm:$0xff]
      %v3280 = vld [vmem:[%s625 + $0x48] sm:$0xff]
      %v3281 = vld [vmem:[%s625 + $0x50] sm:$0xff]
      %v3282 = vld [vmem:[%s625 + $0x60] sm:$0xff]
      %v3283 = vld [vmem:[%s625 + $0x68] sm:$0xff]
      %v3284 = vld [vmem:[%s625 + $0x78] sm:$0xff]
      %v3285 = vld [vmem:[%s625 + $0x80] sm:$0xff]
      %v3286 = vld [vmem:[%s625 + $0x90] sm:$0xff]
      %v3287 = vld [vmem:[%s625 + $0x98] sm:$0xff]
      %v3288 = vld [vmem:[%s625 + $0xa8] sm:$0xff]
      %v3289 = vld [vmem:[%s625 + $0xb0] sm:$0xff]
      %v3290 = vld [vmem:[%s625 + $0xc0] sm:$0xff]
      %v3291 = vld [vmem:[%s625 + $0xc8] sm:$0xff]
      %v3292 = vld [vmem:[%s625 + $0xd8] sm:$0xff]
      %v3293 = vld [vmem:[%s625 + $0xe0] sm:$0xff]
      %v3294 = vld [vmem:[%s625 + $0xf0] sm:$0xff]
      %v3295 = vld [vmem:[%s625 + $0xf8] sm:$0xff]
      %v3296 = vld [vmem:[%s625 + $0x108] sm:$0xff]
      %v3297 = vld [vmem:[%s625 + $0x110] sm:$0xff]
      %v3298 = vld [vmem:[%s625 + $0x120] sm:$0xff]
      %v3299 = vld [vmem:[%s625 + $0x128] sm:$0xff]
      %v3300 = vld [vmem:[%s625 + $0x138] sm:$0xff]
      %v3301 = vld [vmem:[%s625 + $0x140] sm:$0xff]
      %v3302 = vld [vmem:[%s625 + $0x150] sm:$0xff]
      %v3303 = vld [vmem:[%s625 + $0x158] sm:$0xff]
      %v3304 = vld [vmem:[%s625 + $0x168] sm:$0xff]
      %v3305 = vld [vmem:[%s625 + $0x170] sm:$0xff]
      %3338 = vrot.lane.b32.xlu0 %v3274, 96
      %v3339 = vpop.permute.xlu0 %3338
      %3340 = vrot.lane.b32.xlu0 %v3275, 96
      %v3341 = vpop.permute.xlu0 %3340
      %3342 = vrot.lane.b32.xlu0 %v3276, 96
      %v3343 = vpop.permute.xlu0 %3342
      %3344 = vrot.lane.b32.xlu0 %v3277, 96
      %v3345 = vpop.permute.xlu0 %3344
      %3346 = vrot.lane.b32.xlu0 %v3278, 96
      %v3347 = vpop.permute.xlu0 %3346
      %3348 = vrot.lane.b32.xlu0 %v3279, 96
      %v3349 = vpop.permute.xlu0 %3348
      %3350 = vrot.lane.b32.xlu0 %v3280, 96
      %v3351 = vpop.permute.xlu0 %3350
      %3352 = vrot.lane.b32.xlu0 %v3281, 96
      %v3353 = vpop.permute.xlu0 %3352
      %3354 = vrot.lane.b32.xlu0 %v3282, 96
      %v3355 = vpop.permute.xlu0 %3354
      %3356 = vrot.lane.b32.xlu0 %v3283, 96
      %v3357 = vpop.permute.xlu0 %3356
      %3358 = vrot.lane.b32.xlu0 %v3284, 96
      %v3359 = vpop.permute.xlu0 %3358
      %3360 = vrot.lane.b32.xlu0 %v3285, 96
      %v3361 = vpop.permute.xlu0 %3360
      %3362 = vrot.lane.b32.xlu0 %v3286, 96
      %v3363 = vpop.permute.xlu0 %3362
      %3364 = vrot.lane.b32.xlu0 %v3287, 96
      %v3365 = vpop.permute.xlu0 %3364
      %3366 = vrot.lane.b32.xlu0 %v3288, 96
      %v3367 = vpop.permute.xlu0 %3366
      %3368 = vrot.lane.b32.xlu0 %v3289, 96
      %v3369 = vpop.permute.xlu0 %3368
      %3370 = vrot.lane.b32.xlu0 %v3290, 96
      %v3371 = vpop.permute.xlu0 %3370
      %3372 = vrot.lane.b32.xlu0 %v3291, 96
      %v3373 = vpop.permute.xlu0 %3372
      %3374 = vrot.lane.b32.xlu0 %v3292, 96
      %v3375 = vpop.permute.xlu0 %3374
      %3376 = vrot.lane.b32.xlu0 %v3293, 96
      %v3377 = vpop.permute.xlu0 %3376
      %3378 = vrot.lane.b32.xlu0 %v3294, 96
      %v3379 = vpop.permute.xlu0 %3378
      %3380 = vrot.lane.b32.xlu0 %v3295, 96
      %v3381 = vpop.permute.xlu0 %3380
      %3382 = vrot.lane.b32.xlu0 %v3296, 96
      %v3383 = vpop.permute.xlu0 %3382
      %3384 = vrot.lane.b32.xlu0 %v3297, 96
      %v3385 = vpop.permute.xlu0 %3384
      %3386 = vrot.lane.b32.xlu0 %v3298, 96
      %v3387 = vpop.permute.xlu0 %3386
      %3388 = vrot.lane.b32.xlu0 %v3299, 96
      %v3389 = vpop.permute.xlu0 %3388
      %3390 = vrot.lane.b32.xlu0 %v3300, 96
      %v3391 = vpop.permute.xlu0 %3390
      %3392 = vrot.lane.b32.xlu0 %v3301, 96
      %v3393 = vpop.permute.xlu0 %3392
      %3394 = vrot.lane.b32.xlu0 %v3302, 96
      %v3395 = vpop.permute.xlu0 %3394
      %3396 = vrot.lane.b32.xlu0 %v3303, 96
      %v3397 = vpop.permute.xlu0 %3396
      %3398 = vrot.lane.b32.xlu0 %v3304, 96
      %v3399 = vpop.permute.xlu0 %3398
      %3400 = vrot.lane.b32.xlu0 %v3305, 96
      %v3401 = vpop.permute.xlu0 %3400
      %3434 = vst.msk [vmem:[#allocation3] sm:$0xff] %vm1268, %v3339
      %3435 = vst.msk [vmem:[#allocation3 + $0x18] sm:$0xff] %vm1268, %v3341
      %3436 = vst.msk [vmem:[#allocation3 + $0x30] sm:$0xff] %vm1268, %v3343
      %3437 = vst.msk [vmem:[#allocation3 + $0x48] sm:$0xff] %vm1268, %v3345
      %3438 = vst.msk [vmem:[#allocation3 + $0x60] sm:$0xff] %vm1268, %v3347
      %3439 = vst.msk [vmem:[#allocation3 + $0x78] sm:$0xff] %vm1268, %v3349
      %3440 = vst.msk [vmem:[#allocation3 + $0x90] sm:$0xff] %vm1268, %v3351
      %3441 = vst.msk [vmem:[#allocation3 + $0xa8] sm:$0xff] %vm1268, %v3353
      %3442 = vst.msk [vmem:[#allocation3 + $0xc0] sm:$0xff] %vm1268, %v3355
      %3443 = vst.msk [vmem:[#allocation3 + $0xd8] sm:$0xff] %vm1268, %v3357
      %3444 = vst.msk [vmem:[#allocation3 + $0xf0] sm:$0xff] %vm1268, %v3359
      %3445 = vst.msk [vmem:[#allocation3 + $0x108] sm:$0xff] %vm1268, %v3361
      %3446 = vst.msk [vmem:[#allocation3 + $0x120] sm:$0xff] %vm1268, %v3363
      %3447 = vst.msk [vmem:[#allocation3 + $0x138] sm:$0xff] %vm1268, %v3365
      %3448 = vst.msk [vmem:[#allocation3 + $0x150] sm:$0xff] %vm1268, %v3367
      %3449 = vst.msk [vmem:[#allocation3 + $0x168] sm:$0xff] %vm1268, %v3369
      %3450 = vst.msk [vmem:[#allocation3 + $0x180] sm:$0xff] %vm1268, %v3371
      %3451 = vst.msk [vmem:[#allocation3 + $0x198] sm:$0xff] %vm1268, %v3373
      %3452 = vst.msk [vmem:[#allocation3 + $0x1b0] sm:$0xff] %vm1268, %v3375
      %3453 = vst.msk [vmem:[#allocation3 + $0x1c8] sm:$0xff] %vm1268, %v3377
      %3454 = vst.msk [vmem:[#allocation3 + $0x1e0] sm:$0xff] %vm1268, %v3379
      %3455 = vst.msk [vmem:[#allocation3 + $0x1f8] sm:$0xff] %vm1268, %v3381
      %3456 = vst.msk [vmem:[#allocation3 + $0x210] sm:$0xff] %vm1268, %v3383
      %3457 = vst.msk [vmem:[#allocation3 + $0x228] sm:$0xff] %vm1268, %v3385
      %3458 = vst.msk [vmem:[#allocation3 + $0x240] sm:$0xff] %vm1268, %v3387
      %3459 = vst.msk [vmem:[#allocation3 + $0x258] sm:$0xff] %vm1268, %v3389
      %3460 = vst.msk [vmem:[#allocation3 + $0x270] sm:$0xff] %vm1268, %v3391
      %3461 = vst.msk [vmem:[#allocation3 + $0x288] sm:$0xff] %vm1268, %v3393
      %3462 = vst.msk [vmem:[#allocation3 + $0x2a0] sm:$0xff] %vm1268, %v3395
      %3463 = vst.msk [vmem:[#allocation3 + $0x2b8] sm:$0xff] %vm1268, %v3397
      %3464 = vst.msk [vmem:[#allocation3 + $0x2d0] sm:$0xff] %vm1268, %v3399
      %3465 = vst.msk [vmem:[#allocation3 + $0x2e8] sm:$0xff] %vm1268, %v3401
      %v3466 = vld [vmem:[%s625 + $0x1] sm:$0xff]
      %v3467 = vld [vmem:[%s625 + $0x9] sm:$0xff]
      %v3468 = vld [vmem:[%s625 + $0x19] sm:$0xff]
      %v3469 = vld [vmem:[%s625 + $0x21] sm:$0xff]
      %v3470 = vld [vmem:[%s625 + $0x31] sm:$0xff]
      %v3471 = vld [vmem:[%s625 + $0x39] sm:$0xff]
      %v3472 = vld [vmem:[%s625 + $0x49] sm:$0xff]
      %v3473 = vld [vmem:[%s625 + $0x51] sm:$0xff]
      %v3474 = vld [vmem:[%s625 + $0x61] sm:$0xff]
      %v3475 = vld [vmem:[%s625 + $0x69] sm:$0xff]
      %v3476 = vld [vmem:[%s625 + $0x79] sm:$0xff]
      %v3477 = vld [vmem:[%s625 + $0x81] sm:$0xff]
      %v3478 = vld [vmem:[%s625 + $0x91] sm:$0xff]
      %v3479 = vld [vmem:[%s625 + $0x99] sm:$0xff]
      %v3480 = vld [vmem:[%s625 + $0xa9] sm:$0xff]
      %v3481 = vld [vmem:[%s625 + $0xb1] sm:$0xff]
      %v3482 = vld [vmem:[%s625 + $0xc1] sm:$0xff]
      %v3483 = vld [vmem:[%s625 + $0xc9] sm:$0xff]
      %v3484 = vld [vmem:[%s625 + $0xd9] sm:$0xff]
      %v3485 = vld [vmem:[%s625 + $0xe1] sm:$0xff]
      %v3486 = vld [vmem:[%s625 + $0xf1] sm:$0xff]
      %v3487 = vld [vmem:[%s625 + $0xf9] sm:$0xff]
      %v3488 = vld [vmem:[%s625 + $0x109] sm:$0xff]
      %v3489 = vld [vmem:[%s625 + $0x111] sm:$0xff]
      %v3490 = vld [vmem:[%s625 + $0x121] sm:$0xff]
      %v3491 = vld [vmem:[%s625 + $0x129] sm:$0xff]
      %v3492 = vld [vmem:[%s625 + $0x139] sm:$0xff]
      %v3493 = vld [vmem:[%s625 + $0x141] sm:$0xff]
      %v3494 = vld [vmem:[%s625 + $0x151] sm:$0xff]
      %v3495 = vld [vmem:[%s625 + $0x159] sm:$0xff]
      %v3496 = vld [vmem:[%s625 + $0x169] sm:$0xff]
      %v3497 = vld [vmem:[%s625 + $0x171] sm:$0xff]
      %3498 = vst.msk [vmem:[#allocation3 + $0x8] sm:$0xff] %vm459, %v3466
      %3499 = vst.msk [vmem:[#allocation3 + $0x20] sm:$0xff] %vm459, %v3467
      %3500 = vst.msk [vmem:[#allocation3 + $0x38] sm:$0xff] %vm459, %v3468
      %3501 = vst.msk [vmem:[#allocation3 + $0x50] sm:$0xff] %vm459, %v3469
      %3502 = vst.msk [vmem:[#allocation3 + $0x68] sm:$0xff] %vm459, %v3470
      %3503 = vst.msk [vmem:[#allocation3 + $0x80] sm:$0xff] %vm459, %v3471
      %3504 = vst.msk [vmem:[#allocation3 + $0x98] sm:$0xff] %vm459, %v3472
      %3505 = vst.msk [vmem:[#allocation3 + $0xb0] sm:$0xff] %vm459, %v3473
      %3506 = vst.msk [vmem:[#allocation3 + $0xc8] sm:$0xff] %vm459, %v3474
      %3507 = vst.msk [vmem:[#allocation3 + $0xe0] sm:$0xff] %vm459, %v3475
      %3508 = vst.msk [vmem:[#allocation3 + $0xf8] sm:$0xff] %vm459, %v3476
      %3509 = vst.msk [vmem:[#allocation3 + $0x110] sm:$0xff] %vm459, %v3477
      %3510 = vst.msk [vmem:[#allocation3 + $0x128] sm:$0xff] %vm459, %v3478
      %3511 = vst.msk [vmem:[#allocation3 + $0x140] sm:$0xff] %vm459, %v3479
      %3512 = vst.msk [vmem:[#allocation3 + $0x158] sm:$0xff] %vm459, %v3480
      %3513 = vst.msk [vmem:[#allocation3 + $0x170] sm:$0xff] %vm459, %v3481
      %3514 = vst.msk [vmem:[#allocation3 + $0x188] sm:$0xff] %vm459, %v3482
      %3515 = vst.msk [vmem:[#allocation3 + $0x1a0] sm:$0xff] %vm459, %v3483
      %3516 = vst.msk [vmem:[#allocation3 + $0x1b8] sm:$0xff] %vm459, %v3484
      %3517 = vst.msk [vmem:[#allocation3 + $0x1d0] sm:$0xff] %vm459, %v3485
      %3518 = vst.msk [vmem:[#allocation3 + $0x1e8] sm:$0xff] %vm459, %v3486
      %3519 = vst.msk [vmem:[#allocation3 + $0x200] sm:$0xff] %vm459, %v3487
      %3520 = vst.msk [vmem:[#allocation3 + $0x218] sm:$0xff] %vm459, %v3488
      %3521 = vst.msk [vmem:[#allocation3 + $0x230] sm:$0xff] %vm459, %v3489
      %3522 = vst.msk [vmem:[#allocation3 + $0x248] sm:$0xff] %vm459, %v3490
      %3523 = vst.msk [vmem:[#allocation3 + $0x260] sm:$0xff] %vm459, %v3491
      %3524 = vst.msk [vmem:[#allocation3 + $0x278] sm:$0xff] %vm459, %v3492
      %3525 = vst.msk [vmem:[#allocation3 + $0x290] sm:$0xff] %vm459, %v3493
      %3526 = vst.msk [vmem:[#allocation3 + $0x2a8] sm:$0xff] %vm459, %v3494
      %3527 = vst.msk [vmem:[#allocation3 + $0x2c0] sm:$0xff] %vm459, %v3495
      %3528 = vst.msk [vmem:[#allocation3 + $0x2d8] sm:$0xff] %vm459, %v3496
      %3529 = vst.msk [vmem:[#allocation3 + $0x2f0] sm:$0xff] %vm459, %v3497
      %v3530 = vld [vmem:[%s625 + $0x2] sm:$0xff]
      %v3531 = vld [vmem:[%s625 + $0xa] sm:$0xff]
      %v3532 = vld [vmem:[%s625 + $0x1a] sm:$0xff]
      %v3533 = vld [vmem:[%s625 + $0x22] sm:$0xff]
      %v3534 = vld [vmem:[%s625 + $0x32] sm:$0xff]
      %v3535 = vld [vmem:[%s625 + $0x3a] sm:$0xff]
      %v3536 = vld [vmem:[%s625 + $0x4a] sm:$0xff]
      %v3537 = vld [vmem:[%s625 + $0x52] sm:$0xff]
      %v3538 = vld [vmem:[%s625 + $0x62] sm:$0xff]
      %v3539 = vld [vmem:[%s625 + $0x6a] sm:$0xff]
      %v3540 = vld [vmem:[%s625 + $0x7a] sm:$0xff]
      %v3541 = vld [vmem:[%s625 + $0x82] sm:$0xff]
      %v3542 = vld [vmem:[%s625 + $0x92] sm:$0xff]
      %v3543 = vld [vmem:[%s625 + $0x9a] sm:$0xff]
      %v3544 = vld [vmem:[%s625 + $0xaa] sm:$0xff]
      %v3545 = vld [vmem:[%s625 + $0xb2] sm:$0xff]
      %v3546 = vld [vmem:[%s625 + $0xc2] sm:$0xff]
      %v3547 = vld [vmem:[%s625 + $0xca] sm:$0xff]
      %v3548 = vld [vmem:[%s625 + $0xda] sm:$0xff]
      %v3549 = vld [vmem:[%s625 + $0xe2] sm:$0xff]
      %v3550 = vld [vmem:[%s625 + $0xf2] sm:$0xff]
      %v3551 = vld [vmem:[%s625 + $0xfa] sm:$0xff]
      %v3552 = vld [vmem:[%s625 + $0x10a] sm:$0xff]
      %v3553 = vld [vmem:[%s625 + $0x112] sm:$0xff]
      %v3554 = vld [vmem:[%s625 + $0x122] sm:$0xff]
      %v3555 = vld [vmem:[%s625 + $0x12a] sm:$0xff]
      %v3556 = vld [vmem:[%s625 + $0x13a] sm:$0xff]
      %v3557 = vld [vmem:[%s625 + $0x142] sm:$0xff]
      %v3558 = vld [vmem:[%s625 + $0x152] sm:$0xff]
      %v3559 = vld [vmem:[%s625 + $0x15a] sm:$0xff]
      %v3560 = vld [vmem:[%s625 + $0x16a] sm:$0xff]
      %v3561 = vld [vmem:[%s625 + $0x172] sm:$0xff]
      %3594 = vrot.lane.b32.xlu0 %v3530, 32
      %v3595 = vpop.permute.xlu0 %3594
      %3596 = vrot.lane.b32.xlu0 %v3531, 32
      %v3597 = vpop.permute.xlu0 %3596
      %3598 = vrot.lane.b32.xlu0 %v3532, 32
      %v3599 = vpop.permute.xlu0 %3598
      %3600 = vrot.lane.b32.xlu0 %v3533, 32
      %v3601 = vpop.permute.xlu0 %3600
      %3602 = vrot.lane.b32.xlu0 %v3534, 32
      %v3603 = vpop.permute.xlu0 %3602
      %3604 = vrot.lane.b32.xlu0 %v3535, 32
      %v3605 = vpop.permute.xlu0 %3604
      %3606 = vrot.lane.b32.xlu0 %v3536, 32
      %v3607 = vpop.permute.xlu0 %3606
      %3608 = vrot.lane.b32.xlu0 %v3537, 32
      %v3609 = vpop.permute.xlu0 %3608
      %3610 = vrot.lane.b32.xlu0 %v3538, 32
      %v3611 = vpop.permute.xlu0 %3610
      %3612 = vrot.lane.b32.xlu0 %v3539, 32
      %v3613 = vpop.permute.xlu0 %3612
      %3614 = vrot.lane.b32.xlu0 %v3540, 32
      %v3615 = vpop.permute.xlu0 %3614
      %3616 = vrot.lane.b32.xlu0 %v3541, 32
      %v3617 = vpop.permute.xlu0 %3616
      %3618 = vrot.lane.b32.xlu0 %v3542, 32
      %v3619 = vpop.permute.xlu0 %3618
      %3620 = vrot.lane.b32.xlu0 %v3543, 32
      %v3621 = vpop.permute.xlu0 %3620
      %3622 = vrot.lane.b32.xlu0 %v3544, 32
      %v3623 = vpop.permute.xlu0 %3622
      %3624 = vrot.lane.b32.xlu0 %v3545, 32
      %v3625 = vpop.permute.xlu0 %3624
      %3626 = vrot.lane.b32.xlu0 %v3546, 32
      %v3627 = vpop.permute.xlu0 %3626
      %3628 = vrot.lane.b32.xlu0 %v3547, 32
      %v3629 = vpop.permute.xlu0 %3628
      %3630 = vrot.lane.b32.xlu0 %v3548, 32
      %v3631 = vpop.permute.xlu0 %3630
      %3632 = vrot.lane.b32.xlu0 %v3549, 32
      %v3633 = vpop.permute.xlu0 %3632
      %3634 = vrot.lane.b32.xlu0 %v3550, 32
      %v3635 = vpop.permute.xlu0 %3634
      %3636 = vrot.lane.b32.xlu0 %v3551, 32
      %v3637 = vpop.permute.xlu0 %3636
      %3638 = vrot.lane.b32.xlu0 %v3552, 32
      %v3639 = vpop.permute.xlu0 %3638
      %3640 = vrot.lane.b32.xlu0 %v3553, 32
      %v3641 = vpop.permute.xlu0 %3640
      %3642 = vrot.lane.b32.xlu0 %v3554, 32
      %v3643 = vpop.permute.xlu0 %3642
      %3644 = vrot.lane.b32.xlu0 %v3555, 32
      %v3645 = vpop.permute.xlu0 %3644
      %3646 = vrot.lane.b32.xlu0 %v3556, 32
      %v3647 = vpop.permute.xlu0 %3646
      %3648 = vrot.lane.b32.xlu0 %v3557, 32
      %v3649 = vpop.permute.xlu0 %3648
      %3650 = vrot.lane.b32.xlu0 %v3558, 32
      %v3651 = vpop.permute.xlu0 %3650
      %3652 = vrot.lane.b32.xlu0 %v3559, 32
      %v3653 = vpop.permute.xlu0 %3652
      %3654 = vrot.lane.b32.xlu0 %v3560, 32
      %v3655 = vpop.permute.xlu0 %3654
      %3656 = vrot.lane.b32.xlu0 %v3561, 32
      %v3657 = vpop.permute.xlu0 %3656
      %3690 = vst.msk [vmem:[#allocation3 + $0x8] sm:$0xff] %vm882, %v3595
      %3691 = vst.msk [vmem:[#allocation3 + $0x20] sm:$0xff] %vm882, %v3597
      %3692 = vst.msk [vmem:[#allocation3 + $0x38] sm:$0xff] %vm882, %v3599
      %3693 = vst.msk [vmem:[#allocation3 + $0x50] sm:$0xff] %vm882, %v3601
      %3694 = vst.msk [vmem:[#allocation3 + $0x68] sm:$0xff] %vm882, %v3603
      %3695 = vst.msk [vmem:[#allocation3 + $0x80] sm:$0xff] %vm882, %v3605
      %3696 = vst.msk [vmem:[#allocation3 + $0x98] sm:$0xff] %vm882, %v3607
      %3697 = vst.msk [vmem:[#allocation3 + $0xb0] sm:$0xff] %vm882, %v3609
      %3698 = vst.msk [vmem:[#allocation3 + $0xc8] sm:$0xff] %vm882, %v3611
      %3699 = vst.msk [vmem:[#allocation3 + $0xe0] sm:$0xff] %vm882, %v3613
      %3700 = vst.msk [vmem:[#allocation3 + $0xf8] sm:$0xff] %vm882, %v3615
      %3701 = vst.msk [vmem:[#allocation3 + $0x110] sm:$0xff] %vm882, %v3617
      %3702 = vst.msk [vmem:[#allocation3 + $0x128] sm:$0xff] %vm882, %v3619
      %3703 = vst.msk [vmem:[#allocation3 + $0x140] sm:$0xff] %vm882, %v3621
      %3704 = vst.msk [vmem:[#allocation3 + $0x158] sm:$0xff] %vm882, %v3623
      %3705 = vst.msk [vmem:[#allocation3 + $0x170] sm:$0xff] %vm882, %v3625
      %3706 = vst.msk [vmem:[#allocation3 + $0x188] sm:$0xff] %vm882, %v3627
      %3707 = vst.msk [vmem:[#allocation3 + $0x1a0] sm:$0xff] %vm882, %v3629
      %3708 = vst.msk [vmem:[#allocation3 + $0x1b8] sm:$0xff] %vm882, %v3631
      %3709 = vst.msk [vmem:[#allocation3 + $0x1d0] sm:$0xff] %vm882, %v3633
      %3710 = vst.msk [vmem:[#allocation3 + $0x1e8] sm:$0xff] %vm882, %v3635
      %3711 = vst.msk [vmem:[#allocation3 + $0x200] sm:$0xff] %vm882, %v3637
      %3712 = vst.msk [vmem:[#allocation3 + $0x218] sm:$0xff] %vm882, %v3639
      %3713 = vst.msk [vmem:[#allocation3 + $0x230] sm:$0xff] %vm882, %v3641
      %3714 = vst.msk [vmem:[#allocation3 + $0x248] sm:$0xff] %vm882, %v3643
      %3715 = vst.msk [vmem:[#allocation3 + $0x260] sm:$0xff] %vm882, %v3645
      %3716 = vst.msk [vmem:[#allocation3 + $0x278] sm:$0xff] %vm882, %v3647
      %3717 = vst.msk [vmem:[#allocation3 + $0x290] sm:$0xff] %vm882, %v3649
      %3718 = vst.msk [vmem:[#allocation3 + $0x2a8] sm:$0xff] %vm882, %v3651
      %3719 = vst.msk [vmem:[#allocation3 + $0x2c0] sm:$0xff] %vm882, %v3653
      %3720 = vst.msk [vmem:[#allocation3 + $0x2d8] sm:$0xff] %vm882, %v3655
      %3721 = vst.msk [vmem:[#allocation3 + $0x2f0] sm:$0xff] %vm882, %v3657
      %v3722 = vld [vmem:[%s1557] sm:$0xff]
      %v3723 = vld [vmem:[%s1557 + $0x8] sm:$0xff]
      %v3724 = vld [vmem:[%s1557 + $0x18] sm:$0xff]
      %v3725 = vld [vmem:[%s1557 + $0x20] sm:$0xff]
      %v3726 = vld [vmem:[%s1557 + $0x30] sm:$0xff]
      %v3727 = vld [vmem:[%s1557 + $0x38] sm:$0xff]
      %v3728 = vld [vmem:[%s1557 + $0x48] sm:$0xff]
      %v3729 = vld [vmem:[%s1557 + $0x50] sm:$0xff]
      %v3730 = vld [vmem:[%s1557 + $0x60] sm:$0xff]
      %v3731 = vld [vmem:[%s1557 + $0x68] sm:$0xff]
      %v3732 = vld [vmem:[%s1557 + $0x78] sm:$0xff]
      %v3733 = vld [vmem:[%s1557 + $0x80] sm:$0xff]
      %v3734 = vld [vmem:[%s1557 + $0x90] sm:$0xff]
      %v3735 = vld [vmem:[%s1557 + $0x98] sm:$0xff]
      %v3736 = vld [vmem:[%s1557 + $0xa8] sm:$0xff]
      %v3737 = vld [vmem:[%s1557 + $0xb0] sm:$0xff]
      %v3738 = vld [vmem:[%s1557 + $0xc0] sm:$0xff]
      %v3739 = vld [vmem:[%s1557 + $0xc8] sm:$0xff]
      %v3740 = vld [vmem:[%s1557 + $0xd8] sm:$0xff]
      %v3741 = vld [vmem:[%s1557 + $0xe0] sm:$0xff]
      %v3742 = vld [vmem:[%s1557 + $0xf0] sm:$0xff]
      %v3743 = vld [vmem:[%s1557 + $0xf8] sm:$0xff]
      %v3744 = vld [vmem:[%s1557 + $0x108] sm:$0xff]
      %v3745 = vld [vmem:[%s1557 + $0x110] sm:$0xff]
      %v3746 = vld [vmem:[%s1557 + $0x120] sm:$0xff]
      %v3747 = vld [vmem:[%s1557 + $0x128] sm:$0xff]
      %v3748 = vld [vmem:[%s1557 + $0x138] sm:$0xff]
      %v3749 = vld [vmem:[%s1557 + $0x140] sm:$0xff]
      %v3750 = vld [vmem:[%s1557 + $0x150] sm:$0xff]
      %v3751 = vld [vmem:[%s1557 + $0x158] sm:$0xff]
      %v3752 = vld [vmem:[%s1557 + $0x168] sm:$0xff]
      %v3753 = vld [vmem:[%s1557 + $0x170] sm:$0xff]
      %3786 = vrot.lane.b32.xlu0 %v3722, 64
      %v3787 = vpop.permute.xlu0 %3786
      %3788 = vrot.lane.b32.xlu0 %v3723, 64
      %v3789 = vpop.permute.xlu0 %3788
      %3790 = vrot.lane.b32.xlu0 %v3724, 64
      %v3791 = vpop.permute.xlu0 %3790
      %3792 = vrot.lane.b32.xlu0 %v3725, 64
      %v3793 = vpop.permute.xlu0 %3792
      %3794 = vrot.lane.b32.xlu0 %v3726, 64
      %v3795 = vpop.permute.xlu0 %3794
      %3796 = vrot.lane.b32.xlu0 %v3727, 64
      %v3797 = vpop.permute.xlu0 %3796
      %3798 = vrot.lane.b32.xlu0 %v3728, 64
      %v3799 = vpop.permute.xlu0 %3798
      %3800 = vrot.lane.b32.xlu0 %v3729, 64
      %v3801 = vpop.permute.xlu0 %3800
      %3802 = vrot.lane.b32.xlu0 %v3730, 64
      %v3803 = vpop.permute.xlu0 %3802
      %3804 = vrot.lane.b32.xlu0 %v3731, 64
      %v3805 = vpop.permute.xlu0 %3804
      %3806 = vrot.lane.b32.xlu0 %v3732, 64
      %v3807 = vpop.permute.xlu0 %3806
      %3808 = vrot.lane.b32.xlu0 %v3733, 64
      %v3809 = vpop.permute.xlu0 %3808
      %3810 = vrot.lane.b32.xlu0 %v3734, 64
      %v3811 = vpop.permute.xlu0 %3810
      %3812 = vrot.lane.b32.xlu0 %v3735, 64
      %v3813 = vpop.permute.xlu0 %3812
      %3814 = vrot.lane.b32.xlu0 %v3736, 64
      %v3815 = vpop.permute.xlu0 %3814
      %3816 = vrot.lane.b32.xlu0 %v3737, 64
      %v3817 = vpop.permute.xlu0 %3816
      %3818 = vrot.lane.b32.xlu0 %v3738, 64
      %v3819 = vpop.permute.xlu0 %3818
      %3820 = vrot.lane.b32.xlu0 %v3739, 64
      %v3821 = vpop.permute.xlu0 %3820
      %3822 = vrot.lane.b32.xlu0 %v3740, 64
      %v3823 = vpop.permute.xlu0 %3822
      %3824 = vrot.lane.b32.xlu0 %v3741, 64
      %v3825 = vpop.permute.xlu0 %3824
      %3826 = vrot.lane.b32.xlu0 %v3742, 64
      %v3827 = vpop.permute.xlu0 %3826
      %3828 = vrot.lane.b32.xlu0 %v3743, 64
      %v3829 = vpop.permute.xlu0 %3828
      %3830 = vrot.lane.b32.xlu0 %v3744, 64
      %v3831 = vpop.permute.xlu0 %3830
      %3832 = vrot.lane.b32.xlu0 %v3745, 64
      %v3833 = vpop.permute.xlu0 %3832
      %3834 = vrot.lane.b32.xlu0 %v3746, 64
      %v3835 = vpop.permute.xlu0 %3834
      %3836 = vrot.lane.b32.xlu0 %v3747, 64
      %v3837 = vpop.permute.xlu0 %3836
      %3838 = vrot.lane.b32.xlu0 %v3748, 64
      %v3839 = vpop.permute.xlu0 %3838
      %3840 = vrot.lane.b32.xlu0 %v3749, 64
      %v3841 = vpop.permute.xlu0 %3840
      %3842 = vrot.lane.b32.xlu0 %v3750, 64
      %v3843 = vpop.permute.xlu0 %3842
      %3844 = vrot.lane.b32.xlu0 %v3751, 64
      %v3845 = vpop.permute.xlu0 %3844
      %3846 = vrot.lane.b32.xlu0 %v3752, 64
      %v3847 = vpop.permute.xlu0 %3846
      %3848 = vrot.lane.b32.xlu0 %v3753, 64
      %v3849 = vpop.permute.xlu0 %3848
      %3882 = vst.msk [vmem:[#allocation3 + $0x8] sm:$0xff] %vm1075, %v3787
      %3883 = vst.msk [vmem:[#allocation3 + $0x20] sm:$0xff] %vm1075, %v3789
      %3884 = vst.msk [vmem:[#allocation3 + $0x38] sm:$0xff] %vm1075, %v3791
      %3885 = vst.msk [vmem:[#allocation3 + $0x50] sm:$0xff] %vm1075, %v3793
      %3886 = vst.msk [vmem:[#allocation3 + $0x68] sm:$0xff] %vm1075, %v3795
      %3887 = vst.msk [vmem:[#allocation3 + $0x80] sm:$0xff] %vm1075, %v3797
      %3888 = vst.msk [vmem:[#allocation3 + $0x98] sm:$0xff] %vm1075, %v3799
      %3889 = vst.msk [vmem:[#allocation3 + $0xb0] sm:$0xff] %vm1075, %v3801
      %3890 = vst.msk [vmem:[#allocation3 + $0xc8] sm:$0xff] %vm1075, %v3803
      %3891 = vst.msk [vmem:[#allocation3 + $0xe0] sm:$0xff] %vm1075, %v3805
      %3892 = vst.msk [vmem:[#allocation3 + $0xf8] sm:$0xff] %vm1075, %v3807
      %3893 = vst.msk [vmem:[#allocation3 + $0x110] sm:$0xff] %vm1075, %v3809
      %3894 = vst.msk [vmem:[#allocation3 + $0x128] sm:$0xff] %vm1075, %v3811
      %3895 = vst.msk [vmem:[#allocation3 + $0x140] sm:$0xff] %vm1075, %v3813
      %3896 = vst.msk [vmem:[#allocation3 + $0x158] sm:$0xff] %vm1075, %v3815
      %3897 = vst.msk [vmem:[#allocation3 + $0x170] sm:$0xff] %vm1075, %v3817
      %3898 = vst.msk [vmem:[#allocation3 + $0x188] sm:$0xff] %vm1075, %v3819
      %3899 = vst.msk [vmem:[#allocation3 + $0x1a0] sm:$0xff] %vm1075, %v3821
      %3900 = vst.msk [vmem:[#allocation3 + $0x1b8] sm:$0xff] %vm1075, %v3823
      %3901 = vst.msk [vmem:[#allocation3 + $0x1d0] sm:$0xff] %vm1075, %v3825
      %3902 = vst.msk [vmem:[#allocation3 + $0x1e8] sm:$0xff] %vm1075, %v3827
      %3903 = vst.msk [vmem:[#allocation3 + $0x200] sm:$0xff] %vm1075, %v3829
      %3904 = vst.msk [vmem:[#allocation3 + $0x218] sm:$0xff] %vm1075, %v3831
      %3905 = vst.msk [vmem:[#allocation3 + $0x230] sm:$0xff] %vm1075, %v3833
      %3906 = vst.msk [vmem:[#allocation3 + $0x248] sm:$0xff] %vm1075, %v3835
      %3907 = vst.msk [vmem:[#allocation3 + $0x260] sm:$0xff] %vm1075, %v3837
      %3908 = vst.msk [vmem:[#allocation3 + $0x278] sm:$0xff] %vm1075, %v3839
      %3909 = vst.msk [vmem:[#allocation3 + $0x290] sm:$0xff] %vm1075, %v3841
      %3910 = vst.msk [vmem:[#allocation3 + $0x2a8] sm:$0xff] %vm1075, %v3843
      %3911 = vst.msk [vmem:[#allocation3 + $0x2c0] sm:$0xff] %vm1075, %v3845
      %3912 = vst.msk [vmem:[#allocation3 + $0x2d8] sm:$0xff] %vm1075, %v3847
      %3913 = vst.msk [vmem:[#allocation3 + $0x2f0] sm:$0xff] %vm1075, %v3849
      %v3914 = vld [vmem:[%s1557 + $0x1] sm:$0xff]
      %v3915 = vld [vmem:[%s1557 + $0x9] sm:$0xff]
      %v3916 = vld [vmem:[%s1557 + $0x19] sm:$0xff]
      %v3917 = vld [vmem:[%s1557 + $0x21] sm:$0xff]
      %v3918 = vld [vmem:[%s1557 + $0x31] sm:$0xff]
      %v3919 = vld [vmem:[%s1557 + $0x39] sm:$0xff]
      %v3920 = vld [vmem:[%s1557 + $0x49] sm:$0xff]
      %v3921 = vld [vmem:[%s1557 + $0x51] sm:$0xff]
      %v3922 = vld [vmem:[%s1557 + $0x61] sm:$0xff]
      %v3923 = vld [vmem:[%s1557 + $0x69] sm:$0xff]
      %v3924 = vld [vmem:[%s1557 + $0x79] sm:$0xff]
      %v3925 = vld [vmem:[%s1557 + $0x81] sm:$0xff]
      %v3926 = vld [vmem:[%s1557 + $0x91] sm:$0xff]
      %v3927 = vld [vmem:[%s1557 + $0x99] sm:$0xff]
      %v3928 = vld [vmem:[%s1557 + $0xa9] sm:$0xff]
      %v3929 = vld [vmem:[%s1557 + $0xb1] sm:$0xff]
      %v3930 = vld [vmem:[%s1557 + $0xc1] sm:$0xff]
      %v3931 = vld [vmem:[%s1557 + $0xc9] sm:$0xff]
      %v3932 = vld [vmem:[%s1557 + $0xd9] sm:$0xff]
      %v3933 = vld [vmem:[%s1557 + $0xe1] sm:$0xff]
      %v3934 = vld [vmem:[%s1557 + $0xf1] sm:$0xff]
      %v3935 = vld [vmem:[%s1557 + $0xf9] sm:$0xff]
      %v3936 = vld [vmem:[%s1557 + $0x109] sm:$0xff]
      %v3937 = vld [vmem:[%s1557 + $0x111] sm:$0xff]
      %v3938 = vld [vmem:[%s1557 + $0x121] sm:$0xff]
      %v3939 = vld [vmem:[%s1557 + $0x129] sm:$0xff]
      %v3940 = vld [vmem:[%s1557 + $0x139] sm:$0xff]
      %v3941 = vld [vmem:[%s1557 + $0x141] sm:$0xff]
      %v3942 = vld [vmem:[%s1557 + $0x151] sm:$0xff]
      %v3943 = vld [vmem:[%s1557 + $0x159] sm:$0xff]
      %v3944 = vld [vmem:[%s1557 + $0x169] sm:$0xff]
      %v3945 = vld [vmem:[%s1557 + $0x171] sm:$0xff]
      %3978 = vrot.lane.b32.xlu0 %v3914, 96
      %v3979 = vpop.permute.xlu0 %3978
      %3980 = vrot.lane.b32.xlu0 %v3915, 96
      %v3981 = vpop.permute.xlu0 %3980
      %3982 = vrot.lane.b32.xlu0 %v3916, 96
      %v3983 = vpop.permute.xlu0 %3982
      %3984 = vrot.lane.b32.xlu0 %v3917, 96
      %v3985 = vpop.permute.xlu0 %3984
      %3986 = vrot.lane.b32.xlu0 %v3918, 96
      %v3987 = vpop.permute.xlu0 %3986
      %3988 = vrot.lane.b32.xlu0 %v3919, 96
      %v3989 = vpop.permute.xlu0 %3988
      %3990 = vrot.lane.b32.xlu0 %v3920, 96
      %v3991 = vpop.permute.xlu0 %3990
      %3992 = vrot.lane.b32.xlu0 %v3921, 96
      %v3993 = vpop.permute.xlu0 %3992
      %3994 = vrot.lane.b32.xlu0 %v3922, 96
      %v3995 = vpop.permute.xlu0 %3994
      %3996 = vrot.lane.b32.xlu0 %v3923, 96
      %v3997 = vpop.permute.xlu0 %3996
      %3998 = vrot.lane.b32.xlu0 %v3924, 96
      %v3999 = vpop.permute.xlu0 %3998
      %4000 = vrot.lane.b32.xlu0 %v3925, 96
      %v4001 = vpop.permute.xlu0 %4000
      %4002 = vrot.lane.b32.xlu0 %v3926, 96
      %v4003 = vpop.permute.xlu0 %4002
      %4004 = vrot.lane.b32.xlu0 %v3927, 96
      %v4005 = vpop.permute.xlu0 %4004
      %4006 = vrot.lane.b32.xlu0 %v3928, 96
      %v4007 = vpop.permute.xlu0 %4006
      %4008 = vrot.lane.b32.xlu0 %v3929, 96
      %v4009 = vpop.permute.xlu0 %4008
      %4010 = vrot.lane.b32.xlu0 %v3930, 96
      %v4011 = vpop.permute.xlu0 %4010
      %4012 = vrot.lane.b32.xlu0 %v3931, 96
      %v4013 = vpop.permute.xlu0 %4012
      %4014 = vrot.lane.b32.xlu0 %v3932, 96
      %v4015 = vpop.permute.xlu0 %4014
      %4016 = vrot.lane.b32.xlu0 %v3933, 96
      %v4017 = vpop.permute.xlu0 %4016
      %4018 = vrot.lane.b32.xlu0 %v3934, 96
      %v4019 = vpop.permute.xlu0 %4018
      %4020 = vrot.lane.b32.xlu0 %v3935, 96
      %v4021 = vpop.permute.xlu0 %4020
      %4022 = vrot.lane.b32.xlu0 %v3936, 96
      %v4023 = vpop.permute.xlu0 %4022
      %4024 = vrot.lane.b32.xlu0 %v3937, 96
      %v4025 = vpop.permute.xlu0 %4024
      %4026 = vrot.lane.b32.xlu0 %v3938, 96
      %v4027 = vpop.permute.xlu0 %4026
      %4028 = vrot.lane.b32.xlu0 %v3939, 96
      %v4029 = vpop.permute.xlu0 %4028
      %4030 = vrot.lane.b32.xlu0 %v3940, 96
      %v4031 = vpop.permute.xlu0 %4030
      %4032 = vrot.lane.b32.xlu0 %v3941, 96
      %v4033 = vpop.permute.xlu0 %4032
      %4034 = vrot.lane.b32.xlu0 %v3942, 96
      %v4035 = vpop.permute.xlu0 %4034
      %4036 = vrot.lane.b32.xlu0 %v3943, 96
      %v4037 = vpop.permute.xlu0 %4036
      %4038 = vrot.lane.b32.xlu0 %v3944, 96
      %v4039 = vpop.permute.xlu0 %4038
      %4040 = vrot.lane.b32.xlu0 %v3945, 96
      %v4041 = vpop.permute.xlu0 %4040
      %4074 = vst.msk [vmem:[#allocation3 + $0x8] sm:$0xff] %vm1268, %v3979
      %4075 = vst.msk [vmem:[#allocation3 + $0x20] sm:$0xff] %vm1268, %v3981
      %4076 = vst.msk [vmem:[#allocation3 + $0x38] sm:$0xff] %vm1268, %v3983
      %4077 = vst.msk [vmem:[#allocation3 + $0x50] sm:$0xff] %vm1268, %v3985
      %4078 = vst.msk [vmem:[#allocation3 + $0x68] sm:$0xff] %vm1268, %v3987
      %4079 = vst.msk [vmem:[#allocation3 + $0x80] sm:$0xff] %vm1268, %v3989
      %4080 = vst.msk [vmem:[#allocation3 + $0x98] sm:$0xff] %vm1268, %v3991
      %4081 = vst.msk [vmem:[#allocation3 + $0xb0] sm:$0xff] %vm1268, %v3993
      %4082 = vst.msk [vmem:[#allocation3 + $0xc8] sm:$0xff] %vm1268, %v3995
      %4083 = vst.msk [vmem:[#allocation3 + $0xe0] sm:$0xff] %vm1268, %v3997
      %4084 = vst.msk [vmem:[#allocation3 + $0xf8] sm:$0xff] %vm1268, %v3999
      %4085 = vst.msk [vmem:[#allocation3 + $0x110] sm:$0xff] %vm1268, %v4001
      %4086 = vst.msk [vmem:[#allocation3 + $0x128] sm:$0xff] %vm1268, %v4003
      %4087 = vst.msk [vmem:[#allocation3 + $0x140] sm:$0xff] %vm1268, %v4005
      %4088 = vst.msk [vmem:[#allocation3 + $0x158] sm:$0xff] %vm1268, %v4007
      %4089 = vst.msk [vmem:[#allocation3 + $0x170] sm:$0xff] %vm1268, %v4009
      %4090 = vst.msk [vmem:[#allocation3 + $0x188] sm:$0xff] %vm1268, %v4011
      %4091 = vst.msk [vmem:[#allocation3 + $0x1a0] sm:$0xff] %vm1268, %v4013
      %4092 = vst.msk [vmem:[#allocation3 + $0x1b8] sm:$0xff] %vm1268, %v4015
      %4093 = vst.msk [vmem:[#allocation3 + $0x1d0] sm:$0xff] %vm1268, %v4017
      %4094 = vst.msk [vmem:[#allocation3 + $0x1e8] sm:$0xff] %vm1268, %v4019
      %4095 = vst.msk [vmem:[#allocation3 + $0x200] sm:$0xff] %vm1268, %v4021
      %4096 = vst.msk [vmem:[#allocation3 + $0x218] sm:$0xff] %vm1268, %v4023
      %4097 = vst.msk [vmem:[#allocation3 + $0x230] sm:$0xff] %vm1268, %v4025
      %4098 = vst.msk [vmem:[#allocation3 + $0x248] sm:$0xff] %vm1268, %v4027
      %4099 = vst.msk [vmem:[#allocation3 + $0x260] sm:$0xff] %vm1268, %v4029
      %4100 = vst.msk [vmem:[#allocation3 + $0x278] sm:$0xff] %vm1268, %v4031
      %4101 = vst.msk [vmem:[#allocation3 + $0x290] sm:$0xff] %vm1268, %v4033
      %4102 = vst.msk [vmem:[#allocation3 + $0x2a8] sm:$0xff] %vm1268, %v4035
      %4103 = vst.msk [vmem:[#allocation3 + $0x2c0] sm:$0xff] %vm1268, %v4037
      %4104 = vst.msk [vmem:[#allocation3 + $0x2d8] sm:$0xff] %vm1268, %v4039
      %4105 = vst.msk [vmem:[#allocation3 + $0x2f0] sm:$0xff] %vm1268, %v4041
      %v4106 = vld [vmem:[%s1557 + $0x2] sm:$0xff]
      %v4107 = vld [vmem:[%s1557 + $0xa] sm:$0xff]
      %v4108 = vld [vmem:[%s1557 + $0x1a] sm:$0xff]
      %v4109 = vld [vmem:[%s1557 + $0x22] sm:$0xff]
      %v4110 = vld [vmem:[%s1557 + $0x32] sm:$0xff]
      %v4111 = vld [vmem:[%s1557 + $0x3a] sm:$0xff]
      %v4112 = vld [vmem:[%s1557 + $0x4a] sm:$0xff]
      %v4113 = vld [vmem:[%s1557 + $0x52] sm:$0xff]
      %v4114 = vld [vmem:[%s1557 + $0x62] sm:$0xff]
      %v4115 = vld [vmem:[%s1557 + $0x6a] sm:$0xff]
      %v4116 = vld [vmem:[%s1557 + $0x7a] sm:$0xff]
      %v4117 = vld [vmem:[%s1557 + $0x82] sm:$0xff]
      %v4118 = vld [vmem:[%s1557 + $0x92] sm:$0xff]
      %v4119 = vld [vmem:[%s1557 + $0x9a] sm:$0xff]
      %v4120 = vld [vmem:[%s1557 + $0xaa] sm:$0xff]
      %v4121 = vld [vmem:[%s1557 + $0xb2] sm:$0xff]
      %v4122 = vld [vmem:[%s1557 + $0xc2] sm:$0xff]
      %v4123 = vld [vmem:[%s1557 + $0xca] sm:$0xff]
      %v4124 = vld [vmem:[%s1557 + $0xda] sm:$0xff]
      %v4125 = vld [vmem:[%s1557 + $0xe2] sm:$0xff]
      %v4126 = vld [vmem:[%s1557 + $0xf2] sm:$0xff]
      %v4127 = vld [vmem:[%s1557 + $0xfa] sm:$0xff]
      %v4128 = vld [vmem:[%s1557 + $0x10a] sm:$0xff]
      %v4129 = vld [vmem:[%s1557 + $0x112] sm:$0xff]
      %v4130 = vld [vmem:[%s1557 + $0x122] sm:$0xff]
      %v4131 = vld [vmem:[%s1557 + $0x12a] sm:$0xff]
      %v4132 = vld [vmem:[%s1557 + $0x13a] sm:$0xff]
      %v4133 = vld [vmem:[%s1557 + $0x142] sm:$0xff]
      %v4134 = vld [vmem:[%s1557 + $0x152] sm:$0xff]
      %v4135 = vld [vmem:[%s1557 + $0x15a] sm:$0xff]
      %v4136 = vld [vmem:[%s1557 + $0x16a] sm:$0xff]
      %v4137 = vld [vmem:[%s1557 + $0x172] sm:$0xff]
      %4138 = vst.msk [vmem:[#allocation3 + $0x10] sm:$0xff] %vm459, %v4106
      %4139 = vst.msk [vmem:[#allocation3 + $0x28] sm:$0xff] %vm459, %v4107
      %4140 = vst.msk [vmem:[#allocation3 + $0x40] sm:$0xff] %vm459, %v4108
      %4141 = vst.msk [vmem:[#allocation3 + $0x58] sm:$0xff] %vm459, %v4109
      %4142 = vst.msk [vmem:[#allocation3 + $0x70] sm:$0xff] %vm459, %v4110
      %4143 = vst.msk [vmem:[#allocation3 + $0x88] sm:$0xff] %vm459, %v4111
      %4144 = vst.msk [vmem:[#allocation3 + $0xa0] sm:$0xff] %vm459, %v4112
      %4145 = vst.msk [vmem:[#allocation3 + $0xb8] sm:$0xff] %vm459, %v4113
      %4146 = vst.msk [vmem:[#allocation3 + $0xd0] sm:$0xff] %vm459, %v4114
      %4147 = vst.msk [vmem:[#allocation3 + $0xe8] sm:$0xff] %vm459, %v4115
      %4148 = vst.msk [vmem:[#allocation3 + $0x100] sm:$0xff] %vm459, %v4116
      %4149 = vst.msk [vmem:[#allocation3 + $0x118] sm:$0xff] %vm459, %v4117
      %4150 = vst.msk [vmem:[#allocation3 + $0x130] sm:$0xff] %vm459, %v4118
      %4151 = vst.msk [vmem:[#allocation3 + $0x148] sm:$0xff] %vm459, %v4119
      %4152 = vst.msk [vmem:[#allocation3 + $0x160] sm:$0xff] %vm459, %v4120
      %4153 = vst.msk [vmem:[#allocation3 + $0x178] sm:$0xff] %vm459, %v4121
      %4154 = vst.msk [vmem:[#allocation3 + $0x190] sm:$0xff] %vm459, %v4122
      %4155 = vst.msk [vmem:[#allocation3 + $0x1a8] sm:$0xff] %vm459, %v4123
      %4156 = vst.msk [vmem:[#allocation3 + $0x1c0] sm:$0xff] %vm459, %v4124
      %4157 = vst.msk [vmem:[#allocation3 + $0x1d8] sm:$0xff] %vm459, %v4125
      %4158 = vst.msk [vmem:[#allocation3 + $0x1f0] sm:$0xff] %vm459, %v4126
      %4159 = vst.msk [vmem:[#allocation3 + $0x208] sm:$0xff] %vm459, %v4127
      %4160 = vst.msk [vmem:[#allocation3 + $0x220] sm:$0xff] %vm459, %v4128
      %4161 = vst.msk [vmem:[#allocation3 + $0x238] sm:$0xff] %vm459, %v4129
      %4162 = vst.msk [vmem:[#allocation3 + $0x250] sm:$0xff] %vm459, %v4130
      %4163 = vst.msk [vmem:[#allocation3 + $0x268] sm:$0xff] %vm459, %v4131
      %4164 = vst.msk [vmem:[#allocation3 + $0x280] sm:$0xff] %vm459, %v4132
      %4165 = vst.msk [vmem:[#allocation3 + $0x298] sm:$0xff] %vm459, %v4133
      %4166 = vst.msk [vmem:[#allocation3 + $0x2b0] sm:$0xff] %vm459, %v4134
      %4167 = vst.msk [vmem:[#allocation3 + $0x2c8] sm:$0xff] %vm459, %v4135
      %4168 = vst.msk [vmem:[#allocation3 + $0x2e0] sm:$0xff] %vm459, %v4136
      %4169 = vst.msk [vmem:[#allocation3 + $0x2f8] sm:$0xff] %vm459, %v4137
      %v4170 = vld [vmem:[#allocation3] sm:$0xff]
      %v4171 = vld [vmem:[#allocation3 + $0x8] sm:$0xff]
      %v4172 = vld [vmem:[#allocation3 + $0x10] sm:$0xff]
      %v4173 = vld [vmem:[#allocation3 + $0x18] sm:$0xff]
      %v4174 = vld [vmem:[#allocation3 + $0x20] sm:$0xff]
      %v4175 = vld [vmem:[#allocation3 + $0x28] sm:$0xff]
      %v4176 = vld [vmem:[#allocation3 + $0x30] sm:$0xff]
      %v4177 = vld [vmem:[#allocation3 + $0x38] sm:$0xff]
      %v4178 = vld [vmem:[#allocation3 + $0x40] sm:$0xff]
      %v4179 = vld [vmem:[#allocation3 + $0x48] sm:$0xff]
      %v4180 = vld [vmem:[#allocation3 + $0x50] sm:$0xff]
      %v4181 = vld [vmem:[#allocation3 + $0x58] sm:$0xff]
      %v4182 = vld [vmem:[#allocation3 + $0x60] sm:$0xff]
      %v4183 = vld [vmem:[#allocation3 + $0x68] sm:$0xff]
      %v4184 = vld [vmem:[#allocation3 + $0x70] sm:$0xff]
      %v4185 = vld [vmem:[#allocation3 + $0x78] sm:$0xff]
      %v4186 = vld [vmem:[#allocation3 + $0x80] sm:$0xff]
      %v4187 = vld [vmem:[#allocation3 + $0x88] sm:$0xff]
      %v4188 = vld [vmem:[#allocation3 + $0x90] sm:$0xff]
      %v4189 = vld [vmem:[#allocation3 + $0x98] sm:$0xff]
      %v4190 = vld [vmem:[#allocation3 + $0xa0] sm:$0xff]
      %v4191 = vld [vmem:[#allocation3 + $0xa8] sm:$0xff]
      %v4192 = vld [vmem:[#allocation3 + $0xb0] sm:$0xff]
      %v4193 = vld [vmem:[#allocation3 + $0xb8] sm:$0xff]
      %v4194 = vld [vmem:[#allocation3 + $0xc0] sm:$0xff]
      %v4195 = vld [vmem:[#allocation3 + $0xc8] sm:$0xff]
      %v4196 = vld [vmem:[#allocation3 + $0xd0] sm:$0xff]
      %v4197 = vld [vmem:[#allocation3 + $0xd8] sm:$0xff]
      %v4198 = vld [vmem:[#allocation3 + $0xe0] sm:$0xff]
      %v4199 = vld [vmem:[#allocation3 + $0xe8] sm:$0xff]
      %v4200 = vld [vmem:[#allocation3 + $0xf0] sm:$0xff]
      %v4201 = vld [vmem:[#allocation3 + $0xf8] sm:$0xff]
      %v4202 = vld [vmem:[#allocation3 + $0x100] sm:$0xff]
      %v4203 = vld [vmem:[#allocation3 + $0x108] sm:$0xff]
      %v4204 = vld [vmem:[#allocation3 + $0x110] sm:$0xff]
      %v4205 = vld [vmem:[#allocation3 + $0x118] sm:$0xff]
      %v4206 = vld [vmem:[#allocation3 + $0x120] sm:$0xff]
      %v4207 = vld [vmem:[#allocation3 + $0x128] sm:$0xff]
      %v4208 = vld [vmem:[#allocation3 + $0x130] sm:$0xff]
      %v4209 = vld [vmem:[#allocation3 + $0x138] sm:$0xff]
      %v4210 = vld [vmem:[#allocation3 + $0x140] sm:$0xff]
      %v4211 = vld [vmem:[#allocation3 + $0x148] sm:$0xff]
      %v4212 = vld [vmem:[#allocation3 + $0x150] sm:$0xff]
      %v4213 = vld [vmem:[#allocation3 + $0x158] sm:$0xff]
      %v4214 = vld [vmem:[#allocation3 + $0x160] sm:$0xff]
      %v4215 = vld [vmem:[#allocation3 + $0x168] sm:$0xff]
      %v4216 = vld [vmem:[#allocation3 + $0x170] sm:$0xff]
      %v4217 = vld [vmem:[#allocation3 + $0x178] sm:$0xff]
      %v4218 = vld [vmem:[#allocation3 + $0x180] sm:$0xff]
      %v4219 = vld [vmem:[#allocation3 + $0x188] sm:$0xff]
      %v4220 = vld [vmem:[#allocation3 + $0x190] sm:$0xff]
      %v4221 = vld [vmem:[#allocation3 + $0x198] sm:$0xff]
      %v4222 = vld [vmem:[#allocation3 + $0x1a0] sm:$0xff]
      %v4223 = vld [vmem:[#allocation3 + $0x1a8] sm:$0xff]
      %v4224 = vld [vmem:[#allocation3 + $0x1b0] sm:$0xff]
      %v4225 = vld [vmem:[#allocation3 + $0x1b8] sm:$0xff]
      %v4226 = vld [vmem:[#allocation3 + $0x1c0] sm:$0xff]
      %v4227 = vld [vmem:[#allocation3 + $0x1c8] sm:$0xff]
      %v4228 = vld [vmem:[#allocation3 + $0x1d0] sm:$0xff]
      %v4229 = vld [vmem:[#allocation3 + $0x1d8] sm:$0xff]
      %v4230 = vld [vmem:[#allocation3 + $0x1e0] sm:$0xff]
      %v4231 = vld [vmem:[#allocation3 + $0x1e8] sm:$0xff]
      %v4232 = vld [vmem:[#allocation3 + $0x1f0] sm:$0xff]
      %v4233 = vld [vmem:[#allocation3 + $0x1f8] sm:$0xff]
      %v4234 = vld [vmem:[#allocation3 + $0x200] sm:$0xff]
      %v4235 = vld [vmem:[#allocation3 + $0x208] sm:$0xff]
      %v4236 = vld [vmem:[#allocation3 + $0x210] sm:$0xff]
      %v4237 = vld [vmem:[#allocation3 + $0x218] sm:$0xff]
      %v4238 = vld [vmem:[#allocation3 + $0x220] sm:$0xff]
      %v4239 = vld [vmem:[#allocation3 + $0x228] sm:$0xff]
      %v4240 = vld [vmem:[#allocation3 + $0x230] sm:$0xff]
      %v4241 = vld [vmem:[#allocation3 + $0x238] sm:$0xff]
      %v4242 = vld [vmem:[#allocation3 + $0x240] sm:$0xff]
      %v4243 = vld [vmem:[#allocation3 + $0x248] sm:$0xff]
      %v4244 = vld [vmem:[#allocation3 + $0x250] sm:$0xff]
      %v4245 = vld [vmem:[#allocation3 + $0x258] sm:$0xff]
      %v4246 = vld [vmem:[#allocation3 + $0x260] sm:$0xff]
      %v4247 = vld [vmem:[#allocation3 + $0x268] sm:$0xff]
      %v4248 = vld [vmem:[#allocation3 + $0x270] sm:$0xff]
      %v4249 = vld [vmem:[#allocation3 + $0x278] sm:$0xff]
      %v4250 = vld [vmem:[#allocation3 + $0x280] sm:$0xff]
      %v4251 = vld [vmem:[#allocation3 + $0x288] sm:$0xff]
      %v4252 = vld [vmem:[#allocation3 + $0x290] sm:$0xff]
      %v4253 = vld [vmem:[#allocation3 + $0x298] sm:$0xff]
      %v4254 = vld [vmem:[#allocation3 + $0x2a0] sm:$0xff]
      %v4255 = vld [vmem:[#allocation3 + $0x2a8] sm:$0xff]
      %v4256 = vld [vmem:[#allocation3 + $0x2b0] sm:$0xff]
      %v4257 = vld [vmem:[#allocation3 + $0x2b8] sm:$0xff]
      %v4258 = vld [vmem:[#allocation3 + $0x2c0] sm:$0xff]
      %v4259 = vld [vmem:[#allocation3 + $0x2c8] sm:$0xff]
      %v4260 = vld [vmem:[#allocation3 + $0x2d0] sm:$0xff]
      %v4261 = vld [vmem:[#allocation3 + $0x2d8] sm:$0xff]
      %v4262 = vld [vmem:[#allocation3 + $0x2e0] sm:$0xff]
      %v4263 = vld [vmem:[#allocation3 + $0x2e8] sm:$0xff]
      %v4264 = vld [vmem:[#allocation3 + $0x2f0] sm:$0xff]
      %v4265 = vld [vmem:[#allocation3 + $0x2f8] sm:$0xff]
      %v4266 = vld [vmem:[%s6] sm:$0xff]
      %v4267 = vld [vmem:[%s6 + $0x8] sm:$0xff]
      %v4268 = vld [vmem:[%s6 + $0x10] sm:$0xff]
      %v4269 = vld [vmem:[%s6 + $0x18] sm:$0xff]
      %v4270 = vld [vmem:[%s6 + $0x20] sm:$0xff]
      %v4271 = vld [vmem:[%s6 + $0x28] sm:$0xff]
      %v4272 = vld [vmem:[%s6 + $0x30] sm:$0xff]
      %v4273 = vld [vmem:[%s6 + $0x38] sm:$0xff]
      %v4274 = vld [vmem:[%s6 + $0x40] sm:$0xff]
      %v4275 = vld [vmem:[%s6 + $0x48] sm:$0xff]
      %v4276 = vld [vmem:[%s6 + $0x50] sm:$0xff]
      %v4277 = vld [vmem:[%s6 + $0x58] sm:$0xff]
      %v4278 = vld [vmem:[%s6 + $0x60] sm:$0xff]
      %v4279 = vld [vmem:[%s6 + $0x68] sm:$0xff]
      %v4280 = vld [vmem:[%s6 + $0x70] sm:$0xff]
      %v4281 = vld [vmem:[%s6 + $0x78] sm:$0xff]
      %v4282 = vld [vmem:[%s6 + $0x80] sm:$0xff]
      %v4283 = vld [vmem:[%s6 + $0x88] sm:$0xff]
      %v4284 = vld [vmem:[%s6 + $0x90] sm:$0xff]
      %v4285 = vld [vmem:[%s6 + $0x98] sm:$0xff]
      %v4286 = vld [vmem:[%s6 + $0xa0] sm:$0xff]
      %v4287 = vld [vmem:[%s6 + $0xa8] sm:$0xff]
      %v4288 = vld [vmem:[%s6 + $0xb0] sm:$0xff]
      %v4289 = vld [vmem:[%s6 + $0xb8] sm:$0xff]
      %v4290 = vld [vmem:[%s6 + $0xc0] sm:$0xff]
      %v4291 = vld [vmem:[%s6 + $0xc8] sm:$0xff]
      %v4292 = vld [vmem:[%s6 + $0xd0] sm:$0xff]
      %v4293 = vld [vmem:[%s6 + $0xd8] sm:$0xff]
      %v4294 = vld [vmem:[%s6 + $0xe0] sm:$0xff]
      %v4295 = vld [vmem:[%s6 + $0xe8] sm:$0xff]
      %v4296 = vld [vmem:[%s6 + $0xf0] sm:$0xff]
      %v4297 = vld [vmem:[%s6 + $0xf8] sm:$0xff]
      %v4298 = vld [vmem:[%s6 + $0x100] sm:$0xff]
      %v4299 = vld [vmem:[%s6 + $0x108] sm:$0xff]
      %v4300 = vld [vmem:[%s6 + $0x110] sm:$0xff]
      %v4301 = vld [vmem:[%s6 + $0x118] sm:$0xff]
      %v4303 = vsel %vm459, %v4172, 0
      %v4306 = vsel %vm459, %v4175, 0
      %v4309 = vsel %vm459, %v4178, 0
      %v4312 = vsel %vm459, %v4181, 0
      %v4315 = vsel %vm459, %v4184, 0
      %v4318 = vsel %vm459, %v4187, 0
      %v4321 = vsel %vm459, %v4190, 0
      %v4324 = vsel %vm459, %v4193, 0
      %v4327 = vsel %vm459, %v4196, 0
      %v4330 = vsel %vm459, %v4199, 0
      %v4333 = vsel %vm459, %v4202, 0
      %v4336 = vsel %vm459, %v4205, 0
      %v4339 = vsel %vm459, %v4208, 0
      %v4342 = vsel %vm459, %v4211, 0
      %v4345 = vsel %vm459, %v4214, 0
      %v4348 = vsel %vm459, %v4217, 0
      %v4351 = vsel %vm459, %v4220, 0
      %v4354 = vsel %vm459, %v4223, 0
      %v4357 = vsel %vm459, %v4226, 0
      %v4360 = vsel %vm459, %v4229, 0
      %v4363 = vsel %vm459, %v4232, 0
      %v4366 = vsel %vm459, %v4235, 0
      %v4369 = vsel %vm459, %v4238, 0
      %v4372 = vsel %vm459, %v4241, 0
      %v4375 = vsel %vm459, %v4244, 0
      %v4378 = vsel %vm459, %v4247, 0
      %v4381 = vsel %vm459, %v4250, 0
      %v4384 = vsel %vm459, %v4253, 0
      %v4387 = vsel %vm459, %v4256, 0
      %v4390 = vsel %vm459, %v4259, 0
      %v4393 = vsel %vm459, %v4262, 0
      %v4396 = vsel %vm459, %v4265, 0
      %4398 = vmatprep.subr.mxu0 0.0
      %4399 = vmatpush1.msra.mxu0 %v4266
      %4400 = vmatprep.subr.mxu0 0.0
      %4401 = vmatpush1.msra.mxu0 %v4267
      %4402 = vmatprep.subr.mxu0 0.0
      %4403 = vmatpush1.msra.mxu0 %v4268
      %4404 = vmatprep.subr.mxu0 0.0
      %4405 = vmatpush1.msra.mxu0 %v4269
      %4406 = vmatprep.subr.mxu0 0.0
      %4407 = vmatpush1.msra.mxu0 %v4270
      %4408 = vmatprep.subr.mxu0 0.0
      %4409 = vmatpush1.msra.mxu0 %v4271
      %4410 = vmatprep.subr.mxu0 0.0
      %4411 = vmatpush1.msra.mxu0 %v4272
      %4412 = vmatprep.subr.mxu0 0.0
      %4413 = vmatpush1.msra.mxu0 %v4273
      %4414 = vmatprep.subr.mxu0 0.0
      %4415 = vmatpush1.msra.mxu0 %v4274
      %4416 = vmatprep.subr.mxu0 0.0
      %4417 = vmatpush1.msra.mxu0 %v4275
      %4418 = vmatprep.subr.mxu0 0.0
      %4419 = vmatpush1.msra.mxu0 %v4276
      %4420 = vmatprep.subr.mxu0 0.0
      %4421 = vmatpush1.msra.mxu0 %v4277
      %4422 = vmatprep.subr.mxu0 0.0
      %4423 = vmatpush1.msra.mxu0 %v4278
      %4424 = vmatprep.subr.mxu0 0.0
      %4425 = vmatpush1.msra.mxu0 %v4279
      %4426 = vmatprep.subr.mxu0 0.0
      %4427 = vmatpush1.msra.mxu0 %v4280
      %4428 = vmatprep.subr.mxu0 0.0
      %4429 = vmatpush1.msra.mxu0 %v4281
      %4430 = vmatprep.subr.mxu0 0.0
      %4431 = vmatpush1.msra.mxu0 %v4282
      %4432 = vmatprep.subr.mxu0 0.0
      %4433 = vmatpush1.msra.mxu0 %v4283
      %4434 = vmatprep.subr.mxu0 0.0
      %4435 = vmatpush1.msra.mxu0 %v4284
      %4436 = vmatprep.subr.mxu0 0.0
      %4437 = vmatpush1.msra.mxu0 %v4285
      %4438 = vmatprep.subr.mxu0 0.0
      %4439 = vmatpush1.msra.mxu0 %v4286
      %4440 = vmatprep.subr.mxu0 0.0
      %4441 = vmatpush1.msra.mxu0 %v4287
      %4442 = vmatprep.subr.mxu0 0.0
      %4443 = vmatpush1.msra.mxu0 %v4288
      %4444 = vmatprep.subr.mxu0 0.0
      %4445 = vmatpush1.msra.mxu0 %v4289
      %4446 = vmatprep.subr.mxu0 0.0
      %4447 = vmatpush1.msra.mxu0 %v4290
      %4448 = vmatprep.subr.mxu0 0.0
      %4449 = vmatpush1.msra.mxu0 %v4291
      %4450 = vmatprep.subr.mxu0 0.0
      %4451 = vmatpush1.msra.mxu0 %v4292
      %4452 = vmatprep.subr.mxu0 0.0
      %4453 = vmatpush1.msra.mxu0 %v4293
      %4454 = vmatprep.subr.mxu0 0.0
      %4455 = vmatpush1.msra.mxu0 %v4294
      %4456 = vmatprep.subr.mxu0 0.0
      %4457 = vmatpush1.msra.mxu0 %v4295
      %4458 = vmatprep.subr.mxu0 0.0
      %4459 = vmatpush1.msra.mxu0 %v4296
      %4460 = vmatprep.subr.mxu0 0.0
      %4461 = vmatpush1.msra.mxu0 %v4297
      %4462 = vmatprep.mubr.f32.mxu0 %v4171
      %4463 = vmatmul.mubr.f32.gmra.mrb[0].mxu0 %v4170
      %v4464 = vpop.f32.mrb[0].mxu0
      %v4465 = vadd.f32 0.0, %v4464
      %v4466 = vpop.f32.mrb[0].mxu0
      %4467 = vmatprep.mubr.f32.mxu0 %v4174
      %4468 = vmatmul.mubr.f32.gmra.mrb[0].mxu0 %v4173
      %v4469 = vpop.f32.mrb[0].mxu0
      %v4470 = vadd.f32 0.0, %v4469
      %v4471 = vpop.f32.mrb[0].mxu0
      %4472 = vmatprep.mubr.f32.mxu0 %v4177
      %4473 = vmatmul.mubr.f32.gmra.mrb[0].mxu0 %v4176
      %v4474 = vpop.f32.mrb[0].mxu0
      %v4475 = vadd.f32 0.0, %v4474
      %v4476 = vpop.f32.mrb[0].mxu0
      %4477 = vmatprep.mubr.f32.mxu0 %v4180
      %4478 = vmatmul.mubr.f32.gmra.mrb[0].mxu0 %v4179
      %v4479 = vpop.f32.mrb[0].mxu0
      %v4480 = vadd.f32 0.0, %v4479
      %v4481 = vpop.f32.mrb[0].mxu0
      %4482 = vmatprep.mubr.f32.mxu0 %v4183
      %4483 = vmatmul.mubr.f32.gmra.mrb[0].mxu0 %v4182
      %v4484 = vpop.f32.mrb[0].mxu0
      %v4485 = vadd.f32 0.0, %v4484
      %v4486 = vpop.f32.mrb[0].mxu0
      %4487 = vmatprep.mubr.f32.mxu0 %v4186
      %4488 = vmatmul.mubr.f32.gmra.mrb[0].mxu0 %v4185
      %v4489 = vpop.f32.mrb[0].mxu0
      %v4490 = vadd.f32 0.0, %v4489
      %v4491 = vpop.f32.mrb[0].mxu0
      %4492 = vmatprep.mubr.f32.mxu0 %v4189
      %4493 = vmatmul.mubr.f32.gmra.mrb[0].mxu0 %v4188
      %v4494 = vpop.f32.mrb[0].mxu0
      %v4495 = vadd.f32 0.0, %v4494
      %v4496 = vpop.f32.mrb[0].mxu0
      %4497 = vmatprep.mubr.f32.mxu0 %v4192
      %4498 = vmatmul.mubr.f32.gmra.mrb[0].mxu0 %v4191
      %v4499 = vpop.f32.mrb[0].mxu0
      %v4500 = vadd.f32 0.0, %v4499
      %v4501 = vpop.f32.mrb[0].mxu0
      %4502 = vmatprep.mubr.f32.mxu0 %v4195
      %4503 = vmatmul.mubr.f32.gmra.mrb[0].mxu0 %v4194
      %v4504 = vpop.f32.mrb[0].mxu0
      %v4505 = vadd.f32 0.0, %v4504
      %v4506 = vpop.f32.mrb[0].mxu0
      %4507 = vmatprep.mubr.f32.mxu0 %v4198
      %4508 = vmatmul.mubr.f32.gmra.mrb[0].mxu0 %v4197
      %v4509 = vpop.f32.mrb[0].mxu0
      %v4510 = vadd.f32 0.0, %v4509
      %v4511 = vpop.f32.mrb[0].mxu0
      %4512 = vmatprep.mubr.f32.mxu0 %v4201
      %4513 = vmatmul.mubr.f32.gmra.mrb[0].mxu0 %v4200
      %v4514 = vpop.f32.mrb[0].mxu0
      %v4515 = vadd.f32 0.0, %v4514
      %v4516 = vpop.f32.mrb[0].mxu0
      %4517 = vmatprep.mubr.f32.mxu0 %v4204
      %4518 = vmatmul.mubr.f32.gmra.mrb[0].mxu0 %v4203
      %v4519 = vpop.f32.mrb[0].mxu0
      %v4520 = vadd.f32 0.0, %v4519
      %v4521 = vpop.f32.mrb[0].mxu0
      %4522 = vmatprep.mubr.f32.mxu0 %v4207
      %4523 = vmatmul.mubr.f32.gmra.mrb[0].mxu0 %v4206
      %v4524 = vpop.f32.mrb[0].mxu0
      %v4525 = vadd.f32 0.0, %v4524
      %v4526 = vpop.f32.mrb[0].mxu0
      %4527 = vmatprep.mubr.f32.mxu0 %v4210
      %4528 = vmatmul.mubr.f32.gmra.mrb[0].mxu0 %v4209
      %v4529 = vpop.f32.mrb[0].mxu0
      %v4530 = vadd.f32 0.0, %v4529
      %v4531 = vpop.f32.mrb[0].mxu0
      %4532 = vmatprep.mubr.f32.mxu0 %v4213
      %4533 = vmatmul.mubr.f32.gmra.mrb[0].mxu0 %v4212
      %v4534 = vpop.f32.mrb[0].mxu0
      %v4535 = vadd.f32 0.0, %v4534
      %v4536 = vpop.f32.mrb[0].mxu0
      %4537 = vmatprep.mubr.f32.mxu0 %v4216
      %4538 = vmatmul.mubr.f32.gmra.mrb[0].mxu0 %v4215
      %v4539 = vpop.f32.mrb[0].mxu0
      %v4540 = vadd.f32 0.0, %v4539
      %v4541 = vpop.f32.mrb[0].mxu0
      %4542 = vmatprep.mubr.f32.mxu0 %v4219
      %4543 = vmatmul.mubr.f32.gmra.mrb[0].mxu0 %v4218
      %v4544 = vpop.f32.mrb[0].mxu0
      %v4545 = vadd.f32 0.0, %v4544
      %v4546 = vpop.f32.mrb[0].mxu0
      %4547 = vmatprep.mubr.f32.mxu0 %v4222
      %4548 = vmatmul.mubr.f32.gmra.mrb[0].mxu0 %v4221
      %v4549 = vpop.f32.mrb[0].mxu0
      %v4550 = vadd.f32 0.0, %v4549
      %v4551 = vpop.f32.mrb[0].mxu0
      %4552 = vmatprep.mubr.f32.mxu0 %v4225
      %4553 = vmatmul.mubr.f32.gmra.mrb[0].mxu0 %v4224
      %v4554 = vpop.f32.mrb[0].mxu0
      %v4555 = vadd.f32 0.0, %v4554
      %v4556 = vpop.f32.mrb[0].mxu0
      %4557 = vmatprep.mubr.f32.mxu0 %v4228
      %4558 = vmatmul.mubr.f32.gmra.mrb[0].mxu0 %v4227
      %v4559 = vpop.f32.mrb[0].mxu0
      %v4560 = vadd.f32 0.0, %v4559
      %v4561 = vpop.f32.mrb[0].mxu0
      %4562 = vmatprep.mubr.f32.mxu0 %v4231
      %4563 = vmatmul.mubr.f32.gmra.mrb[0].mxu0 %v4230
      %v4564 = vpop.f32.mrb[0].mxu0
      %v4565 = vadd.f32 0.0, %v4564
      %v4566 = vpop.f32.mrb[0].mxu0
      %4567 = vmatprep.mubr.f32.mxu0 %v4234
      %4568 = vmatmul.mubr.f32.gmra.mrb[0].mxu0 %v4233
      %v4569 = vpop.f32.mrb[0].mxu0
      %v4570 = vadd.f32 0.0, %v4569
      %v4571 = vpop.f32.mrb[0].mxu0
      %4572 = vmatprep.mubr.f32.mxu0 %v4237
      %4573 = vmatmul.mubr.f32.gmra.mrb[0].mxu0 %v4236
      %v4574 = vpop.f32.mrb[0].mxu0
      %v4575 = vadd.f32 0.0, %v4574
      %v4576 = vpop.f32.mrb[0].mxu0
      %4577 = vmatprep.mubr.f32.mxu0 %v4240
      %4578 = vmatmul.mubr.f32.gmra.mrb[0].mxu0 %v4239
      %v4579 = vpop.f32.mrb[0].mxu0
      %v4580 = vadd.f32 0.0, %v4579
      %v4581 = vpop.f32.mrb[0].mxu0
      %4582 = vmatprep.mubr.f32.mxu0 %v4243
      %4583 = vmatmul.mubr.f32.gmra.mrb[0].mxu0 %v4242
      %v4584 = vpop.f32.mrb[0].mxu0
      %v4585 = vadd.f32 0.0, %v4584
      %v4586 = vpop.f32.mrb[0].mxu0
      %4587 = vmatprep.mubr.f32.mxu0 %v4246
      %4588 = vmatmul.mubr.f32.gmra.mrb[0].mxu0 %v4245
      %v4589 = vpop.f32.mrb[0].mxu0
      %v4590 = vadd.f32 0.0, %v4589
      %v4591 = vpop.f32.mrb[0].mxu0
      %4592 = vmatprep.mubr.f32.mxu0 %v4249
      %4593 = vmatmul.mubr.f32.gmra.mrb[0].mxu0 %v4248
      %v4594 = vpop.f32.mrb[0].mxu0
      %v4595 = vadd.f32 0.0, %v4594
      %v4596 = vpop.f32.mrb[0].mxu0
      %4597 = vmatprep.mubr.f32.mxu0 %v4252
      %4598 = vmatmul.mubr.f32.gmra.mrb[0].mxu0 %v4251
      %v4599 = vpop.f32.mrb[0].mxu0
      %v4600 = vadd.f32 0.0, %v4599
      %v4601 = vpop.f32.mrb[0].mxu0
      %4602 = vmatprep.mubr.f32.mxu0 %v4255
      %4603 = vmatmul.mubr.f32.gmra.mrb[0].mxu0 %v4254
      %v4604 = vpop.f32.mrb[0].mxu0
      %v4605 = vadd.f32 0.0, %v4604
      %v4606 = vpop.f32.mrb[0].mxu0
      %4607 = vmatprep.mubr.f32.mxu0 %v4258
      %4608 = vmatmul.mubr.f32.gmra.mrb[0].mxu0 %v4257
      %v4609 = vpop.f32.mrb[0].mxu0
      %v4610 = vadd.f32 0.0, %v4609
      %v4611 = vpop.f32.mrb[0].mxu0
      %4612 = vmatprep.mubr.f32.mxu0 %v4261
      %4613 = vmatmul.mubr.f32.gmra.mrb[0].mxu0 %v4260
      %v4614 = vpop.f32.mrb[0].mxu0
      %v4615 = vadd.f32 0.0, %v4614
      %v4616 = vpop.f32.mrb[0].mxu0
      %4617 = vmatprep.mubr.f32.mxu0 %v4264
      %4618 = vmatmul.mubr.f32.gmra.mrb[0].mxu0 %v4263
      %v4619 = vpop.f32.mrb[0].mxu0
      %v4620 = vadd.f32 0.0, %v4619
      %v4621 = vpop.f32.mrb[0].mxu0
      %4622 = vdwg.mxu0
      %4623 = vmatprep.subr.mxu0 0.0
      %4624 = vmatpush1.msra.mxu0 %v4298
      %4625 = vmatprep.subr.mxu0 0.0
      %4626 = vmatpush1.msra.mxu0 %v4299
      %4627 = vmatprep.subr.mxu0 0.0
      %4628 = vmatpush1.msra.mxu0 %v4300
      %4629 = vmatprep.subr.mxu0 0.0
      %4630 = vmatpush1.msra.mxu0 %v4301
      %4631 = vmatprep.subr.mxu0 0.0
      %4632 = vmatpush1.msra.mxu0 0.0
      %4633 = vmatprep.subr.mxu0 0.0
      %4634 = vmatpush1.msra.mxu0 0.0
      %4635 = vmatprep.subr.mxu0 0.0
      %4636 = vmatpush1.msra.mxu0 0.0
      %4637 = vmatprep.subr.mxu0 0.0
      %4638 = vmatpush1.msra.mxu0 0.0
      %4639 = vmatprep.subr.mxu0 0.0
      %4640 = vmatpush1.msra.mxu0 0.0
      %4641 = vmatprep.subr.mxu0 0.0
      %4642 = vmatpush1.msra.mxu0 0.0
      %4643 = vmatprep.subr.mxu0 0.0
      %4644 = vmatpush1.msra.mxu0 0.0
      %4645 = vmatprep.subr.mxu0 0.0
      %4646 = vmatpush1.msra.mxu0 0.0
      %4647 = vmatprep.subr.mxu0 0.0
      %4648 = vmatpush1.msra.mxu0 0.0
      %4649 = vmatprep.subr.mxu0 0.0
      %4650 = vmatpush1.msra.mxu0 0.0
      %4651 = vmatprep.subr.mxu0 0.0
      %4652 = vmatpush1.msra.mxu0 0.0
      %4653 = vmatprep.subr.mxu0 0.0
      %4654 = vmatpush1.msra.mxu0 0.0
      %4655 = vmatprep.subr.mxu0 0.0
      %4656 = vmatpush1.msra.mxu0 0.0
      %4657 = vmatprep.subr.mxu0 0.0
      %4658 = vmatpush1.msra.mxu0 0.0
      %4659 = vmatprep.subr.mxu0 0.0
      %4660 = vmatpush1.msra.mxu0 0.0
      %4661 = vmatprep.subr.mxu0 0.0
      %4662 = vmatpush1.msra.mxu0 0.0
      %4663 = vmatprep.subr.mxu0 0.0
      %4664 = vmatpush1.msra.mxu0 0.0
      %4665 = vmatprep.subr.mxu0 0.0
      %4666 = vmatpush1.msra.mxu0 0.0
      %4667 = vmatprep.subr.mxu0 0.0
      %4668 = vmatpush1.msra.mxu0 0.0
      %4669 = vmatprep.subr.mxu0 0.0
      %4670 = vmatpush1.msra.mxu0 0.0
      %4671 = vmatprep.subr.mxu0 0.0
      %4672 = vmatpush1.msra.mxu0 0.0
      %4673 = vmatprep.subr.mxu0 0.0
      %4674 = vmatpush1.msra.mxu0 0.0
      %4675 = vmatprep.subr.mxu0 0.0
      %4676 = vmatpush1.msra.mxu0 0.0
      %4677 = vmatprep.subr.mxu0 0.0
      %4678 = vmatpush1.msra.mxu0 0.0
      %4679 = vmatprep.subr.mxu0 0.0
      %4680 = vmatpush1.msra.mxu0 0.0
      %4681 = vmatprep.subr.mxu0 0.0
      %4682 = vmatpush1.msra.mxu0 0.0
      %4683 = vmatprep.subr.mxu0 0.0
      %4684 = vmatpush1.msra.mxu0 0.0
      %4685 = vmatprep.subr.mxu0 0.0
      %4686 = vmatpush1.msra.mxu0 0.0
      %4687 = vmatprep.mubr.f32.mxu0 0.0
      %4688 = vmatmul.mubr.f32.gmra.mrb[0].mxu0 %v4303
      %v4689 = vpop.f32.mrb[0].mxu0
      %v4690 = vadd.f32 %v4465, %v4689
      %v4691 = vpop.f32.mrb[0].mxu0
      %4692 = vmatprep.mubr.f32.mxu0 0.0
      %4693 = vmatmul.mubr.f32.gmra.mrb[0].mxu0 %v4306
      %v4694 = vpop.f32.mrb[0].mxu0
      %v4695 = vadd.f32 %v4470, %v4694
      %v4696 = vpop.f32.mrb[0].mxu0
      %4697 = vmatprep.mubr.f32.mxu0 0.0
      %4698 = vmatmul.mubr.f32.gmra.mrb[0].mxu0 %v4309
      %v4699 = vpop.f32.mrb[0].mxu0
      %v4700 = vadd.f32 %v4475, %v4699
      %v4701 = vpop.f32.mrb[0].mxu0
      %4702 = vmatprep.mubr.f32.mxu0 0.0
      %4703 = vmatmul.mubr.f32.gmra.mrb[0].mxu0 %v4312
      %v4704 = vpop.f32.mrb[0].mxu0
      %v4705 = vadd.f32 %v4480, %v4704
      %v4706 = vpop.f32.mrb[0].mxu0
      %4707 = vmatprep.mubr.f32.mxu0 0.0
      %4708 = vmatmul.mubr.f32.gmra.mrb[0].mxu0 %v4315
      %v4709 = vpop.f32.mrb[0].mxu0
      %v4710 = vadd.f32 %v4485, %v4709
      %v4711 = vpop.f32.mrb[0].mxu0
      %4712 = vmatprep.mubr.f32.mxu0 0.0
      %4713 = vmatmul.mubr.f32.gmra.mrb[0].mxu0 %v4318
      %v4714 = vpop.f32.mrb[0].mxu0
      %v4715 = vadd.f32 %v4490, %v4714
      %v4716 = vpop.f32.mrb[0].mxu0
      %4717 = vmatprep.mubr.f32.mxu0 0.0
      %4718 = vmatmul.mubr.f32.gmra.mrb[0].mxu0 %v4321
      %v4719 = vpop.f32.mrb[0].mxu0
      %v4720 = vadd.f32 %v4495, %v4719
      %v4721 = vpop.f32.mrb[0].mxu0
      %4722 = vmatprep.mubr.f32.mxu0 0.0
      %4723 = vmatmul.mubr.f32.gmra.mrb[0].mxu0 %v4324
      %v4724 = vpop.f32.mrb[0].mxu0
      %v4725 = vadd.f32 %v4500, %v4724
      %v4726 = vpop.f32.mrb[0].mxu0
      %4727 = vmatprep.mubr.f32.mxu0 0.0
      %4728 = vmatmul.mubr.f32.gmra.mrb[0].mxu0 %v4327
      %v4729 = vpop.f32.mrb[0].mxu0
      %v4730 = vadd.f32 %v4505, %v4729
      %v4731 = vpop.f32.mrb[0].mxu0
      %4732 = vmatprep.mubr.f32.mxu0 0.0
      %4733 = vmatmul.mubr.f32.gmra.mrb[0].mxu0 %v4330
      %v4734 = vpop.f32.mrb[0].mxu0
      %v4735 = vadd.f32 %v4510, %v4734
      %v4736 = vpop.f32.mrb[0].mxu0
      %4737 = vmatprep.mubr.f32.mxu0 0.0
      %4738 = vmatmul.mubr.f32.gmra.mrb[0].mxu0 %v4333
      %v4739 = vpop.f32.mrb[0].mxu0
      %v4740 = vadd.f32 %v4515, %v4739
      %v4741 = vpop.f32.mrb[0].mxu0
      %4742 = vmatprep.mubr.f32.mxu0 0.0
      %4743 = vmatmul.mubr.f32.gmra.mrb[0].mxu0 %v4336
      %v4744 = vpop.f32.mrb[0].mxu0
      %v4745 = vadd.f32 %v4520, %v4744
      %v4746 = vpop.f32.mrb[0].mxu0
      %4747 = vmatprep.mubr.f32.mxu0 0.0
      %4748 = vmatmul.mubr.f32.gmra.mrb[0].mxu0 %v4339
      %v4749 = vpop.f32.mrb[0].mxu0
      %v4750 = vadd.f32 %v4525, %v4749
      %v4751 = vpop.f32.mrb[0].mxu0
      %4752 = vmatprep.mubr.f32.mxu0 0.0
      %4753 = vmatmul.mubr.f32.gmra.mrb[0].mxu0 %v4342
      %v4754 = vpop.f32.mrb[0].mxu0
      %v4755 = vadd.f32 %v4530, %v4754
      %v4756 = vpop.f32.mrb[0].mxu0
      %4757 = vmatprep.mubr.f32.mxu0 0.0
      %4758 = vmatmul.mubr.f32.gmra.mrb[0].mxu0 %v4345
      %v4759 = vpop.f32.mrb[0].mxu0
      %v4760 = vadd.f32 %v4535, %v4759
      %v4761 = vpop.f32.mrb[0].mxu0
      %4762 = vmatprep.mubr.f32.mxu0 0.0
      %4763 = vmatmul.mubr.f32.gmra.mrb[0].mxu0 %v4348
      %v4764 = vpop.f32.mrb[0].mxu0
      %v4765 = vadd.f32 %v4540, %v4764
      %v4766 = vpop.f32.mrb[0].mxu0
      %4767 = vmatprep.mubr.f32.mxu0 0.0
      %4768 = vmatmul.mubr.f32.gmra.mrb[0].mxu0 %v4351
      %v4769 = vpop.f32.mrb[0].mxu0
      %v4770 = vadd.f32 %v4545, %v4769
      %v4771 = vpop.f32.mrb[0].mxu0
      %4772 = vmatprep.mubr.f32.mxu0 0.0
      %4773 = vmatmul.mubr.f32.gmra.mrb[0].mxu0 %v4354
      %v4774 = vpop.f32.mrb[0].mxu0
      %v4775 = vadd.f32 %v4550, %v4774
      %v4776 = vpop.f32.mrb[0].mxu0
      %4777 = vmatprep.mubr.f32.mxu0 0.0
      %4778 = vmatmul.mubr.f32.gmra.mrb[0].mxu0 %v4357
      %v4779 = vpop.f32.mrb[0].mxu0
      %v4780 = vadd.f32 %v4555, %v4779
      %v4781 = vpop.f32.mrb[0].mxu0
      %4782 = vmatprep.mubr.f32.mxu0 0.0
      %4783 = vmatmul.mubr.f32.gmra.mrb[0].mxu0 %v4360
      %v4784 = vpop.f32.mrb[0].mxu0
      %v4785 = vadd.f32 %v4560, %v4784
      %v4786 = vpop.f32.mrb[0].mxu0
      %4787 = vmatprep.mubr.f32.mxu0 0.0
      %4788 = vmatmul.mubr.f32.gmra.mrb[0].mxu0 %v4363
      %v4789 = vpop.f32.mrb[0].mxu0
      %v4790 = vadd.f32 %v4565, %v4789
      %v4791 = vpop.f32.mrb[0].mxu0
      %4792 = vmatprep.mubr.f32.mxu0 0.0
      %4793 = vmatmul.mubr.f32.gmra.mrb[0].mxu0 %v4366
      %v4794 = vpop.f32.mrb[0].mxu0
      %v4795 = vadd.f32 %v4570, %v4794
      %v4796 = vpop.f32.mrb[0].mxu0
      %4797 = vmatprep.mubr.f32.mxu0 0.0
      %4798 = vmatmul.mubr.f32.gmra.mrb[0].mxu0 %v4369
      %v4799 = vpop.f32.mrb[0].mxu0
      %v4800 = vadd.f32 %v4575, %v4799
      %v4801 = vpop.f32.mrb[0].mxu0
      %4802 = vmatprep.mubr.f32.mxu0 0.0
      %4803 = vmatmul.mubr.f32.gmra.mrb[0].mxu0 %v4372
      %v4804 = vpop.f32.mrb[0].mxu0
      %v4805 = vadd.f32 %v4580, %v4804
      %v4806 = vpop.f32.mrb[0].mxu0
      %4807 = vmatprep.mubr.f32.mxu0 0.0
      %4808 = vmatmul.mubr.f32.gmra.mrb[0].mxu0 %v4375
      %v4809 = vpop.f32.mrb[0].mxu0
      %v4810 = vadd.f32 %v4585, %v4809
      %v4811 = vpop.f32.mrb[0].mxu0
      %4812 = vmatprep.mubr.f32.mxu0 0.0
      %4813 = vmatmul.mubr.f32.gmra.mrb[0].mxu0 %v4378
      %v4814 = vpop.f32.mrb[0].mxu0
      %v4815 = vadd.f32 %v4590, %v4814
      %v4816 = vpop.f32.mrb[0].mxu0
      %4817 = vmatprep.mubr.f32.mxu0 0.0
      %4818 = vmatmul.mubr.f32.gmra.mrb[0].mxu0 %v4381
      %v4819 = vpop.f32.mrb[0].mxu0
      %v4820 = vadd.f32 %v4595, %v4819
      %v4821 = vpop.f32.mrb[0].mxu0
      %4822 = vmatprep.mubr.f32.mxu0 0.0
      %4823 = vmatmul.mubr.f32.gmra.mrb[0].mxu0 %v4384
      %v4824 = vpop.f32.mrb[0].mxu0
      %v4825 = vadd.f32 %v4600, %v4824
      %v4826 = vpop.f32.mrb[0].mxu0
      %4827 = vmatprep.mubr.f32.mxu0 0.0
      %4828 = vmatmul.mubr.f32.gmra.mrb[0].mxu0 %v4387
      %v4829 = vpop.f32.mrb[0].mxu0
      %v4830 = vadd.f32 %v4605, %v4829
      %v4831 = vpop.f32.mrb[0].mxu0
      %4832 = vmatprep.mubr.f32.mxu0 0.0
      %4833 = vmatmul.mubr.f32.gmra.mrb[0].mxu0 %v4390
      %v4834 = vpop.f32.mrb[0].mxu0
      %v4835 = vadd.f32 %v4610, %v4834
      %v4836 = vpop.f32.mrb[0].mxu0
      %4837 = vmatprep.mubr.f32.mxu0 0.0
      %4838 = vmatmul.mubr.f32.gmra.mrb[0].mxu0 %v4393
      %v4839 = vpop.f32.mrb[0].mxu0
      %v4840 = vadd.f32 %v4615, %v4839
      %v4841 = vpop.f32.mrb[0].mxu0
      %4842 = vmatprep.mubr.f32.mxu0 0.0
      %4843 = vmatmul.mubr.f32.gmra.mrb[0].mxu0 %v4396
      %v4844 = vpop.f32.mrb[0].mxu0
      %v4845 = vadd.f32 %v4620, %v4844
      %v4846 = vpop.f32.mrb[0].mxu0
      %4847 = vdwg.mxu0
      %v4848 = vsel %vm459, %v4690, 0.0
      %v4849 = vsel %vm459, %v4695, 0.0
      %v4850 = vadd.f32 %v4848, %v4849
      %v4851 = vsel %vm459, %v4700, 0.0
      %v4852 = vadd.f32 %v4850, %v4851
      %v4853 = vsel %vm459, %v4705, 0.0
      %v4854 = vadd.f32 %v4852, %v4853
      %v4855 = vsel %vm459, %v4710, 0.0
      %v4856 = vadd.f32 %v4854, %v4855
      %v4857 = vsel %vm459, %v4715, 0.0
      %v4858 = vadd.f32 %v4856, %v4857
      %v4859 = vsel %vm459, %v4720, 0.0
      %v4860 = vadd.f32 %v4858, %v4859
      %v4861 = vsel %vm459, %v4725, 0.0
      %v4862 = vadd.f32 %v4860, %v4861
      %v4863 = vsel %vm459, %v4730, 0.0
      %v4864 = vadd.f32 %v4862, %v4863
      %v4865 = vsel %vm459, %v4735, 0.0
      %v4866 = vadd.f32 %v4864, %v4865
      %v4867 = vsel %vm459, %v4740, 0.0
      %v4868 = vadd.f32 %v4866, %v4867
      %v4869 = vsel %vm459, %v4745, 0.0
      %v4870 = vadd.f32 %v4868, %v4869
      %v4871 = vsel %vm459, %v4750, 0.0
      %v4872 = vadd.f32 %v4870, %v4871
      %v4873 = vsel %vm459, %v4755, 0.0
      %v4874 = vadd.f32 %v4872, %v4873
      %v4875 = vsel %vm459, %v4760, 0.0
      %v4876 = vadd.f32 %v4874, %v4875
      %v4877 = vsel %vm459, %v4765, 0.0
      %v4878 = vadd.f32 %v4876, %v4877
      %v4879 = vsel %vm459, %v4770, 0.0
      %v4880 = vadd.f32 %v4878, %v4879
      %v4881 = vsel %vm459, %v4775, 0.0
      %v4882 = vadd.f32 %v4880, %v4881
      %v4883 = vsel %vm459, %v4780, 0.0
      %v4884 = vadd.f32 %v4882, %v4883
      %v4885 = vsel %vm459, %v4785, 0.0
      %v4886 = vadd.f32 %v4884, %v4885
      %v4887 = vsel %vm459, %v4790, 0.0
      %v4888 = vadd.f32 %v4886, %v4887
      %v4889 = vsel %vm459, %v4795, 0.0
      %v4890 = vadd.f32 %v4888, %v4889
      %v4891 = vsel %vm459, %v4800, 0.0
      %v4892 = vadd.f32 %v4890, %v4891
      %v4893 = vsel %vm459, %v4805, 0.0
      %v4894 = vadd.f32 %v4892, %v4893
      %v4895 = vsel %vm459, %v4810, 0.0
      %v4896 = vadd.f32 %v4894, %v4895
      %v4897 = vsel %vm459, %v4815, 0.0
      %v4898 = vadd.f32 %v4896, %v4897
      %v4899 = vsel %vm459, %v4820, 0.0
      %v4900 = vadd.f32 %v4898, %v4899
      %v4901 = vsel %vm459, %v4825, 0.0
      %v4902 = vadd.f32 %v4900, %v4901
      %v4903 = vsel %vm459, %v4830, 0.0
      %v4904 = vadd.f32 %v4902, %v4903
      %v4905 = vsel %vm459, %v4835, 0.0
      %v4906 = vadd.f32 %v4904, %v4905
      %v4907 = vsel %vm459, %v4840, 0.0
      %v4908 = vadd.f32 %v4906, %v4907
      %v4909 = vsel %vm459, %v4845, 0.0
      %v4910 = vadd.f32 %v4908, %v4909
      %v4911 = vrot.slane %v4910, 4
      %v4912 = vadd.f32 %v4910, %v4911
      %v4913 = vrot.slane %v4912, 2
      %v4914 = vadd.f32 %v4912, %v4913
      %v4915 = vrot.slane %v4914, 1
      %v4916 = vadd.f32 %v4914, %v4915
      %v4917 = vrcp.pop 256.0
      %v4918 = vmul.f32 %v4916, %v4917
      %v4919 = vld [vmem:[%s7] sm:$0xff]
      %v4920 = vld [vmem:[%s7 + $0x8] sm:$0xff]
      %v4921 = vld [vmem:[%s7 + $0x10] sm:$0xff]
      %v4922 = vld [vmem:[%s7 + $0x18] sm:$0xff]
      %v4923 = vld [vmem:[%s8] sm:$0x1]
      %v4925 = vsel %vm459, %v4918, 0
      %4927 = vmatprep.subr.mxu0 0.0
      %4928 = vmatpush1.msra.mxu0 %v4919
      %4929 = vmatprep.subr.mxu0 0.0
      %4930 = vmatpush1.msra.mxu0 %v4920
      %4931 = vmatprep.subr.mxu0 0.0
      %4932 = vmatpush1.msra.mxu0 %v4921
      %4933 = vmatprep.subr.mxu0 0.0
      %4934 = vmatpush1.msra.mxu0 %v4922
      %4935 = vmatprep.subr.mxu0 0.0
      %4936 = vmatpush1.msra.mxu0 0.0
      %4937 = vmatprep.subr.mxu0 0.0
      %4938 = vmatpush1.msra.mxu0 0.0
      %4939 = vmatprep.subr.mxu0 0.0
      %4940 = vmatpush1.msra.mxu0 0.0
      %4941 = vmatprep.subr.mxu0 0.0
      %4942 = vmatpush1.msra.mxu0 0.0
      %4943 = vmatprep.subr.mxu0 0.0
      %4944 = vmatpush1.msra.mxu0 0.0
      %4945 = vmatprep.subr.mxu0 0.0
      %4946 = vmatpush1.msra.mxu0 0.0
      %4947 = vmatprep.subr.mxu0 0.0
      %4948 = vmatpush1.msra.mxu0 0.0
      %4949 = vmatprep.subr.mxu0 0.0
      %4950 = vmatpush1.msra.mxu0 0.0
      %4951 = vmatprep.subr.mxu0 0.0
      %4952 = vmatpush1.msra.mxu0 0.0
      %4953 = vmatprep.subr.mxu0 0.0
      %4954 = vmatpush1.msra.mxu0 0.0
      %4955 = vmatprep.subr.mxu0 0.0
      %4956 = vmatpush1.msra.mxu0 0.0
      %4957 = vmatprep.subr.mxu0 0.0
      %4958 = vmatpush1.msra.mxu0 0.0
      %4959 = vmatprep.subr.mxu0 0.0
      %4960 = vmatpush1.msra.mxu0 0.0
      %4961 = vmatprep.subr.mxu0 0.0
      %4962 = vmatpush1.msra.mxu0 0.0
      %4963 = vmatprep.subr.mxu0 0.0
      %4964 = vmatpush1.msra.mxu0 0.0
      %4965 = vmatprep.subr.mxu0 0.0
      %4966 = vmatpush1.msra.mxu0 0.0
      %4967 = vmatprep.subr.mxu0 0.0
      %4968 = vmatpush1.msra.mxu0 0.0
      %4969 = vmatprep.subr.mxu0 0.0
      %4970 = vmatpush1.msra.mxu0 0.0
      %4971 = vmatprep.subr.mxu0 0.0
      %4972 = vmatpush1.msra.mxu0 0.0
      %4973 = vmatprep.subr.mxu0 0.0
      %4974 = vmatpush1.msra.mxu0 0.0
      %4975 = vmatprep.subr.mxu0 0.0
      %4976 = vmatpush1.msra.mxu0 0.0
      %4977 = vmatprep.subr.mxu0 0.0
      %4978 = vmatpush1.msra.mxu0 0.0
      %4979 = vmatprep.subr.mxu0 0.0
      %4980 = vmatpush1.msra.mxu0 0.0
      %4981 = vmatprep.subr.mxu0 0.0
      %4982 = vmatpush1.msra.mxu0 0.0
      %4983 = vmatprep.subr.mxu0 0.0
      %4984 = vmatpush1.msra.mxu0 0.0
      %4985 = vmatprep.subr.mxu0 0.0
      %4986 = vmatpush1.msra.mxu0 0.0
      %4987 = vmatprep.subr.mxu0 0.0
      %4988 = vmatpush1.msra.mxu0 0.0
      %4989 = vmatprep.subr.mxu0 0.0
      %4990 = vmatpush1.msra.mxu0 0.0
      %4991 = vmatprep.mubr.f32.mxu0 0.0
      %4992 = vmatmul.mubr.f32.gmra.mrb[0].mxu0 %v4925
      %v4993 = vpop.f32.mrb[0].mxu0
      %v4994 = vadd.f32 %v4923, %v4993
      %v4995 = vpop.f32.mrb[0].mxu0
      %4996 = vdwg.mxu0
      %v4997 = vmax.f32 %v4994, 0.0
      %v4998 = vld [vmem:[%s9] sm:$0x3]
      %v4999 = vld [vmem:[%s10] sm:$0x1]
      %vm5000 = vcmask 15360
      %v5002 = vsel %vm5000, %v4997, 0
      %vm5004 = vcmask 1041408
      %v5006 = vsel %vm5004, %v4998, 0
      %5008 = vmatprep.subr.mxu0 0.0
      %5009 = vmatpush1.msra.mxu0 %v5006
      %5010 = vmatprep.subr.mxu0 0.0
      %5011 = vmatpush1.msra.mxu0 0.0
      %5012 = vmatprep.subr.mxu0 0.0
      %5013 = vmatpush1.msra.mxu0 0.0
      %5014 = vmatprep.subr.mxu0 0.0
      %5015 = vmatpush1.msra.mxu0 0.0
      %5016 = vmatprep.subr.mxu0 0.0
      %5017 = vmatpush1.msra.mxu0 0.0
      %5018 = vmatprep.subr.mxu0 0.0
      %5019 = vmatpush1.msra.mxu0 0.0
      %5020 = vmatprep.subr.mxu0 0.0
      %5021 = vmatpush1.msra.mxu0 0.0
      %5022 = vmatprep.subr.mxu0 0.0
      %5023 = vmatpush1.msra.mxu0 0.0
      %5024 = vmatprep.subr.mxu0 0.0
      %5025 = vmatpush1.msra.mxu0 0.0
      %5026 = vmatprep.subr.mxu0 0.0
      %5027 = vmatpush1.msra.mxu0 0.0
      %5028 = vmatprep.subr.mxu0 0.0
      %5029 = vmatpush1.msra.mxu0 0.0
      %5030 = vmatprep.subr.mxu0 0.0
      %5031 = vmatpush1.msra.mxu0 0.0
      %5032 = vmatprep.subr.mxu0 0.0
      %5033 = vmatpush1.msra.mxu0 0.0
      %5034 = vmatprep.subr.mxu0 0.0
      %5035 = vmatpush1.msra.mxu0 0.0
      %5036 = vmatprep.subr.mxu0 0.0
      %5037 = vmatpush1.msra.mxu0 0.0
      %5038 = vmatprep.subr.mxu0 0.0
      %5039 = vmatpush1.msra.mxu0 0.0
      %5040 = vmatprep.subr.mxu0 0.0
      %5041 = vmatpush1.msra.mxu0 0.0
      %5042 = vmatprep.subr.mxu0 0.0
      %5043 = vmatpush1.msra.mxu0 0.0
      %5044 = vmatprep.subr.mxu0 0.0
      %5045 = vmatpush1.msra.mxu0 0.0
      %5046 = vmatprep.subr.mxu0 0.0
      %5047 = vmatpush1.msra.mxu0 0.0
      %5048 = vmatprep.subr.mxu0 0.0
      %5049 = vmatpush1.msra.mxu0 0.0
      %5050 = vmatprep.subr.mxu0 0.0
      %5051 = vmatpush1.msra.mxu0 0.0
      %5052 = vmatprep.subr.mxu0 0.0
      %5053 = vmatpush1.msra.mxu0 0.0
      %5054 = vmatprep.subr.mxu0 0.0
      %5055 = vmatpush1.msra.mxu0 0.0
      %5056 = vmatprep.subr.mxu0 0.0
      %5057 = vmatpush1.msra.mxu0 0.0
      %5058 = vmatprep.subr.mxu0 0.0
      %5059 = vmatpush1.msra.mxu0 0.0
      %5060 = vmatprep.subr.mxu0 0.0
      %5061 = vmatpush1.msra.mxu0 0.0
      %5062 = vmatprep.subr.mxu0 0.0
      %5063 = vmatpush1.msra.mxu0 0.0
      %5064 = vmatprep.subr.mxu0 0.0
      %5065 = vmatpush1.msra.mxu0 0.0
      %5066 = vmatprep.subr.mxu0 0.0
      %5067 = vmatpush1.msra.mxu0 0.0
      %5068 = vmatprep.subr.mxu0 0.0
      %5069 = vmatpush1.msra.mxu0 0.0
      %5070 = vmatprep.subr.mxu0 0.0
      %5071 = vmatpush1.msra.mxu0 0.0
      %5072 = vmatprep.mubr.f32.mxu0 0.0
      %5073 = vmatmul.mubr.f32.gmra.mrb[0].mxu0 %v5002
      %v5074 = vpop.f32.mrb[0].mxu0
      %v5075 = vadd.f32 %v4999, %v5074
      %v5076 = vpop.f32.mrb[0].mxu0
      %5077 = vdwg.mxu0
      %v5078 = vxor.u32 %v5075, 2147483648
      %v5079 = vmul.f32 %v5078, 1.442695
      %v5080 = vpow.pop %v5079
      %v5081 = vadd.f32 %v5080, 1.0
      %v5082 = vrcp.pop %v5081
      %v5083 = vmul.f32 1.0, %v5082
      %v5084 = vlaneseq
      %v5085 = vshrl.u32 %v5084, 7
      %v5086 = vsub.s32 0, %v5085
      %v5087 = vrot.slane %v5083, %v5086
      %v5088 = vmul.f32 %v4690, %v5087
      %v5089 = vmul.f32 %v4695, %v5087
      %v5090 = vmul.f32 %v4700, %v5087
      %v5091 = vmul.f32 %v4705, %v5087
      %v5092 = vmul.f32 %v4710, %v5087
      %v5093 = vmul.f32 %v4715, %v5087
      %v5094 = vmul.f32 %v4720, %v5087
      %v5095 = vmul.f32 %v4725, %v5087
      %v5096 = vmul.f32 %v4730, %v5087
      %v5097 = vmul.f32 %v4735, %v5087
      %v5098 = vmul.f32 %v4740, %v5087
      %v5099 = vmul.f32 %v4745, %v5087
      %v5100 = vmul.f32 %v4750, %v5087
      %v5101 = vmul.f32 %v4755, %v5087
      %v5102 = vmul.f32 %v4760, %v5087
      %v5103 = vmul.f32 %v4765, %v5087
      %v5104 = vmul.f32 %v4770, %v5087
      %v5105 = vmul.f32 %v4775, %v5087
      %v5106 = vmul.f32 %v4780, %v5087
      %v5107 = vmul.f32 %v4785, %v5087
      %v5108 = vmul.f32 %v4790, %v5087
      %v5109 = vmul.f32 %v4795, %v5087
      %v5110 = vmul.f32 %v4800, %v5087
      %v5111 = vmul.f32 %v4805, %v5087
      %v5112 = vmul.f32 %v4810, %v5087
      %v5113 = vmul.f32 %v4815, %v5087
      %v5114 = vmul.f32 %v4820, %v5087
      %v5115 = vmul.f32 %v4825, %v5087
      %v5116 = vmul.f32 %v4830, %v5087
      %v5117 = vmul.f32 %v4835, %v5087
      %v5118 = vmul.f32 %v4840, %v5087
      %v5119 = vmul.f32 %v4845, %v5087
      %v5120 = vadd.f32 %v5088, %v411
      %v5121 = vadd.f32 %v5089, %v412
      %v5122 = vadd.f32 %v5090, %v413
      %v5123 = vadd.f32 %v5091, %v414
      %v5124 = vadd.f32 %v5092, %v415
      %v5125 = vadd.f32 %v5093, %v416
      %v5126 = vadd.f32 %v5094, %v417
      %v5127 = vadd.f32 %v5095, %v418
      %v5128 = vadd.f32 %v5096, %v419
      %v5129 = vadd.f32 %v5097, %v420
      %v5130 = vadd.f32 %v5098, %v421
      %v5131 = vadd.f32 %v5099, %v422
      %v5132 = vadd.f32 %v5100, %v423
      %v5133 = vadd.f32 %v5101, %v424
      %v5134 = vadd.f32 %v5102, %v425
      %v5135 = vadd.f32 %v5103, %v426
      %v5136 = vadd.f32 %v5104, %v443
      %v5137 = vadd.f32 %v5105, %v444
      %v5138 = vadd.f32 %v5106, %v445
      %v5139 = vadd.f32 %v5107, %v446
      %v5140 = vadd.f32 %v5108, %v447
      %v5141 = vadd.f32 %v5109, %v448
      %v5142 = vadd.f32 %v5110, %v449
      %v5143 = vadd.f32 %v5111, %v450
      %v5144 = vadd.f32 %v5112, %v451
      %v5145 = vadd.f32 %v5113, %v452
      %v5146 = vadd.f32 %v5114, %v453
      %v5147 = vadd.f32 %v5115, %v454
      %v5148 = vadd.f32 %v5116, %v455
      %v5149 = vadd.f32 %v5117, %v456
      %v5150 = vadd.f32 %v5118, %v457
      %v5151 = vadd.f32 %v5119, %v458
      %5152 = vxpose.xlu0.b32.start [1/16] %v5120, 128
      %5153 = vxpose.xlu0.b32.cont [2/16] %v5121, 128
      %5154 = vxpose.xlu0.b32.cont [3/16] %v5122, 128
      %5155 = vxpose.xlu0.b32.cont [4/16] %v5123, 128
      %5156 = vxpose.xlu0.b32.cont [5/16] %v5124, 128
      %5157 = vxpose.xlu0.b32.cont [6/16] %v5125, 128
      %5158 = vxpose.xlu0.b32.cont [7/16] %v5126, 128
      %5159 = vxpose.xlu0.b32.cont [8/16] %v5127, 128
      %5160 = vxpose.xlu0.b32.cont [9/16] %v5128, 128
      %5161 = vxpose.xlu0.b32.cont [10/16] %v5129, 128
      %5162 = vxpose.xlu0.b32.cont [11/16] %v5130, 128
      %5163 = vxpose.xlu0.b32.cont [12/16] %v5131, 128
      %5164 = vxpose.xlu0.b32.cont [13/16] %v5132, 128
      %5165 = vxpose.xlu0.b32.cont [14/16] %v5133, 128
      %5166 = vxpose.xlu0.b32.cont [15/16] %v5134, 128
      %5167 = vxpose.xlu0.b32.end [16/16] %v5135, 128
      %v5168 = vpop.trf.xlu0
      %v5169 = vpop.trf.xlu0
      %v5170 = vpop.trf.xlu0
      %v5171 = vpop.trf.xlu0
      %v5172 = vpop.trf.xlu0
      %v5173 = vpop.trf.xlu0
      %v5174 = vpop.trf.xlu0
      %v5175 = vpop.trf.xlu0
      %v5176 = vpop.trf.xlu0
      %v5177 = vpop.trf.xlu0
      %v5178 = vpop.trf.xlu0
      %v5179 = vpop.trf.xlu0
      %v5180 = vpop.trf.xlu0
      %v5181 = vpop.trf.xlu0
      %v5182 = vpop.trf.xlu0
      %v5183 = vpop.trf.xlu0
      %5184 = vxpose.xlu0.b32.start [1/16] %v5136, 128
      %5185 = vxpose.xlu0.b32.cont [2/16] %v5137, 128
      %5186 = vxpose.xlu0.b32.cont [3/16] %v5138, 128
      %5187 = vxpose.xlu0.b32.cont [4/16] %v5139, 128
      %5188 = vxpose.xlu0.b32.cont [5/16] %v5140, 128
      %5189 = vxpose.xlu0.b32.cont [6/16] %v5141, 128
      %5190 = vxpose.xlu0.b32.cont [7/16] %v5142, 128
      %5191 = vxpose.xlu0.b32.cont [8/16] %v5143, 128
      %5192 = vxpose.xlu0.b32.cont [9/16] %v5144, 128
      %5193 = vxpose.xlu0.b32.cont [10/16] %v5145, 128
      %5194 = vxpose.xlu0.b32.cont [11/16] %v5146, 128
      %5195 = vxpose.xlu0.b32.cont [12/16] %v5147, 128
      %5196 = vxpose.xlu0.b32.cont [13/16] %v5148, 128
      %5197 = vxpose.xlu0.b32.cont [14/16] %v5149, 128
      %5198 = vxpose.xlu0.b32.cont [15/16] %v5150, 128
      %5199 = vxpose.xlu0.b32.end [16/16] %v5151, 128
      %v5200 = vpop.trf.xlu0
      %v5201 = vpop.trf.xlu0
      %v5202 = vpop.trf.xlu0
      %v5203 = vpop.trf.xlu0
      %v5204 = vpop.trf.xlu0
      %v5205 = vpop.trf.xlu0
      %v5206 = vpop.trf.xlu0
      %v5207 = vpop.trf.xlu0
      %v5208 = vpop.trf.xlu0
      %v5209 = vpop.trf.xlu0
      %v5210 = vpop.trf.xlu0
      %v5211 = vpop.trf.xlu0
      %v5212 = vpop.trf.xlu0
      %v5213 = vpop.trf.xlu0
      %v5214 = vpop.trf.xlu0
      %v5215 = vpop.trf.xlu0
      %5216 = vst [vmem:[%s386] sm:$0xff] %v5168
      %5217 = vst [vmem:[%s386 + $0x8] sm:$0xff] %v5200
      %5218 = vst [vmem:[%s386 + $0x10] sm:$0xff] %v5169
      %5219 = vst [vmem:[%s386 + $0x18] sm:$0xff] %v5201
      %5220 = vst [vmem:[%s386 + $0x20] sm:$0xff] %v5170
      %5221 = vst [vmem:[%s386 + $0x28] sm:$0xff] %v5202
      %5222 = vst [vmem:[%s386 + $0x30] sm:$0xff] %v5171
      %5223 = vst [vmem:[%s386 + $0x38] sm:$0xff] %v5203
      %p5224 = scmp.lt.s32.totalorder %s22, 1
      %s5225 = scalar_select %p5224, %s22, 1
      %s5226 = smul.addr %s5225, 8
      %s5227 = smul.addr %s5226, 8
      %s5228 = scalar_lea.vmem %s11, %s5227
      // Predicated region
      $region65: #{layer_block_forward.1} parent=63 // pred_check
        %p5229 = pneg %p276
      $region66: #{layer_block_forward.1} parent=63 // pred_check_branch
        %5231 = sbr.rel (%p5229) target = $region68
      $region67: #{layer_block_forward.1} parent=63 // pred_region
        _
      $region68: #{layer_block_forward.1} parent=63 // pred_fallthru
        _
    $region64: #{layer_block_forward.1} parent=5 // pred_fallthru
      _
    %p5232 = scmp.le.s32.totalorder 2, %s17
    // Predicated region
    $region69: #{layer_block_forward.1} parent=5 // pred_check
      %p5233 = pneg %p5232
    $region70: #{layer_block_forward.1} parent=5 // pred_check_branch
      %5235 = sbr.rel (%p5233) target = $region72
    $region71: #{layer_block_forward.1} parent=5 // pred_region
      %s5236 = ssub.s32 %s17, 2
      // Predicated region
      $region73: #{layer_block_forward.1} parent=71 // pred_check
        %p5237 = pneg %p282
      $region74: #{layer_block_forward.1} parent=71 // pred_check_branch
        %5239 = sbr.rel (%p5237) target = $region76
      $region75: #{layer_block_forward.1} parent=71 // pred_region
        %p5240 = scmp.lt.s32.totalorder %s23, 1
        %s5241 = scalar_select %p5240, %s23, 1
        %s5242 = smul.addr %s5241, 8
        %s5243 = smul.addr %s5242, 8
        %s5244 = scalar_lea.vmem %s11, %s5243
      $region76: #{layer_block_forward.1} parent=71 // pred_fallthru
        _
    $region72: #{layer_block_forward.1} parent=5 // pred_fallthru
      _
  $region6: #{layer_block_forward.1} parent=0 // loop_footer
    %s21 = sadd.s32 1, %s17
  $region7: #{layer_block_forward.1} parent=0 // loop_footer_branch
    %16 = sbr.rel target = $region3
  $region8: #{layer_block_forward.1} parent=0 // loop_exit
    _

</llo_original>
